<compile_context>
chip_gen: v7x
topology: tpu7x:2x2x1
jax: 0.10.0
libtpu: 0.0.40
codegen_flags: <defaults>
</compile_context>

<pallas_src>
import functools

import jax
import jax.numpy as jnp
from jax.experimental import pallas as pl
from jax.experimental.pallas import tpu as pltpu


# ----------------------------- Pallas kernel ---------------------------------

def _gru_discriminator_kernel(x_ref, w_ih_ref, w_hh_ref, b_gi_ref, b_hn3_ref,
                              h0_ref, w_lin_ref, b_lin_ref,
                              pred_ref, h_out_ref, *, num_layers, seq_len, batch, hidden):
    """Full multi-layer GRU recurrence + classification head, all in VMEM / vregs.

    x_ref:     (T*B, 1)     time-major flattened scalar input (row t*B + b = x[b, t, 0])
    w_ih_ref:  (L, H, 3H)   input->hidden weights [W_ir^T | W_iz^T | W_in^T]
                            (layer 0 only uses row 0: its real input size is 1)
    w_hh_ref:  (L, H, 3H)   hidden->hidden weights [W_hr^T | W_hz^T | W_hn^T]
    b_gi_ref:  (L, 1, 3H)   pre-summed input-side biases [b_ir+b_hr | b_iz+b_hz | b_in]
    b_hn3_ref: (L, 1, 3H)   hidden n-gate bias, zero-padded into the full 3H lane block
                            (r/z blocks are zeros so a full-width add is harmless)
    h0_ref:    (L, B, H)    initial hidden state
    w_lin_ref: (1, H)       Linear(hidden_dim, 1) weight
    b_lin_ref: (1, 1)       Linear bias
    pred_ref:  (B, 1)       sigmoid(linear(relu(output[:, -1])))
    h_out_ref: (L, B, H)    final hidden state of every layer
    """
    T, B, H = seq_len, batch, hidden

    # ---- Layer 0 hoisted input projection: scalar input -> VPU broadcast multiply ----
    w_row = w_ih_ref[0][0:1, :]                                # (1, 3H)
    gi0 = x_ref[...] * w_row + b_gi_ref[0]                     # (T*B, 3H)
    gi_list = [gi0[t * B:(t + 1) * B, :] for t in range(T)]    # static slices, (B, 3H)

    h = None
    for layer in range(num_layers):
        w_hh = w_hh_ref[layer]                                 # (H, 3H)
        b_hn3 = b_hn3_ref[layer]                               # (1, 3H), zeros in r/z
        has_next = layer < num_layers - 1
        if has_next:
            w_ih_next = w_ih_ref[layer + 1]                    # (H, 3H)
            b_gi_next = b_gi_ref[layer + 1]                    # (1, 3H)
            next_gi = []

        # ---- Recurrence: one fused (B,H)@(H,3H) matmul per step, fully unrolled ----
        h = h0_ref[layer]                                      # (B, H)
        for t in range(T):
            gi_t = gi_list[t]                                  # (B, 3H)
            gh = jnp.dot(h, w_hh, preferred_element_type=jnp.float32) + b_hn3  # (B, 3H)
            # Fused r/z sigmoid: one add + one EUP push on the (B, 2H) slab.
            rz = jax.nn.sigmoid(gi_t[:, :2 * H] + gh[:, :2 * H])
            r = rz[:, :H]
            z = rz[:, H:2 * H]
            n = jnp.tanh(gi_t[:, 2 * H:] + r * gh[:, 2 * H:])
            h = (1.0 - z) * n + z * h
            if has_next:
                # Next layer's input projection; overlaps this layer's EUP work.
                next_gi.append(
                    jnp.dot(h, w_ih_next, preferred_element_type=jnp.float32) + b_gi_next)

        h_out_ref[layer] = h
        if has_next:
            gi_list = next_gi

    # Head: output[:, -1] of the top layer == its final hidden state (kept live).
    out = jnp.maximum(h, 0.0)                                  # ReLU
    logits = jnp.sum(out * w_lin_ref[...], axis=-1, keepdims=True) + b_lin_ref[...]
    pred_ref[...] = jax.nn.sigmoid(logits)


# ------------------------------- Wrapper --------------------------------------

def discriminator_rnn_forward(x, h0, packed_params):
    """x: (B, T, 1) float32, h0: (L, B, H) float32 -> (pred (B,1), hidden (L,B,H))."""
    B, T, _ = x.shape
    L, _, H = h0.shape
    w_ih, w_hh, b_gi, b_hn3, w_lin, b_lin = packed_params

    # Time-major flattened scalar input: row t*B + b carries x[b, t, 0].
    x_tm = jnp.transpose(x[..., 0], (1, 0)).reshape(T * B, 1)

    kernel = functools.partial(_gru_discriminator_kernel,
                               num_layers=L, seq_len=T, batch=B, hidden=H)
    vmem = pl.BlockSpec(memory_space=pltpu.MemorySpace.VMEM)
    pred, h_out = pl.pallas_call(
        kernel,
        out_shape=(jax.ShapeDtypeStruct((B, 1), jnp.float32),
                   jax.ShapeDtypeStruct((L, B, H), jnp.float32)),
        in_specs=[vmem] * 8,
        out_specs=(vmem, vmem),
    )(x_tm, w_ih, w_hh, b_gi, b_hn3, h0, w_lin, b_lin)
    return pred, h_out


# ----------------------- Deterministic parameter init -------------------------

def init_torch_style_params(key, hidden_dim, num_layers):
    """Mimics PyTorch GRU/Linear init: U(-1/sqrt(H), 1/sqrt(H)), gate order (r, z, n)."""
    H = hidden_dim
    bound = 1.0 / float(H) ** 0.5
    params = {}
    for l in range(num_layers):
        in_size = 1 if l == 0 else H
        key, k1, k2, k3, k4 = jax.random.split(key, 5)
        params[f"weight_ih_l{l}"] = jax.random.uniform(
            k1, (3 * H, in_size), jnp.float32, -bound, bound)
        params[f"weight_hh_l{l}"] = jax.random.uniform(
            k2, (3 * H, H), jnp.float32, -bound, bound)
        params[f"bias_ih_l{l}"] = jax.random.uniform(
            k3, (3 * H,), jnp.float32, -bound, bound)
        params[f"bias_hh_l{l}"] = jax.random.uniform(
            k4, (3 * H,), jnp.float32, -bound, bound)
    key, k1, k2 = jax.random.split(key, 3)
    params["linear_w"] = jax.random.uniform(k1, (1, H), jnp.float32, -bound, bound)
    params["linear_b"] = jax.random.uniform(k2, (1,), jnp.float32, -bound, bound)
    return params


def pack_params(p, hidden_dim, num_layers):
    """Repack PyTorch-layout params into the kernel's fused-gate format.

    Per layer:
      w_ih[l]  = [W_ir^T | W_iz^T | W_in^T]               (H, 3H)  (layer 0: row 0 only)
      w_hh[l]  = [W_hr^T | W_hz^T | W_hn^T]               (H, 3H)
      b_gi[l]  = [b_ir+b_hr | b_iz+b_hz | b_in]           (1, 3H)  pre-summed
      b_hn3[l] = [0 | 0 | b_hn]                           (1, 3H)  padded full-width
    """
    H, L = hidden_dim, num_layers
    w_ih = jnp.zeros((L, H, 3 * H), jnp.float32)
    w_hh = jnp.zeros((L, H, 3 * H), jnp.float32)
    b_gi = jnp.zeros((L, 1, 3 * H), jnp.float32)
    b_hn3 = jnp.zeros((L, 1, 3 * H), jnp.float32)
    for l in range(L):
        wih = p[f"weight_ih_l{l}"]          # (3H, in_size)
        whh = p[f"weight_hh_l{l}"]          # (3H, H)
        bih = p[f"bias_ih_l{l}"]            # (3H,)
        bhh = p[f"bias_hh_l{l}"]            # (3H,)
        in_size = wih.shape[1]
        w_ih = w_ih.at[l, :in_size, :].set(jnp.concatenate(
            [wih[0:H].T, wih[H:2 * H].T, wih[2 * H:3 * H].T], axis=1))
        w_hh = w_hh.at[l].set(jnp.concatenate(
            [whh[0:H].T, whh[H:2 * H].T, whh[2 * H:3 * H].T], axis=1))
        b_gi = b_gi.at[l, 0].set(jnp.concatenate(
            [bih[0:H] + bhh[0:H], bih[H:2 * H] + bhh[H:2 * H], bih[2 * H:3 * H]]))
        b_hn3 = b_hn3.at[l, 0, 2 * H:].set(bhh[2 * H:3 * H])
    w_lin = p["linear_w"]                    # (1, H)
    b_lin = p["linear_b"].reshape(1, 1)      # (1, 1)
    return w_ih, w_hh, b_gi, b_hn3, w_lin, b_lin


# --------------------------- Pure-JAX reference --------------------------------

def reference_forward(x, h0, p, hidden_dim, num_layers):
    B, T, _ = x.shape
    H = hidden_dim
    layer_in = x
    finals = []
    for l in range(num_layers):
        wih = p[f"weight_ih_l{l}"]
        whh = p[f"weight_hh_l{l}"]
        bih = p[f"bias_ih_l{l}"]
        bhh = p[f"bias_hh_l{l}"]
        h = h0[l]
        outs = []
        for t in range(T):
            x_t = layer_in[:, t]
            gi = x_t @ wih.T + bih
            gh = h @ whh.T + bhh
            i_r, i_z, i_n = gi[:, :H], gi[:, H:2 * H], gi[:, 2 * H:]
            h_r, h_z, h_n = gh[:, :H], gh[:, H:2 * H], gh[:, 2 * H:]
            r = jax.nn.sigmoid(i_r + h_r)
            z = jax.nn.sigmoid(i_z + h_z)
            n = jnp.tanh(i_n + r * h_n)
            h = (1.0 - z) * n + z * h
            outs.append(h)
        layer_in = jnp.stack(outs, axis=1)
        finals.append(h)
    out = jax.nn.relu(layer_in[:, -1])
    pred = jax.nn.sigmoid(out @ p["linear_w"].T + p["linear_b"])
    return pred, jnp.stack(finals, axis=0)


# ---------------------------------- Main ---------------------------------------

if __name__ == "__main__":
    BATCH, SEQ, HIDDEN, LAYERS = 2, 8, 32, 2

    key = jax.random.PRNGKey(0)
    key, kx = jax.random.split(key)
    x = jax.random.normal(kx, (BATCH, SEQ, 1), jnp.float32)     # (B, T, input_size=1)
    h0 = jnp.zeros((LAYERS, BATCH, HIDDEN), jnp.float32)        # init_hidden()

    torch_params = init_torch_style_params(key, HIDDEN, LAYERS)
    packed = pack_params(torch_params, HIDDEN, LAYERS)

    pred, hidden = discriminator_rnn_forward(x, h0, packed)
    jax.block_until_ready((pred, hidden))

    pred_ref, hidden_ref = reference_forward(x, h0, torch_params, HIDDEN, LAYERS)
    assert pred.shape == (BATCH, 1) and hidden.shape == (LAYERS, BATCH, HIDDEN)
    assert jnp.allclose(pred, pred_ref, rtol=1e-3, atol=1e-4), "pred mismatch"
    assert jnp.allclose(hidden, hidden_ref, rtol=1e-3, atol=1e-4), "hidden mismatch"

    print("KERNEL_OK")
</pallas_src>

<mosaic_0001>
module attributes {stable_mosaic.version = 11 : i64} {
  func.func @_gru_discriminator_kernel(%arg0: memref<16x1xf32, #tpu.memory_space<vmem>>, %arg1: memref<2x32x96xf32, #tpu.memory_space<vmem>>, %arg2: memref<2x32x96xf32, #tpu.memory_space<vmem>>, %arg3: memref<2x1x96xf32, #tpu.memory_space<vmem>>, %arg4: memref<2x1x96xf32, #tpu.memory_space<vmem>>, %arg5: memref<2x2x32xf32, #tpu.memory_space<vmem>>, %arg6: memref<1x32xf32, #tpu.memory_space<vmem>>, %arg7: memref<1x1xf32, #tpu.memory_space<vmem>>, %arg8: memref<2x1xf32, #tpu.memory_space<vmem>>, %arg9: memref<2x2x32xf32, #tpu.memory_space<vmem>>) attributes {dimension_semantics = [], scalar_prefetch = 0 : i64, scratch_operands = 0 : i64, tpu.core_type = #tpu.core_type<tc>} {
    %c0 = arith.constant 0 : index
    %c0_0 = arith.constant 0 : index
    %c0_1 = arith.constant 0 : index
    %0 = vector.load %arg1[%c0, %c0_0, %c0_1] : memref<2x32x96xf32, #tpu.memory_space<vmem>>, vector<1x32x96xf32>
    %1 = vector.shape_cast %0 : vector<1x32x96xf32> to vector<32x96xf32>
    %2 = vector.extract_strided_slice %1 {offsets = [0, 0], sizes = [1, 96], strides = [1, 1]} : vector<32x96xf32> to vector<1x96xf32>
    %c0_2 = arith.constant 0 : index
    %c0_3 = arith.constant 0 : index
    %3 = vector.load %arg0[%c0_2, %c0_3] : memref<16x1xf32, #tpu.memory_space<vmem>>, vector<16x1xf32>
    %4 = vector.broadcast %3 : vector<16x1xf32> to vector<16x96xf32>
    %5 = vector.broadcast %2 : vector<1x96xf32> to vector<16x96xf32>
    %6 = arith.mulf %4, %5 : vector<16x96xf32>
    %c0_4 = arith.constant 0 : index
    %c0_5 = arith.constant 0 : index
    %c0_6 = arith.constant 0 : index
    %7 = vector.load %arg3[%c0_4, %c0_5, %c0_6] : memref<2x1x96xf32, #tpu.memory_space<vmem>>, vector<1x1x96xf32>
    %8 = vector.shape_cast %7 : vector<1x1x96xf32> to vector<1x96xf32>
    %9 = vector.broadcast %8 : vector<1x96xf32> to vector<16x96xf32>
    %10 = arith.addf %6, %9 : vector<16x96xf32>
    %11 = vector.extract_strided_slice %10 {offsets = [0, 0], sizes = [2, 96], strides = [1, 1]} : vector<16x96xf32> to vector<2x96xf32>
    %12 = vector.extract_strided_slice %10 {offsets = [2, 0], sizes = [2, 96], strides = [1, 1]} : vector<16x96xf32> to vector<2x96xf32>
    %13 = vector.extract_strided_slice %10 {offsets = [4, 0], sizes = [2, 96], strides = [1, 1]} : vector<16x96xf32> to vector<2x96xf32>
    %14 = vector.extract_strided_slice %10 {offsets = [6, 0], sizes = [2, 96], strides = [1, 1]} : vector<16x96xf32> to vector<2x96xf32>
    %15 = vector.extract_strided_slice %10 {offsets = [8, 0], sizes = [2, 96], strides = [1, 1]} : vector<16x96xf32> to vector<2x96xf32>
    %16 = vector.extract_strided_slice %10 {offsets = [10, 0], sizes = [2, 96], strides = [1, 1]} : vector<16x96xf32> to vector<2x96xf32>
    %17 = vector.extract_strided_slice %10 {offsets = [12, 0], sizes = [2, 96], strides = [1, 1]} : vector<16x96xf32> to vector<2x96xf32>
    %18 = vector.extract_strided_slice %10 {offsets = [14, 0], sizes = [2, 96], strides = [1, 1]} : vector<16x96xf32> to vector<2x96xf32>
    %c0_7 = arith.constant 0 : index
    %c0_8 = arith.constant 0 : index
    %c0_9 = arith.constant 0 : index
    %19 = vector.load %arg2[%c0_7, %c0_8, %c0_9] : memref<2x32x96xf32, #tpu.memory_space<vmem>>, vector<1x32x96xf32>
    %20 = vector.shape_cast %19 : vector<1x32x96xf32> to vector<32x96xf32>
    %c0_10 = arith.constant 0 : index
    %c0_11 = arith.constant 0 : index
    %c0_12 = arith.constant 0 : index
    %21 = vector.load %arg4[%c0_10, %c0_11, %c0_12] : memref<2x1x96xf32, #tpu.memory_space<vmem>>, vector<1x1x96xf32>
    %22 = vector.shape_cast %21 : vector<1x1x96xf32> to vector<1x96xf32>
    %c1 = arith.constant 1 : index
    %c0_13 = arith.constant 0 : index
    %c0_14 = arith.constant 0 : index
    %23 = vector.load %arg1[%c1, %c0_13, %c0_14] : memref<2x32x96xf32, #tpu.memory_space<vmem>>, vector<1x32x96xf32>
    %24 = vector.shape_cast %23 : vector<1x32x96xf32> to vector<32x96xf32>
    %c1_15 = arith.constant 1 : index
    %c0_16 = arith.constant 0 : index
    %c0_17 = arith.constant 0 : index
    %25 = vector.load %arg3[%c1_15, %c0_16, %c0_17] : memref<2x1x96xf32, #tpu.memory_space<vmem>>, vector<1x1x96xf32>
    %26 = vector.shape_cast %25 : vector<1x1x96xf32> to vector<1x96xf32>
    %c0_18 = arith.constant 0 : index
    %c0_19 = arith.constant 0 : index
    %c0_20 = arith.constant 0 : index
    %27 = vector.load %arg5[%c0_18, %c0_19, %c0_20] : memref<2x2x32xf32, #tpu.memory_space<vmem>>, vector<1x2x32xf32>
    %28 = vector.shape_cast %27 : vector<1x2x32xf32> to vector<2x32xf32>
    %cst = arith.constant dense<0.000000e+00> : vector<2x96xf32>
    %29 = tpu.matmul %28, %20, %cst {dimension_numbers = #tpu.dot_dimension_numbers<[1], [0], [0], [1], [0, 0, 1, 1], [], []>} : vector<2x32xf32>, vector<32x96xf32>, vector<2x96xf32> -> vector<2x96xf32>
    %30 = vector.broadcast %22 : vector<1x96xf32> to vector<2x96xf32>
    %31 = arith.addf %29, %30 : vector<2x96xf32>
    %32 = vector.extract_strided_slice %11 {offsets = [0, 0], sizes = [2, 64], strides = [1, 1]} : vector<2x96xf32> to vector<2x64xf32>
    %33 = vector.extract_strided_slice %31 {offsets = [0, 0], sizes = [2, 64], strides = [1, 1]} : vector<2x96xf32> to vector<2x64xf32>
    %34 = arith.addf %32, %33 : vector<2x64xf32>
    %35 = arith.negf %34 : vector<2x64xf32>
    %36 = math.exp %35 : vector<2x64xf32>
    %cst_21 = arith.constant 1.000000e+00 : f32
    %37 = vector.broadcast %cst_21 : f32 to vector<2x64xf32>
    %38 = arith.addf %37, %36 : vector<2x64xf32>
    %39 = arith.divf %37, %38 : vector<2x64xf32>
    %40 = vector.extract_strided_slice %39 {offsets = [0, 0], sizes = [2, 32], strides = [1, 1]} : vector<2x64xf32> to vector<2x32xf32>
    %41 = vector.extract_strided_slice %39 {offsets = [0, 32], sizes = [2, 32], strides = [1, 1]} : vector<2x64xf32> to vector<2x32xf32>
    %42 = vector.extract_strided_slice %11 {offsets = [0, 64], sizes = [2, 32], strides = [1, 1]} : vector<2x96xf32> to vector<2x32xf32>
    %43 = vector.extract_strided_slice %31 {offsets = [0, 64], sizes = [2, 32], strides = [1, 1]} : vector<2x96xf32> to vector<2x32xf32>
    %44 = arith.mulf %40, %43 : vector<2x32xf32>
    %45 = arith.addf %42, %44 : vector<2x32xf32>
    %46 = math.tanh %45 : vector<2x32xf32>
    %cst_22 = arith.constant 1.000000e+00 : f32
    %47 = vector.broadcast %cst_22 : f32 to vector<2x32xf32>
    %48 = arith.subf %47, %41 : vector<2x32xf32>
    %49 = arith.mulf %48, %46 : vector<2x32xf32>
    %50 = arith.mulf %41, %28 : vector<2x32xf32>
    %51 = arith.addf %49, %50 : vector<2x32xf32>
    %cst_23 = arith.constant dense<0.000000e+00> : vector<2x96xf32>
    %52 = tpu.matmul %51, %24, %cst_23 {dimension_numbers = #tpu.dot_dimension_numbers<[1], [0], [0], [1], [0, 0, 1, 1], [], []>} : vector<2x32xf32>, vector<32x96xf32>, vector<2x96xf32> -> vector<2x96xf32>
    %53 = vector.broadcast %26 : vector<1x96xf32> to vector<2x96xf32>
    %54 = arith.addf %52, %53 : vector<2x96xf32>
    %cst_24 = arith.constant dense<0.000000e+00> : vector<2x96xf32>
    %55 = tpu.matmul %51, %20, %cst_24 {dimension_numbers = #tpu.dot_dimension_numbers<[1], [0], [0], [1], [0, 0, 1, 1], [], []>} : vector<2x32xf32>, vector<32x96xf32>, vector<2x96xf32> -> vector<2x96xf32>
    %56 = vector.broadcast %22 : vector<1x96xf32> to vector<2x96xf32>
    %57 = arith.addf %55, %56 : vector<2x96xf32>
    %58 = vector.extract_strided_slice %12 {offsets = [0, 0], sizes = [2, 64], strides = [1, 1]} : vector<2x96xf32> to vector<2x64xf32>
    %59 = vector.extract_strided_slice %57 {offsets = [0, 0], sizes = [2, 64], strides = [1, 1]} : vector<2x96xf32> to vector<2x64xf32>
    %60 = arith.addf %58, %59 : vector<2x64xf32>
    %61 = arith.negf %60 : vector<2x64xf32>
    %62 = math.exp %61 : vector<2x64xf32>
    %cst_25 = arith.constant 1.000000e+00 : f32
    %63 = vector.broadcast %cst_25 : f32 to vector<2x64xf32>
    %64 = arith.addf %63, %62 : vector<2x64xf32>
    %65 = arith.divf %63, %64 : vector<2x64xf32>
    %66 = vector.extract_strided_slice %65 {offsets = [0, 0], sizes = [2, 32], strides = [1, 1]} : vector<2x64xf32> to vector<2x32xf32>
    %67 = vector.extract_strided_slice %65 {offsets = [0, 32], sizes = [2, 32], strides = [1, 1]} : vector<2x64xf32> to vector<2x32xf32>
    %68 = vector.extract_strided_slice %12 {offsets = [0, 64], sizes = [2, 32], strides = [1, 1]} : vector<2x96xf32> to vector<2x32xf32>
    %69 = vector.extract_strided_slice %57 {offsets = [0, 64], sizes = [2, 32], strides = [1, 1]} : vector<2x96xf32> to vector<2x32xf32>
    %70 = arith.mulf %66, %69 : vector<2x32xf32>
    %71 = arith.addf %68, %70 : vector<2x32xf32>
    %72 = math.tanh %71 : vector<2x32xf32>
    %cst_26 = arith.constant 1.000000e+00 : f32
    %73 = vector.broadcast %cst_26 : f32 to vector<2x32xf32>
    %74 = arith.subf %73, %67 : vector<2x32xf32>
    %75 = arith.mulf %74, %72 : vector<2x32xf32>
    %76 = arith.mulf %67, %51 : vector<2x32xf32>
    %77 = arith.addf %75, %76 : vector<2x32xf32>
    %cst_27 = arith.constant dense<0.000000e+00> : vector<2x96xf32>
    %78 = tpu.matmul %77, %24, %cst_27 {dimension_numbers = #tpu.dot_dimension_numbers<[1], [0], [0], [1], [0, 0, 1, 1], [], []>} : vector<2x32xf32>, vector<32x96xf32>, vector<2x96xf32> -> vector<2x96xf32>
    %79 = vector.broadcast %26 : vector<1x96xf32> to vector<2x96xf32>
    %80 = arith.addf %78, %79 : vector<2x96xf32>
    %cst_28 = arith.constant dense<0.000000e+00> : vector<2x96xf32>
    %81 = tpu.matmul %77, %20, %cst_28 {dimension_numbers = #tpu.dot_dimension_numbers<[1], [0], [0], [1], [0, 0, 1, 1], [], []>} : vector<2x32xf32>, vector<32x96xf32>, vector<2x96xf32> -> vector<2x96xf32>
    %82 = vector.broadcast %22 : vector<1x96xf32> to vector<2x96xf32>
    %83 = arith.addf %81, %82 : vector<2x96xf32>
    %84 = vector.extract_strided_slice %13 {offsets = [0, 0], sizes = [2, 64], strides = [1, 1]} : vector<2x96xf32> to vector<2x64xf32>
    %85 = vector.extract_strided_slice %83 {offsets = [0, 0], sizes = [2, 64], strides = [1, 1]} : vector<2x96xf32> to vector<2x64xf32>
    %86 = arith.addf %84, %85 : vector<2x64xf32>
    %87 = arith.negf %86 : vector<2x64xf32>
    %88 = math.exp %87 : vector<2x64xf32>
    %cst_29 = arith.constant 1.000000e+00 : f32
    %89 = vector.broadcast %cst_29 : f32 to vector<2x64xf32>
    %90 = arith.addf %89, %88 : vector<2x64xf32>
    %91 = arith.divf %89, %90 : vector<2x64xf32>
    %92 = vector.extract_strided_slice %91 {offsets = [0, 0], sizes = [2, 32], strides = [1, 1]} : vector<2x64xf32> to vector<2x32xf32>
    %93 = vector.extract_strided_slice %91 {offsets = [0, 32], sizes = [2, 32], strides = [1, 1]} : vector<2x64xf32> to vector<2x32xf32>
    %94 = vector.extract_strided_slice %13 {offsets = [0, 64], sizes = [2, 32], strides = [1, 1]} : vector<2x96xf32> to vector<2x32xf32>
    %95 = vector.extract_strided_slice %83 {offsets = [0, 64], sizes = [2, 32], strides = [1, 1]} : vector<2x96xf32> to vector<2x32xf32>
    %96 = arith.mulf %92, %95 : vector<2x32xf32>
    %97 = arith.addf %94, %96 : vector<2x32xf32>
    %98 = math.tanh %97 : vector<2x32xf32>
    %cst_30 = arith.constant 1.000000e+00 : f32
    %99 = vector.broadcast %cst_30 : f32 to vector<2x32xf32>
    %100 = arith.subf %99, %93 : vector<2x32xf32>
    %101 = arith.mulf %100, %98 : vector<2x32xf32>
    %102 = arith.mulf %93, %77 : vector<2x32xf32>
    %103 = arith.addf %101, %102 : vector<2x32xf32>
    %cst_31 = arith.constant dense<0.000000e+00> : vector<2x96xf32>
    %104 = tpu.matmul %103, %24, %cst_31 {dimension_numbers = #tpu.dot_dimension_numbers<[1], [0], [0], [1], [0, 0, 1, 1], [], []>} : vector<2x32xf32>, vector<32x96xf32>, vector<2x96xf32> -> vector<2x96xf32>
    %105 = vector.broadcast %26 : vector<1x96xf32> to vector<2x96xf32>
    %106 = arith.addf %104, %105 : vector<2x96xf32>
    %cst_32 = arith.constant dense<0.000000e+00> : vector<2x96xf32>
    %107 = tpu.matmul %103, %20, %cst_32 {dimension_numbers = #tpu.dot_dimension_numbers<[1], [0], [0], [1], [0, 0, 1, 1], [], []>} : vector<2x32xf32>, vector<32x96xf32>, vector<2x96xf32> -> vector<2x96xf32>
    %108 = vector.broadcast %22 : vector<1x96xf32> to vector<2x96xf32>
    %109 = arith.addf %107, %108 : vector<2x96xf32>
    %110 = vector.extract_strided_slice %14 {offsets = [0, 0], sizes = [2, 64], strides = [1, 1]} : vector<2x96xf32> to vector<2x64xf32>
    %111 = vector.extract_strided_slice %109 {offsets = [0, 0], sizes = [2, 64], strides = [1, 1]} : vector<2x96xf32> to vector<2x64xf32>
    %112 = arith.addf %110, %111 : vector<2x64xf32>
    %113 = arith.negf %112 : vector<2x64xf32>
    %114 = math.exp %113 : vector<2x64xf32>
    %cst_33 = arith.constant 1.000000e+00 : f32
    %115 = vector.broadcast %cst_33 : f32 to vector<2x64xf32>
    %116 = arith.addf %115, %114 : vector<2x64xf32>
    %117 = arith.divf %115, %116 : vector<2x64xf32>
    %118 = vector.extract_strided_slice %117 {offsets = [0, 0], sizes = [2, 32], strides = [1, 1]} : vector<2x64xf32> to vector<2x32xf32>
    %119 = vector.extract_strided_slice %117 {offsets = [0, 32], sizes = [2, 32], strides = [1, 1]} : vector<2x64xf32> to vector<2x32xf32>
    %120 = vector.extract_strided_slice %14 {offsets = [0, 64], sizes = [2, 32], strides = [1, 1]} : vector<2x96xf32> to vector<2x32xf32>
    %121 = vector.extract_strided_slice %109 {offsets = [0, 64], sizes = [2, 32], strides = [1, 1]} : vector<2x96xf32> to vector<2x32xf32>
    %122 = arith.mulf %118, %121 : vector<2x32xf32>
    %123 = arith.addf %120, %122 : vector<2x32xf32>
    %124 = math.tanh %123 : vector<2x32xf32>
    %cst_34 = arith.constant 1.000000e+00 : f32
    %125 = vector.broadcast %cst_34 : f32 to vector<2x32xf32>
    %126 = arith.subf %125, %119 : vector<2x32xf32>
    %127 = arith.mulf %126, %124 : vector<2x32xf32>
    %128 = arith.mulf %119, %103 : vector<2x32xf32>
    %129 = arith.addf %127, %128 : vector<2x32xf32>
    %cst_35 = arith.constant dense<0.000000e+00> : vector<2x96xf32>
    %130 = tpu.matmul %129, %24, %cst_35 {dimension_numbers = #tpu.dot_dimension_numbers<[1], [0], [0], [1], [0, 0, 1, 1], [], []>} : vector<2x32xf32>, vector<32x96xf32>, vector<2x96xf32> -> vector<2x96xf32>
    %131 = vector.broadcast %26 : vector<1x96xf32> to vector<2x96xf32>
    %132 = arith.addf %130, %131 : vector<2x96xf32>
    %cst_36 = arith.constant dense<0.000000e+00> : vector<2x96xf32>
    %133 = tpu.matmul %129, %20, %cst_36 {dimension_numbers = #tpu.dot_dimension_numbers<[1], [0], [0], [1], [0, 0, 1, 1], [], []>} : vector<2x32xf32>, vector<32x96xf32>, vector<2x96xf32> -> vector<2x96xf32>
    %134 = vector.broadcast %22 : vector<1x96xf32> to vector<2x96xf32>
    %135 = arith.addf %133, %134 : vector<2x96xf32>
    %136 = vector.extract_strided_slice %15 {offsets = [0, 0], sizes = [2, 64], strides = [1, 1]} : vector<2x96xf32> to vector<2x64xf32>
    %137 = vector.extract_strided_slice %135 {offsets = [0, 0], sizes = [2, 64], strides = [1, 1]} : vector<2x96xf32> to vector<2x64xf32>
    %138 = arith.addf %136, %137 : vector<2x64xf32>
    %139 = arith.negf %138 : vector<2x64xf32>
    %140 = math.exp %139 : vector<2x64xf32>
    %cst_37 = arith.constant 1.000000e+00 : f32
    %141 = vector.broadcast %cst_37 : f32 to vector<2x64xf32>
    %142 = arith.addf %141, %140 : vector<2x64xf32>
    %143 = arith.divf %141, %142 : vector<2x64xf32>
    %144 = vector.extract_strided_slice %143 {offsets = [0, 0], sizes = [2, 32], strides = [1, 1]} : vector<2x64xf32> to vector<2x32xf32>
    %145 = vector.extract_strided_slice %143 {offsets = [0, 32], sizes = [2, 32], strides = [1, 1]} : vector<2x64xf32> to vector<2x32xf32>
    %146 = vector.extract_strided_slice %15 {offsets = [0, 64], sizes = [2, 32], strides = [1, 1]} : vector<2x96xf32> to vector<2x32xf32>
    %147 = vector.extract_strided_slice %135 {offsets = [0, 64], sizes = [2, 32], strides = [1, 1]} : vector<2x96xf32> to vector<2x32xf32>
    %148 = arith.mulf %144, %147 : vector<2x32xf32>
    %149 = arith.addf %146, %148 : vector<2x32xf32>
    %150 = math.tanh %149 : vector<2x32xf32>
    %cst_38 = arith.constant 1.000000e+00 : f32
    %151 = vector.broadcast %cst_38 : f32 to vector<2x32xf32>
    %152 = arith.subf %151, %145 : vector<2x32xf32>
    %153 = arith.mulf %152, %150 : vector<2x32xf32>
    %154 = arith.mulf %145, %129 : vector<2x32xf32>
    %155 = arith.addf %153, %154 : vector<2x32xf32>
    %cst_39 = arith.constant dense<0.000000e+00> : vector<2x96xf32>
    %156 = tpu.matmul %155, %24, %cst_39 {dimension_numbers = #tpu.dot_dimension_numbers<[1], [0], [0], [1], [0, 0, 1, 1], [], []>} : vector<2x32xf32>, vector<32x96xf32>, vector<2x96xf32> -> vector<2x96xf32>
    %157 = vector.broadcast %26 : vector<1x96xf32> to vector<2x96xf32>
    %158 = arith.addf %156, %157 : vector<2x96xf32>
    %cst_40 = arith.constant dense<0.000000e+00> : vector<2x96xf32>
    %159 = tpu.matmul %155, %20, %cst_40 {dimension_numbers = #tpu.dot_dimension_numbers<[1], [0], [0], [1], [0, 0, 1, 1], [], []>} : vector<2x32xf32>, vector<32x96xf32>, vector<2x96xf32> -> vector<2x96xf32>
    %160 = vector.broadcast %22 : vector<1x96xf32> to vector<2x96xf32>
    %161 = arith.addf %159, %160 : vector<2x96xf32>
    %162 = vector.extract_strided_slice %16 {offsets = [0, 0], sizes = [2, 64], strides = [1, 1]} : vector<2x96xf32> to vector<2x64xf32>
    %163 = vector.extract_strided_slice %161 {offsets = [0, 0], sizes = [2, 64], strides = [1, 1]} : vector<2x96xf32> to vector<2x64xf32>
    %164 = arith.addf %162, %163 : vector<2x64xf32>
    %165 = arith.negf %164 : vector<2x64xf32>
    %166 = math.exp %165 : vector<2x64xf32>
    %cst_41 = arith.constant 1.000000e+00 : f32
    %167 = vector.broadcast %cst_41 : f32 to vector<2x64xf32>
    %168 = arith.addf %167, %166 : vector<2x64xf32>
    %169 = arith.divf %167, %168 : vector<2x64xf32>
    %170 = vector.extract_strided_slice %169 {offsets = [0, 0], sizes = [2, 32], strides = [1, 1]} : vector<2x64xf32> to vector<2x32xf32>
    %171 = vector.extract_strided_slice %169 {offsets = [0, 32], sizes = [2, 32], strides = [1, 1]} : vector<2x64xf32> to vector<2x32xf32>
    %172 = vector.extract_strided_slice %16 {offsets = [0, 64], sizes = [2, 32], strides = [1, 1]} : vector<2x96xf32> to vector<2x32xf32>
    %173 = vector.extract_strided_slice %161 {offsets = [0, 64], sizes = [2, 32], strides = [1, 1]} : vector<2x96xf32> to vector<2x32xf32>
    %174 = arith.mulf %170, %173 : vector<2x32xf32>
    %175 = arith.addf %172, %174 : vector<2x32xf32>
    %176 = math.tanh %175 : vector<2x32xf32>
    %cst_42 = arith.constant 1.000000e+00 : f32
    %177 = vector.broadcast %cst_42 : f32 to vector<2x32xf32>
    %178 = arith.subf %177, %171 : vector<2x32xf32>
    %179 = arith.mulf %178, %176 : vector<2x32xf32>
    %180 = arith.mulf %171, %155 : vector<2x32xf32>
    %181 = arith.addf %179, %180 : vector<2x32xf32>
    %cst_43 = arith.constant dense<0.000000e+00> : vector<2x96xf32>
    %182 = tpu.matmul %181, %24, %cst_43 {dimension_numbers = #tpu.dot_dimension_numbers<[1], [0], [0], [1], [0, 0, 1, 1], [], []>} : vector<2x32xf32>, vector<32x96xf32>, vector<2x96xf32> -> vector<2x96xf32>
    %183 = vector.broadcast %26 : vector<1x96xf32> to vector<2x96xf32>
    %184 = arith.addf %182, %183 : vector<2x96xf32>
    %cst_44 = arith.constant dense<0.000000e+00> : vector<2x96xf32>
    %185 = tpu.matmul %181, %20, %cst_44 {dimension_numbers = #tpu.dot_dimension_numbers<[1], [0], [0], [1], [0, 0, 1, 1], [], []>} : vector<2x32xf32>, vector<32x96xf32>, vector<2x96xf32> -> vector<2x96xf32>
    %186 = vector.broadcast %22 : vector<1x96xf32> to vector<2x96xf32>
    %187 = arith.addf %185, %186 : vector<2x96xf32>
    %188 = vector.extract_strided_slice %17 {offsets = [0, 0], sizes = [2, 64], strides = [1, 1]} : vector<2x96xf32> to vector<2x64xf32>
    %189 = vector.extract_strided_slice %187 {offsets = [0, 0], sizes = [2, 64], strides = [1, 1]} : vector<2x96xf32> to vector<2x64xf32>
    %190 = arith.addf %188, %189 : vector<2x64xf32>
    %191 = arith.negf %190 : vector<2x64xf32>
    %192 = math.exp %191 : vector<2x64xf32>
    %cst_45 = arith.constant 1.000000e+00 : f32
    %193 = vector.broadcast %cst_45 : f32 to vector<2x64xf32>
    %194 = arith.addf %193, %192 : vector<2x64xf32>
    %195 = arith.divf %193, %194 : vector<2x64xf32>
    %196 = vector.extract_strided_slice %195 {offsets = [0, 0], sizes = [2, 32], strides = [1, 1]} : vector<2x64xf32> to vector<2x32xf32>
    %197 = vector.extract_strided_slice %195 {offsets = [0, 32], sizes = [2, 32], strides = [1, 1]} : vector<2x64xf32> to vector<2x32xf32>
    %198 = vector.extract_strided_slice %17 {offsets = [0, 64], sizes = [2, 32], strides = [1, 1]} : vector<2x96xf32> to vector<2x32xf32>
    %199 = vector.extract_strided_slice %187 {offsets = [0, 64], sizes = [2, 32], strides = [1, 1]} : vector<2x96xf32> to vector<2x32xf32>
    %200 = arith.mulf %196, %199 : vector<2x32xf32>
    %201 = arith.addf %198, %200 : vector<2x32xf32>
    %202 = math.tanh %201 : vector<2x32xf32>
    %cst_46 = arith.constant 1.000000e+00 : f32
    %203 = vector.broadcast %cst_46 : f32 to vector<2x32xf32>
    %204 = arith.subf %203, %197 : vector<2x32xf32>
    %205 = arith.mulf %204, %202 : vector<2x32xf32>
    %206 = arith.mulf %197, %181 : vector<2x32xf32>
    %207 = arith.addf %205, %206 : vector<2x32xf32>
    %cst_47 = arith.constant dense<0.000000e+00> : vector<2x96xf32>
    %208 = tpu.matmul %207, %24, %cst_47 {dimension_numbers = #tpu.dot_dimension_numbers<[1], [0], [0], [1], [0, 0, 1, 1], [], []>} : vector<2x32xf32>, vector<32x96xf32>, vector<2x96xf32> -> vector<2x96xf32>
    %209 = vector.broadcast %26 : vector<1x96xf32> to vector<2x96xf32>
    %210 = arith.addf %208, %209 : vector<2x96xf32>
    %cst_48 = arith.constant dense<0.000000e+00> : vector<2x96xf32>
    %211 = tpu.matmul %207, %20, %cst_48 {dimension_numbers = #tpu.dot_dimension_numbers<[1], [0], [0], [1], [0, 0, 1, 1], [], []>} : vector<2x32xf32>, vector<32x96xf32>, vector<2x96xf32> -> vector<2x96xf32>
    %212 = vector.broadcast %22 : vector<1x96xf32> to vector<2x96xf32>
    %213 = arith.addf %211, %212 : vector<2x96xf32>
    %214 = vector.extract_strided_slice %18 {offsets = [0, 0], sizes = [2, 64], strides = [1, 1]} : vector<2x96xf32> to vector<2x64xf32>
    %215 = vector.extract_strided_slice %213 {offsets = [0, 0], sizes = [2, 64], strides = [1, 1]} : vector<2x96xf32> to vector<2x64xf32>
    %216 = arith.addf %214, %215 : vector<2x64xf32>
    %217 = arith.negf %216 : vector<2x64xf32>
    %218 = math.exp %217 : vector<2x64xf32>
    %cst_49 = arith.constant 1.000000e+00 : f32
    %219 = vector.broadcast %cst_49 : f32 to vector<2x64xf32>
    %220 = arith.addf %219, %218 : vector<2x64xf32>
    %221 = arith.divf %219, %220 : vector<2x64xf32>
    %222 = vector.extract_strided_slice %221 {offsets = [0, 0], sizes = [2, 32], strides = [1, 1]} : vector<2x64xf32> to vector<2x32xf32>
    %223 = vector.extract_strided_slice %221 {offsets = [0, 32], sizes = [2, 32], strides = [1, 1]} : vector<2x64xf32> to vector<2x32xf32>
    %224 = vector.extract_strided_slice %18 {offsets = [0, 64], sizes = [2, 32], strides = [1, 1]} : vector<2x96xf32> to vector<2x32xf32>
    %225 = vector.extract_strided_slice %213 {offsets = [0, 64], sizes = [2, 32], strides = [1, 1]} : vector<2x96xf32> to vector<2x32xf32>
    %226 = arith.mulf %222, %225 : vector<2x32xf32>
    %227 = arith.addf %224, %226 : vector<2x32xf32>
    %228 = math.tanh %227 : vector<2x32xf32>
    %cst_50 = arith.constant 1.000000e+00 : f32
    %229 = vector.broadcast %cst_50 : f32 to vector<2x32xf32>
    %230 = arith.subf %229, %223 : vector<2x32xf32>
    %231 = arith.mulf %230, %228 : vector<2x32xf32>
    %232 = arith.mulf %223, %207 : vector<2x32xf32>
    %233 = arith.addf %231, %232 : vector<2x32xf32>
    %cst_51 = arith.constant dense<0.000000e+00> : vector<2x96xf32>
    %234 = tpu.matmul %233, %24, %cst_51 {dimension_numbers = #tpu.dot_dimension_numbers<[1], [0], [0], [1], [0, 0, 1, 1], [], []>} : vector<2x32xf32>, vector<32x96xf32>, vector<2x96xf32> -> vector<2x96xf32>
    %235 = vector.broadcast %26 : vector<1x96xf32> to vector<2x96xf32>
    %236 = arith.addf %234, %235 : vector<2x96xf32>
    %c0_52 = arith.constant 0 : index
    %c0_53 = arith.constant 0 : index
    %c0_54 = arith.constant 0 : index
    %237 = vector.load %arg9[%c0_52, %c0_53, %c0_54] : memref<2x2x32xf32, #tpu.memory_space<vmem>>, vector<1x2x32xf32>
    %238 = vector.shape_cast %237 : vector<1x2x32xf32> to vector<2x32xf32>
    %239 = vector.shape_cast %233 : vector<2x32xf32> to vector<1x2x32xf32>
    tpu.vector_store %arg9[%c0_52, %c0_53, %c0_54], %239 {strides = array<i32>} : memref<2x2x32xf32, #tpu.memory_space<vmem>>, vector<1x2x32xf32>,
    %c1_55 = arith.constant 1 : index
    %c0_56 = arith.constant 0 : index
    %c0_57 = arith.constant 0 : index
    %240 = vector.load %arg2[%c1_55, %c0_56, %c0_57] : memref<2x32x96xf32, #tpu.memory_space<vmem>>, vector<1x32x96xf32>
    %241 = vector.shape_cast %240 : vector<1x32x96xf32> to vector<32x96xf32>
    %c1_58 = arith.constant 1 : index
    %c0_59 = arith.constant 0 : index
    %c0_60 = arith.constant 0 : index
    %242 = vector.load %arg4[%c1_58, %c0_59, %c0_60] : memref<2x1x96xf32, #tpu.memory_space<vmem>>, vector<1x1x96xf32>
    %243 = vector.shape_cast %242 : vector<1x1x96xf32> to vector<1x96xf32>
    %c1_61 = arith.constant 1 : index
    %c0_62 = arith.constant 0 : index
    %c0_63 = arith.constant 0 : index
    %244 = vector.load %arg5[%c1_61, %c0_62, %c0_63] : memref<2x2x32xf32, #tpu.memory_space<vmem>>, vector<1x2x32xf32>
    %245 = vector.shape_cast %244 : vector<1x2x32xf32> to vector<2x32xf32>
    %cst_64 = arith.constant dense<0.000000e+00> : vector<2x96xf32>
    %246 = tpu.matmul %245, %241, %cst_64 {dimension_numbers = #tpu.dot_dimension_numbers<[1], [0], [0], [1], [0, 0, 1, 1], [], []>} : vector<2x32xf32>, vector<32x96xf32>, vector<2x96xf32> -> vector<2x96xf32>
    %247 = vector.broadcast %243 : vector<1x96xf32> to vector<2x96xf32>
    %248 = arith.addf %246, %247 : vector<2x96xf32>
    %249 = vector.extract_strided_slice %54 {offsets = [0, 0], sizes = [2, 64], strides = [1, 1]} : vector<2x96xf32> to vector<2x64xf32>
    %250 = vector.extract_strided_slice %248 {offsets = [0, 0], sizes = [2, 64], strides = [1, 1]} : vector<2x96xf32> to vector<2x64xf32>
    %251 = arith.addf %249, %250 : vector<2x64xf32>
    %252 = arith.negf %251 : vector<2x64xf32>
    %253 = math.exp %252 : vector<2x64xf32>
    %cst_65 = arith.constant 1.000000e+00 : f32
    %254 = vector.broadcast %cst_65 : f32 to vector<2x64xf32>
    %255 = arith.addf %254, %253 : vector<2x64xf32>
    %256 = arith.divf %254, %255 : vector<2x64xf32>
    %257 = vector.extract_strided_slice %256 {offsets = [0, 0], sizes = [2, 32], strides = [1, 1]} : vector<2x64xf32> to vector<2x32xf32>
    %258 = vector.extract_strided_slice %256 {offsets = [0, 32], sizes = [2, 32], strides = [1, 1]} : vector<2x64xf32> to vector<2x32xf32>
    %259 = vector.extract_strided_slice %54 {offsets = [0, 64], sizes = [2, 32], strides = [1, 1]} : vector<2x96xf32> to vector<2x32xf32>
    %260 = vector.extract_strided_slice %248 {offsets = [0, 64], sizes = [2, 32], strides = [1, 1]} : vector<2x96xf32> to vector<2x32xf32>
    %261 = arith.mulf %257, %260 : vector<2x32xf32>
    %262 = arith.addf %259, %261 : vector<2x32xf32>
    %263 = math.tanh %262 : vector<2x32xf32>
    %cst_66 = arith.constant 1.000000e+00 : f32
    %264 = vector.broadcast %cst_66 : f32 to vector<2x32xf32>
    %265 = arith.subf %264, %258 : vector<2x32xf32>
    %266 = arith.mulf %265, %263 : vector<2x32xf32>
    %267 = arith.mulf %258, %245 : vector<2x32xf32>
    %268 = arith.addf %266, %267 : vector<2x32xf32>
    %cst_67 = arith.constant dense<0.000000e+00> : vector<2x96xf32>
    %269 = tpu.matmul %268, %241, %cst_67 {dimension_numbers = #tpu.dot_dimension_numbers<[1], [0], [0], [1], [0, 0, 1, 1], [], []>} : vector<2x32xf32>, vector<32x96xf32>, vector<2x96xf32> -> vector<2x96xf32>
    %270 = vector.broadcast %243 : vector<1x96xf32> to vector<2x96xf32>
    %271 = arith.addf %269, %270 : vector<2x96xf32>
    %272 = vector.extract_strided_slice %80 {offsets = [0, 0], sizes = [2, 64], strides = [1, 1]} : vector<2x96xf32> to vector<2x64xf32>
    %273 = vector.extract_strided_slice %271 {offsets = [0, 0], sizes = [2, 64], strides = [1, 1]} : vector<2x96xf32> to vector<2x64xf32>
    %274 = arith.addf %272, %273 : vector<2x64xf32>
    %275 = arith.negf %274 : vector<2x64xf32>
    %276 = math.exp %275 : vector<2x64xf32>
    %cst_68 = arith.constant 1.000000e+00 : f32
    %277 = vector.broadcast %cst_68 : f32 to vector<2x64xf32>
    %278 = arith.addf %277, %276 : vector<2x64xf32>
    %279 = arith.divf %277, %278 : vector<2x64xf32>
    %280 = vector.extract_strided_slice %279 {offsets = [0, 0], sizes = [2, 32], strides = [1, 1]} : vector<2x64xf32> to vector<2x32xf32>
    %281 = vector.extract_strided_slice %279 {offsets = [0, 32], sizes = [2, 32], strides = [1, 1]} : vector<2x64xf32> to vector<2x32xf32>
    %282 = vector.extract_strided_slice %80 {offsets = [0, 64], sizes = [2, 32], strides = [1, 1]} : vector<2x96xf32> to vector<2x32xf32>
    %283 = vector.extract_strided_slice %271 {offsets = [0, 64], sizes = [2, 32], strides = [1, 1]} : vector<2x96xf32> to vector<2x32xf32>
    %284 = arith.mulf %280, %283 : vector<2x32xf32>
    %285 = arith.addf %282, %284 : vector<2x32xf32>
    %286 = math.tanh %285 : vector<2x32xf32>
    %cst_69 = arith.constant 1.000000e+00 : f32
    %287 = vector.broadcast %cst_69 : f32 to vector<2x32xf32>
    %288 = arith.subf %287, %281 : vector<2x32xf32>
    %289 = arith.mulf %288, %286 : vector<2x32xf32>
    %290 = arith.mulf %281, %268 : vector<2x32xf32>
    %291 = arith.addf %289, %290 : vector<2x32xf32>
    %cst_70 = arith.constant dense<0.000000e+00> : vector<2x96xf32>
    %292 = tpu.matmul %291, %241, %cst_70 {dimension_numbers = #tpu.dot_dimension_numbers<[1], [0], [0], [1], [0, 0, 1, 1], [], []>} : vector<2x32xf32>, vector<32x96xf32>, vector<2x96xf32> -> vector<2x96xf32>
    %293 = vector.broadcast %243 : vector<1x96xf32> to vector<2x96xf32>
    %294 = arith.addf %292, %293 : vector<2x96xf32>
    %295 = vector.extract_strided_slice %106 {offsets = [0, 0], sizes = [2, 64], strides = [1, 1]} : vector<2x96xf32> to vector<2x64xf32>
    %296 = vector.extract_strided_slice %294 {offsets = [0, 0], sizes = [2, 64], strides = [1, 1]} : vector<2x96xf32> to vector<2x64xf32>
    %297 = arith.addf %295, %296 : vector<2x64xf32>
    %298 = arith.negf %297 : vector<2x64xf32>
    %299 = math.exp %298 : vector<2x64xf32>
    %cst_71 = arith.constant 1.000000e+00 : f32
    %300 = vector.broadcast %cst_71 : f32 to vector<2x64xf32>
    %301 = arith.addf %300, %299 : vector<2x64xf32>
    %302 = arith.divf %300, %301 : vector<2x64xf32>
    %303 = vector.extract_strided_slice %302 {offsets = [0, 0], sizes = [2, 32], strides = [1, 1]} : vector<2x64xf32> to vector<2x32xf32>
    %304 = vector.extract_strided_slice %302 {offsets = [0, 32], sizes = [2, 32], strides = [1, 1]} : vector<2x64xf32> to vector<2x32xf32>
    %305 = vector.extract_strided_slice %106 {offsets = [0, 64], sizes = [2, 32], strides = [1, 1]} : vector<2x96xf32> to vector<2x32xf32>
    %306 = vector.extract_strided_slice %294 {offsets = [0, 64], sizes = [2, 32], strides = [1, 1]} : vector<2x96xf32> to vector<2x32xf32>
    %307 = arith.mulf %303, %306 : vector<2x32xf32>
    %308 = arith.addf %305, %307 : vector<2x32xf32>
    %309 = math.tanh %308 : vector<2x32xf32>
    %cst_72 = arith.constant 1.000000e+00 : f32
    %310 = vector.broadcast %cst_72 : f32 to vector<2x32xf32>
    %311 = arith.subf %310, %304 : vector<2x32xf32>
    %312 = arith.mulf %311, %309 : vector<2x32xf32>
    %313 = arith.mulf %304, %291 : vector<2x32xf32>
    %314 = arith.addf %312, %313 : vector<2x32xf32>
    %cst_73 = arith.constant dense<0.000000e+00> : vector<2x96xf32>
    %315 = tpu.matmul %314, %241, %cst_73 {dimension_numbers = #tpu.dot_dimension_numbers<[1], [0], [0], [1], [0, 0, 1, 1], [], []>} : vector<2x32xf32>, vector<32x96xf32>, vector<2x96xf32> -> vector<2x96xf32>
    %316 = vector.broadcast %243 : vector<1x96xf32> to vector<2x96xf32>
    %317 = arith.addf %315, %316 : vector<2x96xf32>
    %318 = vector.extract_strided_slice %132 {offsets = [0, 0], sizes = [2, 64], strides = [1, 1]} : vector<2x96xf32> to vector<2x64xf32>
    %319 = vector.extract_strided_slice %317 {offsets = [0, 0], sizes = [2, 64], strides = [1, 1]} : vector<2x96xf32> to vector<2x64xf32>
    %320 = arith.addf %318, %319 : vector<2x64xf32>
    %321 = arith.negf %320 : vector<2x64xf32>
    %322 = math.exp %321 : vector<2x64xf32>
    %cst_74 = arith.constant 1.000000e+00 : f32
    %323 = vector.broadcast %cst_74 : f32 to vector<2x64xf32>
    %324 = arith.addf %323, %322 : vector<2x64xf32>
    %325 = arith.divf %323, %324 : vector<2x64xf32>
    %326 = vector.extract_strided_slice %325 {offsets = [0, 0], sizes = [2, 32], strides = [1, 1]} : vector<2x64xf32> to vector<2x32xf32>
    %327 = vector.extract_strided_slice %325 {offsets = [0, 32], sizes = [2, 32], strides = [1, 1]} : vector<2x64xf32> to vector<2x32xf32>
    %328 = vector.extract_strided_slice %132 {offsets = [0, 64], sizes = [2, 32], strides = [1, 1]} : vector<2x96xf32> to vector<2x32xf32>
    %329 = vector.extract_strided_slice %317 {offsets = [0, 64], sizes = [2, 32], strides = [1, 1]} : vector<2x96xf32> to vector<2x32xf32>
    %330 = arith.mulf %326, %329 : vector<2x32xf32>
    %331 = arith.addf %328, %330 : vector<2x32xf32>
    %332 = math.tanh %331 : vector<2x32xf32>
    %cst_75 = arith.constant 1.000000e+00 : f32
    %333 = vector.broadcast %cst_75 : f32 to vector<2x32xf32>
    %334 = arith.subf %333, %327 : vector<2x32xf32>
    %335 = arith.mulf %334, %332 : vector<2x32xf32>
    %336 = arith.mulf %327, %314 : vector<2x32xf32>
    %337 = arith.addf %335, %336 : vector<2x32xf32>
    %cst_76 = arith.constant dense<0.000000e+00> : vector<2x96xf32>
    %338 = tpu.matmul %337, %241, %cst_76 {dimension_numbers = #tpu.dot_dimension_numbers<[1], [0], [0], [1], [0, 0, 1, 1], [], []>} : vector<2x32xf32>, vector<32x96xf32>, vector<2x96xf32> -> vector<2x96xf32>
    %339 = vector.broadcast %243 : vector<1x96xf32> to vector<2x96xf32>
    %340 = arith.addf %338, %339 : vector<2x96xf32>
    %341 = vector.extract_strided_slice %158 {offsets = [0, 0], sizes = [2, 64], strides = [1, 1]} : vector<2x96xf32> to vector<2x64xf32>
    %342 = vector.extract_strided_slice %340 {offsets = [0, 0], sizes = [2, 64], strides = [1, 1]} : vector<2x96xf32> to vector<2x64xf32>
    %343 = arith.addf %341, %342 : vector<2x64xf32>
    %344 = arith.negf %343 : vector<2x64xf32>
    %345 = math.exp %344 : vector<2x64xf32>
    %cst_77 = arith.constant 1.000000e+00 : f32
    %346 = vector.broadcast %cst_77 : f32 to vector<2x64xf32>
    %347 = arith.addf %346, %345 : vector<2x64xf32>
    %348 = arith.divf %346, %347 : vector<2x64xf32>
    %349 = vector.extract_strided_slice %348 {offsets = [0, 0], sizes = [2, 32], strides = [1, 1]} : vector<2x64xf32> to vector<2x32xf32>
    %350 = vector.extract_strided_slice %348 {offsets = [0, 32], sizes = [2, 32], strides = [1, 1]} : vector<2x64xf32> to vector<2x32xf32>
    %351 = vector.extract_strided_slice %158 {offsets = [0, 64], sizes = [2, 32], strides = [1, 1]} : vector<2x96xf32> to vector<2x32xf32>
    %352 = vector.extract_strided_slice %340 {offsets = [0, 64], sizes = [2, 32], strides = [1, 1]} : vector<2x96xf32> to vector<2x32xf32>
    %353 = arith.mulf %349, %352 : vector<2x32xf32>
    %354 = arith.addf %351, %353 : vector<2x32xf32>
    %355 = math.tanh %354 : vector<2x32xf32>
    %cst_78 = arith.constant 1.000000e+00 : f32
    %356 = vector.broadcast %cst_78 : f32 to vector<2x32xf32>
    %357 = arith.subf %356, %350 : vector<2x32xf32>
    %358 = arith.mulf %357, %355 : vector<2x32xf32>
    %359 = arith.mulf %350, %337 : vector<2x32xf32>
    %360 = arith.addf %358, %359 : vector<2x32xf32>
    %cst_79 = arith.constant dense<0.000000e+00> : vector<2x96xf32>
    %361 = tpu.matmul %360, %241, %cst_79 {dimension_numbers = #tpu.dot_dimension_numbers<[1], [0], [0], [1], [0, 0, 1, 1], [], []>} : vector<2x32xf32>, vector<32x96xf32>, vector<2x96xf32> -> vector<2x96xf32>
    %362 = vector.broadcast %243 : vector<1x96xf32> to vector<2x96xf32>
    %363 = arith.addf %361, %362 : vector<2x96xf32>
    %364 = vector.extract_strided_slice %184 {offsets = [0, 0], sizes = [2, 64], strides = [1, 1]} : vector<2x96xf32> to vector<2x64xf32>
    %365 = vector.extract_strided_slice %363 {offsets = [0, 0], sizes = [2, 64], strides = [1, 1]} : vector<2x96xf32> to vector<2x64xf32>
    %366 = arith.addf %364, %365 : vector<2x64xf32>
    %367 = arith.negf %366 : vector<2x64xf32>
    %368 = math.exp %367 : vector<2x64xf32>
    %cst_80 = arith.constant 1.000000e+00 : f32
    %369 = vector.broadcast %cst_80 : f32 to vector<2x64xf32>
    %370 = arith.addf %369, %368 : vector<2x64xf32>
    %371 = arith.divf %369, %370 : vector<2x64xf32>
    %372 = vector.extract_strided_slice %371 {offsets = [0, 0], sizes = [2, 32], strides = [1, 1]} : vector<2x64xf32> to vector<2x32xf32>
    %373 = vector.extract_strided_slice %371 {offsets = [0, 32], sizes = [2, 32], strides = [1, 1]} : vector<2x64xf32> to vector<2x32xf32>
    %374 = vector.extract_strided_slice %184 {offsets = [0, 64], sizes = [2, 32], strides = [1, 1]} : vector<2x96xf32> to vector<2x32xf32>
    %375 = vector.extract_strided_slice %363 {offsets = [0, 64], sizes = [2, 32], strides = [1, 1]} : vector<2x96xf32> to vector<2x32xf32>
    %376 = arith.mulf %372, %375 : vector<2x32xf32>
    %377 = arith.addf %374, %376 : vector<2x32xf32>
    %378 = math.tanh %377 : vector<2x32xf32>
    %cst_81 = arith.constant 1.000000e+00 : f32
    %379 = vector.broadcast %cst_81 : f32 to vector<2x32xf32>
    %380 = arith.subf %379, %373 : vector<2x32xf32>
    %381 = arith.mulf %380, %378 : vector<2x32xf32>
    %382 = arith.mulf %373, %360 : vector<2x32xf32>
    %383 = arith.addf %381, %382 : vector<2x32xf32>
    %cst_82 = arith.constant dense<0.000000e+00> : vector<2x96xf32>
    %384 = tpu.matmul %383, %241, %cst_82 {dimension_numbers = #tpu.dot_dimension_numbers<[1], [0], [0], [1], [0, 0, 1, 1], [], []>} : vector<2x32xf32>, vector<32x96xf32>, vector<2x96xf32> -> vector<2x96xf32>
    %385 = vector.broadcast %243 : vector<1x96xf32> to vector<2x96xf32>
    %386 = arith.addf %384, %385 : vector<2x96xf32>
    %387 = vector.extract_strided_slice %210 {offsets = [0, 0], sizes = [2, 64], strides = [1, 1]} : vector<2x96xf32> to vector<2x64xf32>
    %388 = vector.extract_strided_slice %386 {offsets = [0, 0], sizes = [2, 64], strides = [1, 1]} : vector<2x96xf32> to vector<2x64xf32>
    %389 = arith.addf %387, %388 : vector<2x64xf32>
    %390 = arith.negf %389 : vector<2x64xf32>
    %391 = math.exp %390 : vector<2x64xf32>
    %cst_83 = arith.constant 1.000000e+00 : f32
    %392 = vector.broadcast %cst_83 : f32 to vector<2x64xf32>
    %393 = arith.addf %392, %391 : vector<2x64xf32>
    %394 = arith.divf %392, %393 : vector<2x64xf32>
    %395 = vector.extract_strided_slice %394 {offsets = [0, 0], sizes = [2, 32], strides = [1, 1]} : vector<2x64xf32> to vector<2x32xf32>
    %396 = vector.extract_strided_slice %394 {offsets = [0, 32], sizes = [2, 32], strides = [1, 1]} : vector<2x64xf32> to vector<2x32xf32>
    %397 = vector.extract_strided_slice %210 {offsets = [0, 64], sizes = [2, 32], strides = [1, 1]} : vector<2x96xf32> to vector<2x32xf32>
    %398 = vector.extract_strided_slice %386 {offsets = [0, 64], sizes = [2, 32], strides = [1, 1]} : vector<2x96xf32> to vector<2x32xf32>
    %399 = arith.mulf %395, %398 : vector<2x32xf32>
    %400 = arith.addf %397, %399 : vector<2x32xf32>
    %401 = math.tanh %400 : vector<2x32xf32>
    %cst_84 = arith.constant 1.000000e+00 : f32
    %402 = vector.broadcast %cst_84 : f32 to vector<2x32xf32>
    %403 = arith.subf %402, %396 : vector<2x32xf32>
    %404 = arith.mulf %403, %401 : vector<2x32xf32>
    %405 = arith.mulf %396, %383 : vector<2x32xf32>
    %406 = arith.addf %404, %405 : vector<2x32xf32>
    %cst_85 = arith.constant dense<0.000000e+00> : vector<2x96xf32>
    %407 = tpu.matmul %406, %241, %cst_85 {dimension_numbers = #tpu.dot_dimension_numbers<[1], [0], [0], [1], [0, 0, 1, 1], [], []>} : vector<2x32xf32>, vector<32x96xf32>, vector<2x96xf32> -> vector<2x96xf32>
    %408 = vector.broadcast %243 : vector<1x96xf32> to vector<2x96xf32>
    %409 = arith.addf %407, %408 : vector<2x96xf32>
    %410 = vector.extract_strided_slice %236 {offsets = [0, 0], sizes = [2, 64], strides = [1, 1]} : vector<2x96xf32> to vector<2x64xf32>
    %411 = vector.extract_strided_slice %409 {offsets = [0, 0], sizes = [2, 64], strides = [1, 1]} : vector<2x96xf32> to vector<2x64xf32>
    %412 = arith.addf %410, %411 : vector<2x64xf32>
    %413 = arith.negf %412 : vector<2x64xf32>
    %414 = math.exp %413 : vector<2x64xf32>
    %cst_86 = arith.constant 1.000000e+00 : f32
    %415 = vector.broadcast %cst_86 : f32 to vector<2x64xf32>
    %416 = arith.addf %415, %414 : vector<2x64xf32>
    %417 = arith.divf %415, %416 : vector<2x64xf32>
    %418 = vector.extract_strided_slice %417 {offsets = [0, 0], sizes = [2, 32], strides = [1, 1]} : vector<2x64xf32> to vector<2x32xf32>
    %419 = vector.extract_strided_slice %417 {offsets = [0, 32], sizes = [2, 32], strides = [1, 1]} : vector<2x64xf32> to vector<2x32xf32>
    %420 = vector.extract_strided_slice %236 {offsets = [0, 64], sizes = [2, 32], strides = [1, 1]} : vector<2x96xf32> to vector<2x32xf32>
    %421 = vector.extract_strided_slice %409 {offsets = [0, 64], sizes = [2, 32], strides = [1, 1]} : vector<2x96xf32> to vector<2x32xf32>
    %422 = arith.mulf %418, %421 : vector<2x32xf32>
    %423 = arith.addf %420, %422 : vector<2x32xf32>
    %424 = math.tanh %423 : vector<2x32xf32>
    %cst_87 = arith.constant 1.000000e+00 : f32
    %425 = vector.broadcast %cst_87 : f32 to vector<2x32xf32>
    %426 = arith.subf %425, %419 : vector<2x32xf32>
    %427 = arith.mulf %426, %424 : vector<2x32xf32>
    %428 = arith.mulf %419, %406 : vector<2x32xf32>
    %429 = arith.addf %427, %428 : vector<2x32xf32>
    %c1_88 = arith.constant 1 : index
    %c0_89 = arith.constant 0 : index
    %c0_90 = arith.constant 0 : index
    %430 = vector.load %arg9[%c1_88, %c0_89, %c0_90] : memref<2x2x32xf32, #tpu.memory_space<vmem>>, vector<1x2x32xf32>
    %431 = vector.shape_cast %430 : vector<1x2x32xf32> to vector<2x32xf32>
    %432 = vector.shape_cast %429 : vector<2x32xf32> to vector<1x2x32xf32>
    tpu.vector_store %arg9[%c1_88, %c0_89, %c0_90], %432 {strides = array<i32>} : memref<2x2x32xf32, #tpu.memory_space<vmem>>, vector<1x2x32xf32>,
    %cst_91 = arith.constant 0.000000e+00 : f32
    %433 = vector.broadcast %cst_91 : f32 to vector<2x32xf32>
    %434 = arith.maximumf %429, %433 : vector<2x32xf32>
    %c0_92 = arith.constant 0 : index
    %c0_93 = arith.constant 0 : index
    %435 = vector.load %arg6[%c0_92, %c0_93] : memref<1x32xf32, #tpu.memory_space<vmem>>, vector<1x32xf32>
    %436 = vector.broadcast %435 : vector<1x32xf32> to vector<2x32xf32>
    %437 = arith.mulf %434, %436 : vector<2x32xf32>
    %cst_94 = arith.constant dense<0.000000e+00> : vector<2xf32>
    %438 = vector.multi_reduction <add>, %437, %cst_94 [1] : vector<2x32xf32> to vector<2xf32>
    %439 = vector.shape_cast %438 : vector<2xf32> to vector<2x1xf32>
    %c0_95 = arith.constant 0 : index
    %c0_96 = arith.constant 0 : index
    %440 = vector.load %arg7[%c0_95, %c0_96] : memref<1x1xf32, #tpu.memory_space<vmem>>, vector<1x1xf32>
    %441 = vector.broadcast %440 : vector<1x1xf32> to vector<2x1xf32>
    %442 = arith.addf %439, %441 : vector<2x1xf32>
    %443 = arith.negf %442 : vector<2x1xf32>
    %444 = math.exp %443 : vector<2x1xf32>
    %cst_97 = arith.constant 1.000000e+00 : f32
    %445 = vector.broadcast %cst_97 : f32 to vector<2x1xf32>
    %446 = arith.addf %445, %444 : vector<2x1xf32>
    %447 = arith.divf %445, %446 : vector<2x1xf32>
    %c0_98 = arith.constant 0 : index
    %c0_99 = arith.constant 0 : index
    %448 = vector.load %arg8[%c0_98, %c0_99] : memref<2x1xf32, #tpu.memory_space<vmem>>, vector<2x1xf32>
    tpu.vector_store %arg8[%c0_98, %c0_99], %447 {strides = array<i32>} : memref<2x1xf32, #tpu.memory_space<vmem>>, vector<2x1xf32>,
    return
  }
}

</mosaic_0001>

<llo_original>
// kernel: tpu_custom_call.1
$region0: #{tpu_custom_call.1}
  #allocation0 [shape = 'u32[]', space=smem, size = 0x4, offset = 0x4, fixed_abs, tag = 'smem constant byte address 0x4 - core index']
  #allocation1 [shape = 'u32[144,128]{1,0:T(1,128)}', space=vmem, size = 0x12000, scoped, tag = 'internal scratch']
  #allocation2 [shape = 'f32[1,1]{1,0:T(1,128)S(1)}', space=vmem, size = 0x200, scoped, tag = 'scoped memory for tpu_custom_call.1']
  %s0 = inlined_call_operand.vmem [shape: f32[16,1], index: 0, kind: input, shape index: {}]
  %s1 = inlined_call_operand.hbm [shape: f32[2,32,96], index: 1, kind: input, shape index: {}]
  %s2 = inlined_call_operand.hbm [shape: f32[2,32,96], index: 2, kind: input, shape index: {}]
  %s3 = inlined_call_operand.vmem [shape: f32[2,1,96], index: 3, kind: input, shape index: {}]
  %s4 = inlined_call_operand.vmem [shape: f32[2,1,96], index: 4, kind: input, shape index: {}]
  %s5 = inlined_call_operand.vmem [shape: f32[2,2,32], index: 5, kind: input, shape index: {}]
  %s6 = inlined_call_operand.vmem [shape: f32[1,32], index: 6, kind: input, shape index: {}]
  %s7 = inlined_call_operand.<no memory space> [shape: f32[1,1], index: 7, kind: input, shape index: {}]
  %s8 = inlined_call_operand.vmem [shape: f32[2,1], index: 8, kind: output, shape index: {0}]
  %s9 = inlined_call_operand.hbm [shape: f32[2,2,32], index: 9, kind: output, shape index: {1}]
  %10 = xla_tuple %s8, %s9
  %s11 = sld [smem:[#allocation0]]
  $region58: #{tpu_custom_call.1} parent=0
    _
  %s13 = ssub.s32 1, %s11
  %s14 = scalar_select 0, %s13, %s11
  %v15 = vstv %s7
  %16 = vst [vmem:[#allocation2] sm:$0x1] %v15
  $region1: #{tpu_custom_call.1} parent=0
    #allocation3 [shape = 'u8[32768]{0}', space=vmem, size = 0x8000, scoped, tag = 'input window, operand 1, single buffered']
    #allocation4 [shape = 's32[1]{0}', space=sflag, size = 0x4, scoped, tag = 'scoped memory for tpu_custom_call.1']
    #allocation5 [shape = 's32[1]{0}', space=sflag, size = 0x4, scoped, tag = 'scoped memory for tpu_custom_call.1']
    #allocation6 [shape = 'u8[32768]{0}', space=vmem, size = 0x8000, scoped, tag = 'input window, operand 2, single buffered']
    #allocation7 [shape = 's32[1]{0}', space=sflag, size = 0x4, scoped, tag = 'scoped memory for tpu_custom_call.1']
    #allocation8 [shape = 'u8[2048]{0}', space=vmem, size = 0x800, scoped, tag = 'output window, operand 1, single buffered']
    %17 = vsyncpa [#allocation4], 0
    %18 = vsyncpa [#allocation7], 0
    %19 = vsyncpa [#allocation5], 0
    // Predicated region
    $region2: #{tpu_custom_call.1} parent=1 // pred_check
      _
    $region3: #{tpu_custom_call.1} parent=1 // pred_check_branch
      %21 = sbr.rel (0) target = $region5
    $region4: #{tpu_custom_call.1} parent=1 // pred_region
      _
    $region5: #{tpu_custom_call.1} parent=1 // pred_fallthru
      _
    // Predicated region
    $region6: #{tpu_custom_call.1} parent=1 // pred_check
      _
    $region7: #{tpu_custom_call.1} parent=1 // pred_check_branch
      %23 = sbr.rel (0) target = $region9
    $region8: #{tpu_custom_call.1} parent=1 // pred_region
      %s25 = ssub.s32 1024, 1024
      %26 = vsyncadd [#allocation4], %s25
      %s27 = sshll.u32 [#allocation3], 4
      %s28 = int_to_ptr.vmem [resolvable:$true] %s27
      %33 = dma.hbm_to_vmem [thread:$0]  %s1, 1024, %s28, [#allocation4], 128, 128, 8
    $region9: #{tpu_custom_call.1} parent=1 // pred_fallthru
      _
    // Predicated region
    $region10: #{tpu_custom_call.1} parent=1 // pred_check
      _
    $region11: #{tpu_custom_call.1} parent=1 // pred_check_branch
      %35 = sbr.rel (0) target = $region13
    $region12: #{tpu_custom_call.1} parent=1 // pred_region
      %s37 = ssub.s32 1024, 1024
      %38 = vsyncadd [#allocation7], %s37
      %s39 = sshll.u32 [#allocation6], 4
      %s40 = int_to_ptr.vmem [resolvable:$true] %s39
      %45 = dma.hbm_to_vmem [thread:$0]  %s2, 1024, %s40, [#allocation7], 128, 128, 8
    $region13: #{tpu_custom_call.1} parent=1 // pred_fallthru
      _
    // Predicated region
    $region14: #{tpu_custom_call.1} parent=1 // pred_check
      _
    $region15: #{tpu_custom_call.1} parent=1 // pred_check_branch
      %47 = sbr.rel (0) target = $region17
    $region16: #{tpu_custom_call.1} parent=1 // pred_region
      _
    $region17: #{tpu_custom_call.1} parent=1 // pred_fallthru
      _
    // Predicated region
    $region18: #{tpu_custom_call.1} parent=1 // pred_check
      _
    $region19: #{tpu_custom_call.1} parent=1 // pred_check_branch
      %49 = sbr.rel (0) target = $region21
    $region20: #{tpu_custom_call.1} parent=1 // pred_region
      _
    $region21: #{tpu_custom_call.1} parent=1 // pred_fallthru
      _
    // Predicated region
    $region22: #{tpu_custom_call.1} parent=1 // pred_check
      _
    $region23: #{tpu_custom_call.1} parent=1 // pred_check_branch
      %51 = sbr.rel (0) target = $region25
    $region24: #{tpu_custom_call.1} parent=1 // pred_region
      _
    $region25: #{tpu_custom_call.1} parent=1 // pred_fallthru
      _
    // Predicated region
    $region26: #{tpu_custom_call.1} parent=1 // pred_check
      _
    $region27: #{tpu_custom_call.1} parent=1 // pred_check_branch
      %53 = sbr.rel (0) target = $region29
    $region28: #{tpu_custom_call.1} parent=1 // pred_region
      _
    $region29: #{tpu_custom_call.1} parent=1 // pred_fallthru
      _
    // Predicated region
    $region30: #{tpu_custom_call.1} parent=1 // pred_check
      _
    $region31: #{tpu_custom_call.1} parent=1 // pred_check_branch
      %55 = sbr.rel (0) target = $region33
    $region32: #{tpu_custom_call.1} parent=1 // pred_region
      _
    $region33: #{tpu_custom_call.1} parent=1 // pred_fallthru
      _
    // Predicated region
    $region34: #{tpu_custom_call.1} parent=1 // pred_check
      _
    $region35: #{tpu_custom_call.1} parent=1 // pred_check_branch
      %57 = sbr.rel (0) target = $region37
    $region36: #{tpu_custom_call.1} parent=1 // pred_region
      %58 = dma.done [#allocation4], 1024
    $region37: #{tpu_custom_call.1} parent=1 // pred_fallthru
      _
    // Predicated region
    $region38: #{tpu_custom_call.1} parent=1 // pred_check
      _
    $region39: #{tpu_custom_call.1} parent=1 // pred_check_branch
      %60 = sbr.rel (0) target = $region41
    $region40: #{tpu_custom_call.1} parent=1 // pred_region
      %61 = dma.done [#allocation7], 1024
    $region41: #{tpu_custom_call.1} parent=1 // pred_fallthru
      _
    %v62 = vld [vmem:[#allocation3] sm:$0xff]
    %v63 = vld [vmem:[%s0] sm:$0xff]
    %v64 = vld [vmem:[%s0 + $0x8] sm:$0xff]
    %66 = vset.pattern.permute.xlu0 0
    %67 = vperm.xlu0 %66, %v63
    %v68 = vpop.permute.xlu0 %67
    %71 = vset.pattern.permute.xlu0 0
    %72 = vperm.xlu0 %71, %v64
    %v73 = vpop.permute.xlu0 %72
    %v75 = vlaneseq
    %v76 = vshrl.u32 %v75, 7
    %v77 = vsub.s32 0, %v76
    %v78 = vrot.slane %v62, %v77
    %v79 = vmul.f32 %v68, %v78
    %v80 = vmul.f32 %v73, %v78
    %v81 = vld [vmem:[%s3] sm:$0x1]
    %v83 = vlaneseq
    %v84 = vshrl.u32 %v83, 7
    %v85 = vsub.s32 0, %v84
    %v86 = vrot.slane %v81, %v85
    %v88 = vadd.f32 %v79, %v86
    %v89 = vadd.f32 %v80, %v86
    %v90 = vld [vmem:[#allocation6] sm:$0xff]
    %v91 = vld [vmem:[#allocation6 + $0x8] sm:$0xff]
    %v92 = vld [vmem:[#allocation6 + $0x10] sm:$0xff]
    %v93 = vld [vmem:[#allocation6 + $0x18] sm:$0xff]
    %v94 = vld [vmem:[%s4] sm:$0x1]
    %s95 = scalar_lea.vmem [#allocation3], 32
    %v96 = vld [vmem:[%s95] sm:$0xff]
    %v97 = vld [vmem:[%s95 + $0x8] sm:$0xff]
    %v98 = vld [vmem:[%s95 + $0x10] sm:$0xff]
    %v99 = vld [vmem:[%s95 + $0x18] sm:$0xff]
    %s100 = scalar_lea.vmem %s3, 1
    %v101 = vld [vmem:[%s100] sm:$0x1]
    %v102 = vld [vmem:[%s5] sm:$0x3]
    %v104 = vlaneseq
    %v105 = vshrl.u32 %v104, 7
    %v106 = vsub.s32 0, %v105
    %v107 = vrot.slane %v94, %v106
    %vm109 = vcmask 261120
    %v111 = vsel %vm109, %v102, 0
    %113 = vmatprep.subr.mxu0 0.0
    %114 = vmatpush1.msra.mxu0 %v90
    %115 = vmatprep.subr.mxu0 0.0
    %116 = vmatpush1.msra.mxu0 %v91
    %117 = vmatprep.subr.mxu0 0.0
    %118 = vmatpush1.msra.mxu0 %v92
    %119 = vmatprep.subr.mxu0 0.0
    %120 = vmatpush1.msra.mxu0 %v93
    %121 = vmatprep.subr.mxu0 0.0
    %122 = vmatpush1.msra.mxu0 0.0
    %123 = vmatprep.subr.mxu0 0.0
    %124 = vmatpush1.msra.mxu0 0.0
    %125 = vmatprep.subr.mxu0 0.0
    %126 = vmatpush1.msra.mxu0 0.0
    %127 = vmatprep.subr.mxu0 0.0
    %128 = vmatpush1.msra.mxu0 0.0
    %129 = vmatprep.subr.mxu0 0.0
    %130 = vmatpush1.msra.mxu0 0.0
    %131 = vmatprep.subr.mxu0 0.0
    %132 = vmatpush1.msra.mxu0 0.0
    %133 = vmatprep.subr.mxu0 0.0
    %134 = vmatpush1.msra.mxu0 0.0
    %135 = vmatprep.subr.mxu0 0.0
    %136 = vmatpush1.msra.mxu0 0.0
    %137 = vmatprep.subr.mxu0 0.0
    %138 = vmatpush1.msra.mxu0 0.0
    %139 = vmatprep.subr.mxu0 0.0
    %140 = vmatpush1.msra.mxu0 0.0
    %141 = vmatprep.subr.mxu0 0.0
    %142 = vmatpush1.msra.mxu0 0.0
    %143 = vmatprep.subr.mxu0 0.0
    %144 = vmatpush1.msra.mxu0 0.0
    %145 = vmatprep.subr.mxu0 0.0
    %146 = vmatpush1.msra.mxu0 0.0
    %147 = vmatprep.subr.mxu0 0.0
    %148 = vmatpush1.msra.mxu0 0.0
    %149 = vmatprep.subr.mxu0 0.0
    %150 = vmatpush1.msra.mxu0 0.0
    %151 = vmatprep.subr.mxu0 0.0
    %152 = vmatpush1.msra.mxu0 0.0
    %153 = vmatprep.subr.mxu0 0.0
    %154 = vmatpush1.msra.mxu0 0.0
    %155 = vmatprep.subr.mxu0 0.0
    %156 = vmatpush1.msra.mxu0 0.0
    %157 = vmatprep.subr.mxu0 0.0
    %158 = vmatpush1.msra.mxu0 0.0
    %159 = vmatprep.subr.mxu0 0.0
    %160 = vmatpush1.msra.mxu0 0.0
    %161 = vmatprep.subr.mxu0 0.0
    %162 = vmatpush1.msra.mxu0 0.0
    %163 = vmatprep.subr.mxu0 0.0
    %164 = vmatpush1.msra.mxu0 0.0
    %165 = vmatprep.subr.mxu0 0.0
    %166 = vmatpush1.msra.mxu0 0.0
    %167 = vmatprep.subr.mxu0 0.0
    %168 = vmatpush1.msra.mxu0 0.0
    %169 = vmatprep.subr.mxu0 0.0
    %170 = vmatpush1.msra.mxu0 0.0
    %171 = vmatprep.subr.mxu0 0.0
    %172 = vmatpush1.msra.mxu0 0.0
    %173 = vmatprep.subr.mxu0 0.0
    %174 = vmatpush1.msra.mxu0 0.0
    %175 = vmatprep.subr.mxu0 0.0
    %176 = vmatpush1.msra.mxu0 0.0
    %177 = vmatprep.mubr.f32.mxu0 0.0
    %178 = vmatmul.mubr.f32.gmra.mrb[0].mxu0 %v111
    %v179 = vpop.f32.mrb[0].mxu0
    %v180 = vadd.f32 %v107, %v179
    %v181 = vpop.f32.mrb[0].mxu0
    %182 = vdwg.mxu0
    %v183 = vadd.f32 %v88, %v180
    %v184 = vxor.u32 %v183, 2147483648
    %v185 = vmul.f32 %v184, 1.442695
    %v186 = vpow.pop %v185
    %v187 = vadd.f32 %v186, 1.0
    %v188 = vrcp.pop %v187
    %v189 = vmul.f32 1.0, %v188
    %191 = vrot.lane.b32.xlu0 %v180, 64
    %v192 = vpop.permute.xlu0 %191
    %v194 = vmul.f32 %v189, %v192
    %196 = vrot.lane.b32.xlu0 %v194, 64
    %v197 = vpop.permute.xlu0 %196
    %v199 = vadd.f32 %v88, %v197
    %v200 = vtanh.pop %v199
    %v201 = vsub.f32 1.0, %v189
    %203 = vrot.lane.b32.xlu0 %v200, 96
    %v204 = vpop.permute.xlu0 %203
    %v206 = vmul.f32 %v201, %v204
    %207 = vrot.lane.b32.xlu0 %v102, 32
    %v208 = vpop.permute.xlu0 %207
    %v210 = vmul.f32 %v189, %v208
    %v211 = vadd.f32 %v206, %v210
    %v213 = vlaneseq
    %v214 = vshrl.u32 %v213, 7
    %v215 = vsub.s32 0, %v214
    %v216 = vrot.slane %v101, %v215
    %219 = vrot.lane.b32.xlu0 %v211, 96
    %v220 = vpop.permute.xlu0 %219
    %v221 = vsel %vm109, %v220, 0
    %223 = vmatprep.subr.mxu0 0.0
    %224 = vmatpush1.msra.mxu0 %v96
    %225 = vmatprep.subr.mxu0 0.0
    %226 = vmatpush1.msra.mxu0 %v97
    %227 = vmatprep.subr.mxu0 0.0
    %228 = vmatpush1.msra.mxu0 %v98
    %229 = vmatprep.subr.mxu0 0.0
    %230 = vmatpush1.msra.mxu0 %v99
    %231 = vmatprep.subr.mxu0 0.0
    %232 = vmatpush1.msra.mxu0 0.0
    %233 = vmatprep.subr.mxu0 0.0
    %234 = vmatpush1.msra.mxu0 0.0
    %235 = vmatprep.subr.mxu0 0.0
    %236 = vmatpush1.msra.mxu0 0.0
    %237 = vmatprep.subr.mxu0 0.0
    %238 = vmatpush1.msra.mxu0 0.0
    %239 = vmatprep.subr.mxu0 0.0
    %240 = vmatpush1.msra.mxu0 0.0
    %241 = vmatprep.subr.mxu0 0.0
    %242 = vmatpush1.msra.mxu0 0.0
    %243 = vmatprep.subr.mxu0 0.0
    %244 = vmatpush1.msra.mxu0 0.0
    %245 = vmatprep.subr.mxu0 0.0
    %246 = vmatpush1.msra.mxu0 0.0
    %247 = vmatprep.subr.mxu0 0.0
    %248 = vmatpush1.msra.mxu0 0.0
    %249 = vmatprep.subr.mxu0 0.0
    %250 = vmatpush1.msra.mxu0 0.0
    %251 = vmatprep.subr.mxu0 0.0
    %252 = vmatpush1.msra.mxu0 0.0
    %253 = vmatprep.subr.mxu0 0.0
    %254 = vmatpush1.msra.mxu0 0.0
    %255 = vmatprep.subr.mxu0 0.0
    %256 = vmatpush1.msra.mxu0 0.0
    %257 = vmatprep.subr.mxu0 0.0
    %258 = vmatpush1.msra.mxu0 0.0
    %259 = vmatprep.subr.mxu0 0.0
    %260 = vmatpush1.msra.mxu0 0.0
    %261 = vmatprep.subr.mxu0 0.0
    %262 = vmatpush1.msra.mxu0 0.0
    %263 = vmatprep.subr.mxu0 0.0
    %264 = vmatpush1.msra.mxu0 0.0
    %265 = vmatprep.subr.mxu0 0.0
    %266 = vmatpush1.msra.mxu0 0.0
    %267 = vmatprep.subr.mxu0 0.0
    %268 = vmatpush1.msra.mxu0 0.0
    %269 = vmatprep.subr.mxu0 0.0
    %270 = vmatpush1.msra.mxu0 0.0
    %271 = vmatprep.subr.mxu0 0.0
    %272 = vmatpush1.msra.mxu0 0.0
    %273 = vmatprep.subr.mxu0 0.0
    %274 = vmatpush1.msra.mxu0 0.0
    %275 = vmatprep.subr.mxu0 0.0
    %276 = vmatpush1.msra.mxu0 0.0
    %277 = vmatprep.subr.mxu0 0.0
    %278 = vmatpush1.msra.mxu0 0.0
    %279 = vmatprep.subr.mxu0 0.0
    %280 = vmatpush1.msra.mxu0 0.0
    %281 = vmatprep.subr.mxu0 0.0
    %282 = vmatpush1.msra.mxu0 0.0
    %283 = vmatprep.subr.mxu0 0.0
    %284 = vmatpush1.msra.mxu0 0.0
    %285 = vmatprep.subr.mxu0 0.0
    %286 = vmatpush1.msra.mxu0 0.0
    %287 = vmatprep.mubr.f32.mxu0 0.0
    %288 = vmatmul.mubr.f32.gmra.mrb[0].mxu0 %v221
    %v289 = vpop.f32.mrb[0].mxu0
    %v290 = vadd.f32 %v216, %v289
    %v291 = vpop.f32.mrb[0].mxu0
    %292 = vdwg.mxu0
    %293 = vmatprep.subr.mxu0 0.0
    %294 = vmatpush1.msra.mxu0 %v90
    %295 = vmatprep.subr.mxu0 0.0
    %296 = vmatpush1.msra.mxu0 %v91
    %297 = vmatprep.subr.mxu0 0.0
    %298 = vmatpush1.msra.mxu0 %v92
    %299 = vmatprep.subr.mxu0 0.0
    %300 = vmatpush1.msra.mxu0 %v93
    %301 = vmatprep.subr.mxu0 0.0
    %302 = vmatpush1.msra.mxu0 0.0
    %303 = vmatprep.subr.mxu0 0.0
    %304 = vmatpush1.msra.mxu0 0.0
    %305 = vmatprep.subr.mxu0 0.0
    %306 = vmatpush1.msra.mxu0 0.0
    %307 = vmatprep.subr.mxu0 0.0
    %308 = vmatpush1.msra.mxu0 0.0
    %309 = vmatprep.subr.mxu0 0.0
    %310 = vmatpush1.msra.mxu0 0.0
    %311 = vmatprep.subr.mxu0 0.0
    %312 = vmatpush1.msra.mxu0 0.0
    %313 = vmatprep.subr.mxu0 0.0
    %314 = vmatpush1.msra.mxu0 0.0
    %315 = vmatprep.subr.mxu0 0.0
    %316 = vmatpush1.msra.mxu0 0.0
    %317 = vmatprep.subr.mxu0 0.0
    %318 = vmatpush1.msra.mxu0 0.0
    %319 = vmatprep.subr.mxu0 0.0
    %320 = vmatpush1.msra.mxu0 0.0
    %321 = vmatprep.subr.mxu0 0.0
    %322 = vmatpush1.msra.mxu0 0.0
    %323 = vmatprep.subr.mxu0 0.0
    %324 = vmatpush1.msra.mxu0 0.0
    %325 = vmatprep.subr.mxu0 0.0
    %326 = vmatpush1.msra.mxu0 0.0
    %327 = vmatprep.subr.mxu0 0.0
    %328 = vmatpush1.msra.mxu0 0.0
    %329 = vmatprep.subr.mxu0 0.0
    %330 = vmatpush1.msra.mxu0 0.0
    %331 = vmatprep.subr.mxu0 0.0
    %332 = vmatpush1.msra.mxu0 0.0
    %333 = vmatprep.subr.mxu0 0.0
    %334 = vmatpush1.msra.mxu0 0.0
    %335 = vmatprep.subr.mxu0 0.0
    %336 = vmatpush1.msra.mxu0 0.0
    %337 = vmatprep.subr.mxu0 0.0
    %338 = vmatpush1.msra.mxu0 0.0
    %339 = vmatprep.subr.mxu0 0.0
    %340 = vmatpush1.msra.mxu0 0.0
    %341 = vmatprep.subr.mxu0 0.0
    %342 = vmatpush1.msra.mxu0 0.0
    %343 = vmatprep.subr.mxu0 0.0
    %344 = vmatpush1.msra.mxu0 0.0
    %345 = vmatprep.subr.mxu0 0.0
    %346 = vmatpush1.msra.mxu0 0.0
    %347 = vmatprep.subr.mxu0 0.0
    %348 = vmatpush1.msra.mxu0 0.0
    %349 = vmatprep.subr.mxu0 0.0
    %350 = vmatpush1.msra.mxu0 0.0
    %351 = vmatprep.subr.mxu0 0.0
    %352 = vmatpush1.msra.mxu0 0.0
    %353 = vmatprep.subr.mxu0 0.0
    %354 = vmatpush1.msra.mxu0 0.0
    %355 = vmatprep.subr.mxu0 0.0
    %356 = vmatpush1.msra.mxu0 0.0
    %357 = vmatprep.mubr.f32.mxu0 0.0
    %358 = vmatmul.mubr.f32.gmra.mrb[0].mxu0 %v221
    %v359 = vpop.f32.mrb[0].mxu0
    %v360 = vadd.f32 %v107, %v359
    %v361 = vpop.f32.mrb[0].mxu0
    %362 = vdwg.mxu0
    %v364 = vrot.slane %v360, 6
    %v366 = vadd.f32 %v88, %v364
    %v367 = vxor.u32 %v366, 2147483648
    %v368 = vmul.f32 %v367, 1.442695
    %v369 = vpow.pop %v368
    %v370 = vadd.f32 %v369, 1.0
    %v371 = vrcp.pop %v370
    %v372 = vmul.f32 1.0, %v371
    %373 = vrot.lane.b32.xlu0 %v364, 64
    %v374 = vpop.permute.xlu0 %373
    %v376 = vmul.f32 %v372, %v374
    %378 = vrot.lane.b32.xlu0 %v376, 64
    %v379 = vpop.permute.xlu0 %378
    %v381 = vadd.f32 %v88, %v379
    %v382 = vtanh.pop %v381
    %v383 = vsub.f32 1.0, %v372
    %385 = vrot.lane.b32.xlu0 %v382, 96
    %v386 = vpop.permute.xlu0 %385
    %v388 = vmul.f32 %v383, %v386
    %v389 = vrot.slane %v211, 6
    %v391 = vmul.f32 %v372, %v389
    %v392 = vadd.f32 %v388, %v391
    %v394 = vrot.slane %v392, 2
    %395 = vrot.lane.b32.xlu0 %v394, 96
    %v396 = vpop.permute.xlu0 %395
    %v397 = vsel %vm109, %v396, 0
    %399 = vmatprep.subr.mxu0 0.0
    %400 = vmatpush1.msra.mxu0 %v96
    %401 = vmatprep.subr.mxu0 0.0
    %402 = vmatpush1.msra.mxu0 %v97
    %403 = vmatprep.subr.mxu0 0.0
    %404 = vmatpush1.msra.mxu0 %v98
    %405 = vmatprep.subr.mxu0 0.0
    %406 = vmatpush1.msra.mxu0 %v99
    %407 = vmatprep.subr.mxu0 0.0
    %408 = vmatpush1.msra.mxu0 0.0
    %409 = vmatprep.subr.mxu0 0.0
    %410 = vmatpush1.msra.mxu0 0.0
    %411 = vmatprep.subr.mxu0 0.0
    %412 = vmatpush1.msra.mxu0 0.0
    %413 = vmatprep.subr.mxu0 0.0
    %414 = vmatpush1.msra.mxu0 0.0
    %415 = vmatprep.subr.mxu0 0.0
    %416 = vmatpush1.msra.mxu0 0.0
    %417 = vmatprep.subr.mxu0 0.0
    %418 = vmatpush1.msra.mxu0 0.0
    %419 = vmatprep.subr.mxu0 0.0
    %420 = vmatpush1.msra.mxu0 0.0
    %421 = vmatprep.subr.mxu0 0.0
    %422 = vmatpush1.msra.mxu0 0.0
    %423 = vmatprep.subr.mxu0 0.0
    %424 = vmatpush1.msra.mxu0 0.0
    %425 = vmatprep.subr.mxu0 0.0
    %426 = vmatpush1.msra.mxu0 0.0
    %427 = vmatprep.subr.mxu0 0.0
    %428 = vmatpush1.msra.mxu0 0.0
    %429 = vmatprep.subr.mxu0 0.0
    %430 = vmatpush1.msra.mxu0 0.0
    %431 = vmatprep.subr.mxu0 0.0
    %432 = vmatpush1.msra.mxu0 0.0
    %433 = vmatprep.subr.mxu0 0.0
    %434 = vmatpush1.msra.mxu0 0.0
    %435 = vmatprep.subr.mxu0 0.0
    %436 = vmatpush1.msra.mxu0 0.0
    %437 = vmatprep.subr.mxu0 0.0
    %438 = vmatpush1.msra.mxu0 0.0
    %439 = vmatprep.subr.mxu0 0.0
    %440 = vmatpush1.msra.mxu0 0.0
    %441 = vmatprep.subr.mxu0 0.0
    %442 = vmatpush1.msra.mxu0 0.0
    %443 = vmatprep.subr.mxu0 0.0
    %444 = vmatpush1.msra.mxu0 0.0
    %445 = vmatprep.subr.mxu0 0.0
    %446 = vmatpush1.msra.mxu0 0.0
    %447 = vmatprep.subr.mxu0 0.0
    %448 = vmatpush1.msra.mxu0 0.0
    %449 = vmatprep.subr.mxu0 0.0
    %450 = vmatpush1.msra.mxu0 0.0
    %451 = vmatprep.subr.mxu0 0.0
    %452 = vmatpush1.msra.mxu0 0.0
    %453 = vmatprep.subr.mxu0 0.0
    %454 = vmatpush1.msra.mxu0 0.0
    %455 = vmatprep.subr.mxu0 0.0
    %456 = vmatpush1.msra.mxu0 0.0
    %457 = vmatprep.subr.mxu0 0.0
    %458 = vmatpush1.msra.mxu0 0.0
    %459 = vmatprep.subr.mxu0 0.0
    %460 = vmatpush1.msra.mxu0 0.0
    %461 = vmatprep.subr.mxu0 0.0
    %462 = vmatpush1.msra.mxu0 0.0
    %463 = vmatprep.mubr.f32.mxu0 0.0
    %464 = vmatmul.mubr.f32.gmra.mrb[0].mxu0 %v397
    %v465 = vpop.f32.mrb[0].mxu0
    %v466 = vadd.f32 %v216, %v465
    %v467 = vpop.f32.mrb[0].mxu0
    %468 = vdwg.mxu0
    %469 = vmatprep.subr.mxu0 0.0
    %470 = vmatpush1.msra.mxu0 %v90
    %471 = vmatprep.subr.mxu0 0.0
    %472 = vmatpush1.msra.mxu0 %v91
    %473 = vmatprep.subr.mxu0 0.0
    %474 = vmatpush1.msra.mxu0 %v92
    %475 = vmatprep.subr.mxu0 0.0
    %476 = vmatpush1.msra.mxu0 %v93
    %477 = vmatprep.subr.mxu0 0.0
    %478 = vmatpush1.msra.mxu0 0.0
    %479 = vmatprep.subr.mxu0 0.0
    %480 = vmatpush1.msra.mxu0 0.0
    %481 = vmatprep.subr.mxu0 0.0
    %482 = vmatpush1.msra.mxu0 0.0
    %483 = vmatprep.subr.mxu0 0.0
    %484 = vmatpush1.msra.mxu0 0.0
    %485 = vmatprep.subr.mxu0 0.0
    %486 = vmatpush1.msra.mxu0 0.0
    %487 = vmatprep.subr.mxu0 0.0
    %488 = vmatpush1.msra.mxu0 0.0
    %489 = vmatprep.subr.mxu0 0.0
    %490 = vmatpush1.msra.mxu0 0.0
    %491 = vmatprep.subr.mxu0 0.0
    %492 = vmatpush1.msra.mxu0 0.0
    %493 = vmatprep.subr.mxu0 0.0
    %494 = vmatpush1.msra.mxu0 0.0
    %495 = vmatprep.subr.mxu0 0.0
    %496 = vmatpush1.msra.mxu0 0.0
    %497 = vmatprep.subr.mxu0 0.0
    %498 = vmatpush1.msra.mxu0 0.0
    %499 = vmatprep.subr.mxu0 0.0
    %500 = vmatpush1.msra.mxu0 0.0
    %501 = vmatprep.subr.mxu0 0.0
    %502 = vmatpush1.msra.mxu0 0.0
    %503 = vmatprep.subr.mxu0 0.0
    %504 = vmatpush1.msra.mxu0 0.0
    %505 = vmatprep.subr.mxu0 0.0
    %506 = vmatpush1.msra.mxu0 0.0
    %507 = vmatprep.subr.mxu0 0.0
    %508 = vmatpush1.msra.mxu0 0.0
    %509 = vmatprep.subr.mxu0 0.0
    %510 = vmatpush1.msra.mxu0 0.0
    %511 = vmatprep.subr.mxu0 0.0
    %512 = vmatpush1.msra.mxu0 0.0
    %513 = vmatprep.subr.mxu0 0.0
    %514 = vmatpush1.msra.mxu0 0.0
    %515 = vmatprep.subr.mxu0 0.0
    %516 = vmatpush1.msra.mxu0 0.0
    %517 = vmatprep.subr.mxu0 0.0
    %518 = vmatpush1.msra.mxu0 0.0
    %519 = vmatprep.subr.mxu0 0.0
    %520 = vmatpush1.msra.mxu0 0.0
    %521 = vmatprep.subr.mxu0 0.0
    %522 = vmatpush1.msra.mxu0 0.0
    %523 = vmatprep.subr.mxu0 0.0
    %524 = vmatpush1.msra.mxu0 0.0
    %525 = vmatprep.subr.mxu0 0.0
    %526 = vmatpush1.msra.mxu0 0.0
    %527 = vmatprep.subr.mxu0 0.0
    %528 = vmatpush1.msra.mxu0 0.0
    %529 = vmatprep.subr.mxu0 0.0
    %530 = vmatpush1.msra.mxu0 0.0
    %531 = vmatprep.subr.mxu0 0.0
    %532 = vmatpush1.msra.mxu0 0.0
    %533 = vmatprep.mubr.f32.mxu0 0.0
    %534 = vmatmul.mubr.f32.gmra.mrb[0].mxu0 %v397
    %v535 = vpop.f32.mrb[0].mxu0
    %v536 = vadd.f32 %v107, %v535
    %v537 = vpop.f32.mrb[0].mxu0
    %538 = vdwg.mxu0
    %v540 = vrot.slane %v536, 4
    %v542 = vadd.f32 %v88, %v540
    %v543 = vxor.u32 %v542, 2147483648
    %v544 = vmul.f32 %v543, 1.442695
    %v545 = vpow.pop %v544
    %v546 = vadd.f32 %v545, 1.0
    %v547 = vrcp.pop %v546
    %v548 = vmul.f32 1.0, %v547
    %549 = vrot.lane.b32.xlu0 %v540, 64
    %v550 = vpop.permute.xlu0 %549
    %v552 = vmul.f32 %v548, %v550
    %554 = vrot.lane.b32.xlu0 %v552, 64
    %v555 = vpop.permute.xlu0 %554
    %v557 = vadd.f32 %v88, %v555
    %v558 = vtanh.pop %v557
    %v559 = vsub.f32 1.0, %v548
    %561 = vrot.lane.b32.xlu0 %v558, 96
    %v562 = vpop.permute.xlu0 %561
    %v564 = vmul.f32 %v559, %v562
    %v565 = vrot.slane %v392, 6
    %v567 = vmul.f32 %v548, %v565
    %v568 = vadd.f32 %v564, %v567
    %v570 = vrot.slane %v568, 4
    %571 = vrot.lane.b32.xlu0 %v570, 96
    %v572 = vpop.permute.xlu0 %571
    %v573 = vsel %vm109, %v572, 0
    %575 = vmatprep.subr.mxu0 0.0
    %576 = vmatpush1.msra.mxu0 %v96
    %577 = vmatprep.subr.mxu0 0.0
    %578 = vmatpush1.msra.mxu0 %v97
    %579 = vmatprep.subr.mxu0 0.0
    %580 = vmatpush1.msra.mxu0 %v98
    %581 = vmatprep.subr.mxu0 0.0
    %582 = vmatpush1.msra.mxu0 %v99
    %583 = vmatprep.subr.mxu0 0.0
    %584 = vmatpush1.msra.mxu0 0.0
    %585 = vmatprep.subr.mxu0 0.0
    %586 = vmatpush1.msra.mxu0 0.0
    %587 = vmatprep.subr.mxu0 0.0
    %588 = vmatpush1.msra.mxu0 0.0
    %589 = vmatprep.subr.mxu0 0.0
    %590 = vmatpush1.msra.mxu0 0.0
    %591 = vmatprep.subr.mxu0 0.0
    %592 = vmatpush1.msra.mxu0 0.0
    %593 = vmatprep.subr.mxu0 0.0
    %594 = vmatpush1.msra.mxu0 0.0
    %595 = vmatprep.subr.mxu0 0.0
    %596 = vmatpush1.msra.mxu0 0.0
    %597 = vmatprep.subr.mxu0 0.0
    %598 = vmatpush1.msra.mxu0 0.0
    %599 = vmatprep.subr.mxu0 0.0
    %600 = vmatpush1.msra.mxu0 0.0
    %601 = vmatprep.subr.mxu0 0.0
    %602 = vmatpush1.msra.mxu0 0.0
    %603 = vmatprep.subr.mxu0 0.0
    %604 = vmatpush1.msra.mxu0 0.0
    %605 = vmatprep.subr.mxu0 0.0
    %606 = vmatpush1.msra.mxu0 0.0
    %607 = vmatprep.subr.mxu0 0.0
    %608 = vmatpush1.msra.mxu0 0.0
    %609 = vmatprep.subr.mxu0 0.0
    %610 = vmatpush1.msra.mxu0 0.0
    %611 = vmatprep.subr.mxu0 0.0
    %612 = vmatpush1.msra.mxu0 0.0
    %613 = vmatprep.subr.mxu0 0.0
    %614 = vmatpush1.msra.mxu0 0.0
    %615 = vmatprep.subr.mxu0 0.0
    %616 = vmatpush1.msra.mxu0 0.0
    %617 = vmatprep.subr.mxu0 0.0
    %618 = vmatpush1.msra.mxu0 0.0
    %619 = vmatprep.subr.mxu0 0.0
    %620 = vmatpush1.msra.mxu0 0.0
    %621 = vmatprep.subr.mxu0 0.0
    %622 = vmatpush1.msra.mxu0 0.0
    %623 = vmatprep.subr.mxu0 0.0
    %624 = vmatpush1.msra.mxu0 0.0
    %625 = vmatprep.subr.mxu0 0.0
    %626 = vmatpush1.msra.mxu0 0.0
    %627 = vmatprep.subr.mxu0 0.0
    %628 = vmatpush1.msra.mxu0 0.0
    %629 = vmatprep.subr.mxu0 0.0
    %630 = vmatpush1.msra.mxu0 0.0
    %631 = vmatprep.subr.mxu0 0.0
    %632 = vmatpush1.msra.mxu0 0.0
    %633 = vmatprep.subr.mxu0 0.0
    %634 = vmatpush1.msra.mxu0 0.0
    %635 = vmatprep.subr.mxu0 0.0
    %636 = vmatpush1.msra.mxu0 0.0
    %637 = vmatprep.subr.mxu0 0.0
    %638 = vmatpush1.msra.mxu0 0.0
    %639 = vmatprep.mubr.f32.mxu0 0.0
    %640 = vmatmul.mubr.f32.gmra.mrb[0].mxu0 %v573
    %v641 = vpop.f32.mrb[0].mxu0
    %v642 = vadd.f32 %v216, %v641
    %v643 = vpop.f32.mrb[0].mxu0
    %644 = vdwg.mxu0
    %645 = vmatprep.subr.mxu0 0.0
    %646 = vmatpush1.msra.mxu0 %v90
    %647 = vmatprep.subr.mxu0 0.0
    %648 = vmatpush1.msra.mxu0 %v91
    %649 = vmatprep.subr.mxu0 0.0
    %650 = vmatpush1.msra.mxu0 %v92
    %651 = vmatprep.subr.mxu0 0.0
    %652 = vmatpush1.msra.mxu0 %v93
    %653 = vmatprep.subr.mxu0 0.0
    %654 = vmatpush1.msra.mxu0 0.0
    %655 = vmatprep.subr.mxu0 0.0
    %656 = vmatpush1.msra.mxu0 0.0
    %657 = vmatprep.subr.mxu0 0.0
    %658 = vmatpush1.msra.mxu0 0.0
    %659 = vmatprep.subr.mxu0 0.0
    %660 = vmatpush1.msra.mxu0 0.0
    %661 = vmatprep.subr.mxu0 0.0
    %662 = vmatpush1.msra.mxu0 0.0
    %663 = vmatprep.subr.mxu0 0.0
    %664 = vmatpush1.msra.mxu0 0.0
    %665 = vmatprep.subr.mxu0 0.0
    %666 = vmatpush1.msra.mxu0 0.0
    %667 = vmatprep.subr.mxu0 0.0
    %668 = vmatpush1.msra.mxu0 0.0
    %669 = vmatprep.subr.mxu0 0.0
    %670 = vmatpush1.msra.mxu0 0.0
    %671 = vmatprep.subr.mxu0 0.0
    %672 = vmatpush1.msra.mxu0 0.0
    %673 = vmatprep.subr.mxu0 0.0
    %674 = vmatpush1.msra.mxu0 0.0
    %675 = vmatprep.subr.mxu0 0.0
    %676 = vmatpush1.msra.mxu0 0.0
    %677 = vmatprep.subr.mxu0 0.0
    %678 = vmatpush1.msra.mxu0 0.0
    %679 = vmatprep.subr.mxu0 0.0
    %680 = vmatpush1.msra.mxu0 0.0
    %681 = vmatprep.subr.mxu0 0.0
    %682 = vmatpush1.msra.mxu0 0.0
    %683 = vmatprep.subr.mxu0 0.0
    %684 = vmatpush1.msra.mxu0 0.0
    %685 = vmatprep.subr.mxu0 0.0
    %686 = vmatpush1.msra.mxu0 0.0
    %687 = vmatprep.subr.mxu0 0.0
    %688 = vmatpush1.msra.mxu0 0.0
    %689 = vmatprep.subr.mxu0 0.0
    %690 = vmatpush1.msra.mxu0 0.0
    %691 = vmatprep.subr.mxu0 0.0
    %692 = vmatpush1.msra.mxu0 0.0
    %693 = vmatprep.subr.mxu0 0.0
    %694 = vmatpush1.msra.mxu0 0.0
    %695 = vmatprep.subr.mxu0 0.0
    %696 = vmatpush1.msra.mxu0 0.0
    %697 = vmatprep.subr.mxu0 0.0
    %698 = vmatpush1.msra.mxu0 0.0
    %699 = vmatprep.subr.mxu0 0.0
    %700 = vmatpush1.msra.mxu0 0.0
    %701 = vmatprep.subr.mxu0 0.0
    %702 = vmatpush1.msra.mxu0 0.0
    %703 = vmatprep.subr.mxu0 0.0
    %704 = vmatpush1.msra.mxu0 0.0
    %705 = vmatprep.subr.mxu0 0.0
    %706 = vmatpush1.msra.mxu0 0.0
    %707 = vmatprep.subr.mxu0 0.0
    %708 = vmatpush1.msra.mxu0 0.0
    %709 = vmatprep.mubr.f32.mxu0 0.0
    %710 = vmatmul.mubr.f32.gmra.mrb[0].mxu0 %v573
    %v711 = vpop.f32.mrb[0].mxu0
    %v712 = vadd.f32 %v107, %v711
    %v713 = vpop.f32.mrb[0].mxu0
    %714 = vdwg.mxu0
    %v716 = vrot.slane %v712, 2
    %v718 = vadd.f32 %v88, %v716
    %v719 = vxor.u32 %v718, 2147483648
    %v720 = vmul.f32 %v719, 1.442695
    %v721 = vpow.pop %v720
    %v722 = vadd.f32 %v721, 1.0
    %v723 = vrcp.pop %v722
    %v724 = vmul.f32 1.0, %v723
    %725 = vrot.lane.b32.xlu0 %v716, 64
    %v726 = vpop.permute.xlu0 %725
    %v728 = vmul.f32 %v724, %v726
    %730 = vrot.lane.b32.xlu0 %v728, 64
    %v731 = vpop.permute.xlu0 %730
    %v733 = vadd.f32 %v88, %v731
    %v734 = vtanh.pop %v733
    %v735 = vsub.f32 1.0, %v724
    %737 = vrot.lane.b32.xlu0 %v734, 96
    %v738 = vpop.permute.xlu0 %737
    %v740 = vmul.f32 %v735, %v738
    %v741 = vrot.slane %v568, 6
    %v743 = vmul.f32 %v724, %v741
    %v744 = vadd.f32 %v740, %v743
    %v746 = vrot.slane %v744, 6
    %747 = vrot.lane.b32.xlu0 %v746, 96
    %v748 = vpop.permute.xlu0 %747
    %v749 = vsel %vm109, %v748, 0
    %751 = vmatprep.subr.mxu0 0.0
    %752 = vmatpush1.msra.mxu0 %v96
    %753 = vmatprep.subr.mxu0 0.0
    %754 = vmatpush1.msra.mxu0 %v97
    %755 = vmatprep.subr.mxu0 0.0
    %756 = vmatpush1.msra.mxu0 %v98
    %757 = vmatprep.subr.mxu0 0.0
    %758 = vmatpush1.msra.mxu0 %v99
    %759 = vmatprep.subr.mxu0 0.0
    %760 = vmatpush1.msra.mxu0 0.0
    %761 = vmatprep.subr.mxu0 0.0
    %762 = vmatpush1.msra.mxu0 0.0
    %763 = vmatprep.subr.mxu0 0.0
    %764 = vmatpush1.msra.mxu0 0.0
    %765 = vmatprep.subr.mxu0 0.0
    %766 = vmatpush1.msra.mxu0 0.0
    %767 = vmatprep.subr.mxu0 0.0
    %768 = vmatpush1.msra.mxu0 0.0
    %769 = vmatprep.subr.mxu0 0.0
    %770 = vmatpush1.msra.mxu0 0.0
    %771 = vmatprep.subr.mxu0 0.0
    %772 = vmatpush1.msra.mxu0 0.0
    %773 = vmatprep.subr.mxu0 0.0
    %774 = vmatpush1.msra.mxu0 0.0
    %775 = vmatprep.subr.mxu0 0.0
    %776 = vmatpush1.msra.mxu0 0.0
    %777 = vmatprep.subr.mxu0 0.0
    %778 = vmatpush1.msra.mxu0 0.0
    %779 = vmatprep.subr.mxu0 0.0
    %780 = vmatpush1.msra.mxu0 0.0
    %781 = vmatprep.subr.mxu0 0.0
    %782 = vmatpush1.msra.mxu0 0.0
    %783 = vmatprep.subr.mxu0 0.0
    %784 = vmatpush1.msra.mxu0 0.0
    %785 = vmatprep.subr.mxu0 0.0
    %786 = vmatpush1.msra.mxu0 0.0
    %787 = vmatprep.subr.mxu0 0.0
    %788 = vmatpush1.msra.mxu0 0.0
    %789 = vmatprep.subr.mxu0 0.0
    %790 = vmatpush1.msra.mxu0 0.0
    %791 = vmatprep.subr.mxu0 0.0
    %792 = vmatpush1.msra.mxu0 0.0
    %793 = vmatprep.subr.mxu0 0.0
    %794 = vmatpush1.msra.mxu0 0.0
    %795 = vmatprep.subr.mxu0 0.0
    %796 = vmatpush1.msra.mxu0 0.0
    %797 = vmatprep.subr.mxu0 0.0
    %798 = vmatpush1.msra.mxu0 0.0
    %799 = vmatprep.subr.mxu0 0.0
    %800 = vmatpush1.msra.mxu0 0.0
    %801 = vmatprep.subr.mxu0 0.0
    %802 = vmatpush1.msra.mxu0 0.0
    %803 = vmatprep.subr.mxu0 0.0
    %804 = vmatpush1.msra.mxu0 0.0
    %805 = vmatprep.subr.mxu0 0.0
    %806 = vmatpush1.msra.mxu0 0.0
    %807 = vmatprep.subr.mxu0 0.0
    %808 = vmatpush1.msra.mxu0 0.0
    %809 = vmatprep.subr.mxu0 0.0
    %810 = vmatpush1.msra.mxu0 0.0
    %811 = vmatprep.subr.mxu0 0.0
    %812 = vmatpush1.msra.mxu0 0.0
    %813 = vmatprep.subr.mxu0 0.0
    %814 = vmatpush1.msra.mxu0 0.0
    %815 = vmatprep.mubr.f32.mxu0 0.0
    %816 = vmatmul.mubr.f32.gmra.mrb[0].mxu0 %v749
    %v817 = vpop.f32.mrb[0].mxu0
    %v818 = vadd.f32 %v216, %v817
    %v819 = vpop.f32.mrb[0].mxu0
    %820 = vdwg.mxu0
    %821 = vmatprep.subr.mxu0 0.0
    %822 = vmatpush1.msra.mxu0 %v90
    %823 = vmatprep.subr.mxu0 0.0
    %824 = vmatpush1.msra.mxu0 %v91
    %825 = vmatprep.subr.mxu0 0.0
    %826 = vmatpush1.msra.mxu0 %v92
    %827 = vmatprep.subr.mxu0 0.0
    %828 = vmatpush1.msra.mxu0 %v93
    %829 = vmatprep.subr.mxu0 0.0
    %830 = vmatpush1.msra.mxu0 0.0
    %831 = vmatprep.subr.mxu0 0.0
    %832 = vmatpush1.msra.mxu0 0.0
    %833 = vmatprep.subr.mxu0 0.0
    %834 = vmatpush1.msra.mxu0 0.0
    %835 = vmatprep.subr.mxu0 0.0
    %836 = vmatpush1.msra.mxu0 0.0
    %837 = vmatprep.subr.mxu0 0.0
    %838 = vmatpush1.msra.mxu0 0.0
    %839 = vmatprep.subr.mxu0 0.0
    %840 = vmatpush1.msra.mxu0 0.0
    %841 = vmatprep.subr.mxu0 0.0
    %842 = vmatpush1.msra.mxu0 0.0
    %843 = vmatprep.subr.mxu0 0.0
    %844 = vmatpush1.msra.mxu0 0.0
    %845 = vmatprep.subr.mxu0 0.0
    %846 = vmatpush1.msra.mxu0 0.0
    %847 = vmatprep.subr.mxu0 0.0
    %848 = vmatpush1.msra.mxu0 0.0
    %849 = vmatprep.subr.mxu0 0.0
    %850 = vmatpush1.msra.mxu0 0.0
    %851 = vmatprep.subr.mxu0 0.0
    %852 = vmatpush1.msra.mxu0 0.0
    %853 = vmatprep.subr.mxu0 0.0
    %854 = vmatpush1.msra.mxu0 0.0
    %855 = vmatprep.subr.mxu0 0.0
    %856 = vmatpush1.msra.mxu0 0.0
    %857 = vmatprep.subr.mxu0 0.0
    %858 = vmatpush1.msra.mxu0 0.0
    %859 = vmatprep.subr.mxu0 0.0
    %860 = vmatpush1.msra.mxu0 0.0
    %861 = vmatprep.subr.mxu0 0.0
    %862 = vmatpush1.msra.mxu0 0.0
    %863 = vmatprep.subr.mxu0 0.0
    %864 = vmatpush1.msra.mxu0 0.0
    %865 = vmatprep.subr.mxu0 0.0
    %866 = vmatpush1.msra.mxu0 0.0
    %867 = vmatprep.subr.mxu0 0.0
    %868 = vmatpush1.msra.mxu0 0.0
    %869 = vmatprep.subr.mxu0 0.0
    %870 = vmatpush1.msra.mxu0 0.0
    %871 = vmatprep.subr.mxu0 0.0
    %872 = vmatpush1.msra.mxu0 0.0
    %873 = vmatprep.subr.mxu0 0.0
    %874 = vmatpush1.msra.mxu0 0.0
    %875 = vmatprep.subr.mxu0 0.0
    %876 = vmatpush1.msra.mxu0 0.0
    %877 = vmatprep.subr.mxu0 0.0
    %878 = vmatpush1.msra.mxu0 0.0
    %879 = vmatprep.subr.mxu0 0.0
    %880 = vmatpush1.msra.mxu0 0.0
    %881 = vmatprep.subr.mxu0 0.0
    %882 = vmatpush1.msra.mxu0 0.0
    %883 = vmatprep.subr.mxu0 0.0
    %884 = vmatpush1.msra.mxu0 0.0
    %885 = vmatprep.mubr.f32.mxu0 0.0
    %886 = vmatmul.mubr.f32.gmra.mrb[0].mxu0 %v749
    %v887 = vpop.f32.mrb[0].mxu0
    %v888 = vadd.f32 %v107, %v887
    %v889 = vpop.f32.mrb[0].mxu0
    %890 = vdwg.mxu0
    %v891 = vadd.f32 %v89, %v888
    %v892 = vxor.u32 %v891, 2147483648
    %v893 = vmul.f32 %v892, 1.442695
    %v894 = vpow.pop %v893
    %v895 = vadd.f32 %v894, 1.0
    %v896 = vrcp.pop %v895
    %v897 = vmul.f32 1.0, %v896
    %899 = vrot.lane.b32.xlu0 %v888, 64
    %v900 = vpop.permute.xlu0 %899
    %v902 = vmul.f32 %v897, %v900
    %904 = vrot.lane.b32.xlu0 %v902, 64
    %v905 = vpop.permute.xlu0 %904
    %v907 = vadd.f32 %v89, %v905
    %v908 = vtanh.pop %v907
    %v909 = vsub.f32 1.0, %v897
    %911 = vrot.lane.b32.xlu0 %v908, 96
    %v912 = vpop.permute.xlu0 %911
    %v914 = vmul.f32 %v909, %v912
    %v916 = vmul.f32 %v897, %v746
    %v917 = vadd.f32 %v914, %v916
    %919 = vrot.lane.b32.xlu0 %v917, 96
    %v920 = vpop.permute.xlu0 %919
    %v921 = vsel %vm109, %v920, 0
    %923 = vmatprep.subr.mxu0 0.0
    %924 = vmatpush1.msra.mxu0 %v96
    %925 = vmatprep.subr.mxu0 0.0
    %926 = vmatpush1.msra.mxu0 %v97
    %927 = vmatprep.subr.mxu0 0.0
    %928 = vmatpush1.msra.mxu0 %v98
    %929 = vmatprep.subr.mxu0 0.0
    %930 = vmatpush1.msra.mxu0 %v99
    %931 = vmatprep.subr.mxu0 0.0
    %932 = vmatpush1.msra.mxu0 0.0
    %933 = vmatprep.subr.mxu0 0.0
    %934 = vmatpush1.msra.mxu0 0.0
    %935 = vmatprep.subr.mxu0 0.0
    %936 = vmatpush1.msra.mxu0 0.0
    %937 = vmatprep.subr.mxu0 0.0
    %938 = vmatpush1.msra.mxu0 0.0
    %939 = vmatprep.subr.mxu0 0.0
    %940 = vmatpush1.msra.mxu0 0.0
    %941 = vmatprep.subr.mxu0 0.0
    %942 = vmatpush1.msra.mxu0 0.0
    %943 = vmatprep.subr.mxu0 0.0
    %944 = vmatpush1.msra.mxu0 0.0
    %945 = vmatprep.subr.mxu0 0.0
    %946 = vmatpush1.msra.mxu0 0.0
    %947 = vmatprep.subr.mxu0 0.0
    %948 = vmatpush1.msra.mxu0 0.0
    %949 = vmatprep.subr.mxu0 0.0
    %950 = vmatpush1.msra.mxu0 0.0
    %951 = vmatprep.subr.mxu0 0.0
    %952 = vmatpush1.msra.mxu0 0.0
    %953 = vmatprep.subr.mxu0 0.0
    %954 = vmatpush1.msra.mxu0 0.0
    %955 = vmatprep.subr.mxu0 0.0
    %956 = vmatpush1.msra.mxu0 0.0
    %957 = vmatprep.subr.mxu0 0.0
    %958 = vmatpush1.msra.mxu0 0.0
    %959 = vmatprep.subr.mxu0 0.0
    %960 = vmatpush1.msra.mxu0 0.0
    %961 = vmatprep.subr.mxu0 0.0
    %962 = vmatpush1.msra.mxu0 0.0
    %963 = vmatprep.subr.mxu0 0.0
    %964 = vmatpush1.msra.mxu0 0.0
    %965 = vmatprep.subr.mxu0 0.0
    %966 = vmatpush1.msra.mxu0 0.0
    %967 = vmatprep.subr.mxu0 0.0
    %968 = vmatpush1.msra.mxu0 0.0
    %969 = vmatprep.subr.mxu0 0.0
    %970 = vmatpush1.msra.mxu0 0.0
    %971 = vmatprep.subr.mxu0 0.0
    %972 = vmatpush1.msra.mxu0 0.0
    %973 = vmatprep.subr.mxu0 0.0
    %974 = vmatpush1.msra.mxu0 0.0
    %975 = vmatprep.subr.mxu0 0.0
    %976 = vmatpush1.msra.mxu0 0.0
    %977 = vmatprep.subr.mxu0 0.0
    %978 = vmatpush1.msra.mxu0 0.0
    %979 = vmatprep.subr.mxu0 0.0
    %980 = vmatpush1.msra.mxu0 0.0
    %981 = vmatprep.subr.mxu0 0.0
    %982 = vmatpush1.msra.mxu0 0.0
    %983 = vmatprep.subr.mxu0 0.0
    %984 = vmatpush1.msra.mxu0 0.0
    %985 = vmatprep.subr.mxu0 0.0
    %986 = vmatpush1.msra.mxu0 0.0
    %987 = vmatprep.mubr.f32.mxu0 0.0
    %988 = vmatmul.mubr.f32.gmra.mrb[0].mxu0 %v921
    %v989 = vpop.f32.mrb[0].mxu0
    %v990 = vadd.f32 %v216, %v989
    %v991 = vpop.f32.mrb[0].mxu0
    %992 = vdwg.mxu0
    %993 = vmatprep.subr.mxu0 0.0
    %994 = vmatpush1.msra.mxu0 %v90
    %995 = vmatprep.subr.mxu0 0.0
    %996 = vmatpush1.msra.mxu0 %v91
    %997 = vmatprep.subr.mxu0 0.0
    %998 = vmatpush1.msra.mxu0 %v92
    %999 = vmatprep.subr.mxu0 0.0
    %1000 = vmatpush1.msra.mxu0 %v93
    %1001 = vmatprep.subr.mxu0 0.0
    %1002 = vmatpush1.msra.mxu0 0.0
    %1003 = vmatprep.subr.mxu0 0.0
    %1004 = vmatpush1.msra.mxu0 0.0
    %1005 = vmatprep.subr.mxu0 0.0
    %1006 = vmatpush1.msra.mxu0 0.0
    %1007 = vmatprep.subr.mxu0 0.0
    %1008 = vmatpush1.msra.mxu0 0.0
    %1009 = vmatprep.subr.mxu0 0.0
    %1010 = vmatpush1.msra.mxu0 0.0
    %1011 = vmatprep.subr.mxu0 0.0
    %1012 = vmatpush1.msra.mxu0 0.0
    %1013 = vmatprep.subr.mxu0 0.0
    %1014 = vmatpush1.msra.mxu0 0.0
    %1015 = vmatprep.subr.mxu0 0.0
    %1016 = vmatpush1.msra.mxu0 0.0
    %1017 = vmatprep.subr.mxu0 0.0
    %1018 = vmatpush1.msra.mxu0 0.0
    %1019 = vmatprep.subr.mxu0 0.0
    %1020 = vmatpush1.msra.mxu0 0.0
    %1021 = vmatprep.subr.mxu0 0.0
    %1022 = vmatpush1.msra.mxu0 0.0
    %1023 = vmatprep.subr.mxu0 0.0
    %1024 = vmatpush1.msra.mxu0 0.0
    %1025 = vmatprep.subr.mxu0 0.0
    %1026 = vmatpush1.msra.mxu0 0.0
    %1027 = vmatprep.subr.mxu0 0.0
    %1028 = vmatpush1.msra.mxu0 0.0
    %1029 = vmatprep.subr.mxu0 0.0
    %1030 = vmatpush1.msra.mxu0 0.0
    %1031 = vmatprep.subr.mxu0 0.0
    %1032 = vmatpush1.msra.mxu0 0.0
    %1033 = vmatprep.subr.mxu0 0.0
    %1034 = vmatpush1.msra.mxu0 0.0
    %1035 = vmatprep.subr.mxu0 0.0
    %1036 = vmatpush1.msra.mxu0 0.0
    %1037 = vmatprep.subr.mxu0 0.0
    %1038 = vmatpush1.msra.mxu0 0.0
    %1039 = vmatprep.subr.mxu0 0.0
    %1040 = vmatpush1.msra.mxu0 0.0
    %1041 = vmatprep.subr.mxu0 0.0
    %1042 = vmatpush1.msra.mxu0 0.0
    %1043 = vmatprep.subr.mxu0 0.0
    %1044 = vmatpush1.msra.mxu0 0.0
    %1045 = vmatprep.subr.mxu0 0.0
    %1046 = vmatpush1.msra.mxu0 0.0
    %1047 = vmatprep.subr.mxu0 0.0
    %1048 = vmatpush1.msra.mxu0 0.0
    %1049 = vmatprep.subr.mxu0 0.0
    %1050 = vmatpush1.msra.mxu0 0.0
    %1051 = vmatprep.subr.mxu0 0.0
    %1052 = vmatpush1.msra.mxu0 0.0
    %1053 = vmatprep.subr.mxu0 0.0
    %1054 = vmatpush1.msra.mxu0 0.0
    %1055 = vmatprep.subr.mxu0 0.0
    %1056 = vmatpush1.msra.mxu0 0.0
    %1057 = vmatprep.mubr.f32.mxu0 0.0
    %1058 = vmatmul.mubr.f32.gmra.mrb[0].mxu0 %v921
    %v1059 = vpop.f32.mrb[0].mxu0
    %v1060 = vadd.f32 %v107, %v1059
    %v1061 = vpop.f32.mrb[0].mxu0
    %1062 = vdwg.mxu0
    %v1064 = vrot.slane %v1060, 6
    %v1066 = vadd.f32 %v89, %v1064
    %v1067 = vxor.u32 %v1066, 2147483648
    %v1068 = vmul.f32 %v1067, 1.442695
    %v1069 = vpow.pop %v1068
    %v1070 = vadd.f32 %v1069, 1.0
    %v1071 = vrcp.pop %v1070
    %v1072 = vmul.f32 1.0, %v1071
    %1073 = vrot.lane.b32.xlu0 %v1064, 64
    %v1074 = vpop.permute.xlu0 %1073
    %v1076 = vmul.f32 %v1072, %v1074
    %1078 = vrot.lane.b32.xlu0 %v1076, 64
    %v1079 = vpop.permute.xlu0 %1078
    %v1081 = vadd.f32 %v89, %v1079
    %v1082 = vtanh.pop %v1081
    %v1083 = vsub.f32 1.0, %v1072
    %1085 = vrot.lane.b32.xlu0 %v1082, 96
    %v1086 = vpop.permute.xlu0 %1085
    %v1088 = vmul.f32 %v1083, %v1086
    %v1089 = vrot.slane %v917, 6
    %v1091 = vmul.f32 %v1072, %v1089
    %v1092 = vadd.f32 %v1088, %v1091
    %v1094 = vrot.slane %v1092, 2
    %1095 = vrot.lane.b32.xlu0 %v1094, 96
    %v1096 = vpop.permute.xlu0 %1095
    %v1097 = vsel %vm109, %v1096, 0
    %1099 = vmatprep.subr.mxu0 0.0
    %1100 = vmatpush1.msra.mxu0 %v96
    %1101 = vmatprep.subr.mxu0 0.0
    %1102 = vmatpush1.msra.mxu0 %v97
    %1103 = vmatprep.subr.mxu0 0.0
    %1104 = vmatpush1.msra.mxu0 %v98
    %1105 = vmatprep.subr.mxu0 0.0
    %1106 = vmatpush1.msra.mxu0 %v99
    %1107 = vmatprep.subr.mxu0 0.0
    %1108 = vmatpush1.msra.mxu0 0.0
    %1109 = vmatprep.subr.mxu0 0.0
    %1110 = vmatpush1.msra.mxu0 0.0
    %1111 = vmatprep.subr.mxu0 0.0
    %1112 = vmatpush1.msra.mxu0 0.0
    %1113 = vmatprep.subr.mxu0 0.0
    %1114 = vmatpush1.msra.mxu0 0.0
    %1115 = vmatprep.subr.mxu0 0.0
    %1116 = vmatpush1.msra.mxu0 0.0
    %1117 = vmatprep.subr.mxu0 0.0
    %1118 = vmatpush1.msra.mxu0 0.0
    %1119 = vmatprep.subr.mxu0 0.0
    %1120 = vmatpush1.msra.mxu0 0.0
    %1121 = vmatprep.subr.mxu0 0.0
    %1122 = vmatpush1.msra.mxu0 0.0
    %1123 = vmatprep.subr.mxu0 0.0
    %1124 = vmatpush1.msra.mxu0 0.0
    %1125 = vmatprep.subr.mxu0 0.0
    %1126 = vmatpush1.msra.mxu0 0.0
    %1127 = vmatprep.subr.mxu0 0.0
    %1128 = vmatpush1.msra.mxu0 0.0
    %1129 = vmatprep.subr.mxu0 0.0
    %1130 = vmatpush1.msra.mxu0 0.0
    %1131 = vmatprep.subr.mxu0 0.0
    %1132 = vmatpush1.msra.mxu0 0.0
    %1133 = vmatprep.subr.mxu0 0.0
    %1134 = vmatpush1.msra.mxu0 0.0
    %1135 = vmatprep.subr.mxu0 0.0
    %1136 = vmatpush1.msra.mxu0 0.0
    %1137 = vmatprep.subr.mxu0 0.0
    %1138 = vmatpush1.msra.mxu0 0.0
    %1139 = vmatprep.subr.mxu0 0.0
    %1140 = vmatpush1.msra.mxu0 0.0
    %1141 = vmatprep.subr.mxu0 0.0
    %1142 = vmatpush1.msra.mxu0 0.0
    %1143 = vmatprep.subr.mxu0 0.0
    %1144 = vmatpush1.msra.mxu0 0.0
    %1145 = vmatprep.subr.mxu0 0.0
    %1146 = vmatpush1.msra.mxu0 0.0
    %1147 = vmatprep.subr.mxu0 0.0
    %1148 = vmatpush1.msra.mxu0 0.0
    %1149 = vmatprep.subr.mxu0 0.0
    %1150 = vmatpush1.msra.mxu0 0.0
    %1151 = vmatprep.subr.mxu0 0.0
    %1152 = vmatpush1.msra.mxu0 0.0
    %1153 = vmatprep.subr.mxu0 0.0
    %1154 = vmatpush1.msra.mxu0 0.0
    %1155 = vmatprep.subr.mxu0 0.0
    %1156 = vmatpush1.msra.mxu0 0.0
    %1157 = vmatprep.subr.mxu0 0.0
    %1158 = vmatpush1.msra.mxu0 0.0
    %1159 = vmatprep.subr.mxu0 0.0
    %1160 = vmatpush1.msra.mxu0 0.0
    %1161 = vmatprep.subr.mxu0 0.0
    %1162 = vmatpush1.msra.mxu0 0.0
    %1163 = vmatprep.mubr.f32.mxu0 0.0
    %1164 = vmatmul.mubr.f32.gmra.mrb[0].mxu0 %v1097
    %v1165 = vpop.f32.mrb[0].mxu0
    %v1166 = vadd.f32 %v216, %v1165
    %v1167 = vpop.f32.mrb[0].mxu0
    %1168 = vdwg.mxu0
    %1169 = vmatprep.subr.mxu0 0.0
    %1170 = vmatpush1.msra.mxu0 %v90
    %1171 = vmatprep.subr.mxu0 0.0
    %1172 = vmatpush1.msra.mxu0 %v91
    %1173 = vmatprep.subr.mxu0 0.0
    %1174 = vmatpush1.msra.mxu0 %v92
    %1175 = vmatprep.subr.mxu0 0.0
    %1176 = vmatpush1.msra.mxu0 %v93
    %1177 = vmatprep.subr.mxu0 0.0
    %1178 = vmatpush1.msra.mxu0 0.0
    %1179 = vmatprep.subr.mxu0 0.0
    %1180 = vmatpush1.msra.mxu0 0.0
    %1181 = vmatprep.subr.mxu0 0.0
    %1182 = vmatpush1.msra.mxu0 0.0
    %1183 = vmatprep.subr.mxu0 0.0
    %1184 = vmatpush1.msra.mxu0 0.0
    %1185 = vmatprep.subr.mxu0 0.0
    %1186 = vmatpush1.msra.mxu0 0.0
    %1187 = vmatprep.subr.mxu0 0.0
    %1188 = vmatpush1.msra.mxu0 0.0
    %1189 = vmatprep.subr.mxu0 0.0
    %1190 = vmatpush1.msra.mxu0 0.0
    %1191 = vmatprep.subr.mxu0 0.0
    %1192 = vmatpush1.msra.mxu0 0.0
    %1193 = vmatprep.subr.mxu0 0.0
    %1194 = vmatpush1.msra.mxu0 0.0
    %1195 = vmatprep.subr.mxu0 0.0
    %1196 = vmatpush1.msra.mxu0 0.0
    %1197 = vmatprep.subr.mxu0 0.0
    %1198 = vmatpush1.msra.mxu0 0.0
    %1199 = vmatprep.subr.mxu0 0.0
    %1200 = vmatpush1.msra.mxu0 0.0
    %1201 = vmatprep.subr.mxu0 0.0
    %1202 = vmatpush1.msra.mxu0 0.0
    %1203 = vmatprep.subr.mxu0 0.0
    %1204 = vmatpush1.msra.mxu0 0.0
    %1205 = vmatprep.subr.mxu0 0.0
    %1206 = vmatpush1.msra.mxu0 0.0
    %1207 = vmatprep.subr.mxu0 0.0
    %1208 = vmatpush1.msra.mxu0 0.0
    %1209 = vmatprep.subr.mxu0 0.0
    %1210 = vmatpush1.msra.mxu0 0.0
    %1211 = vmatprep.subr.mxu0 0.0
    %1212 = vmatpush1.msra.mxu0 0.0
    %1213 = vmatprep.subr.mxu0 0.0
    %1214 = vmatpush1.msra.mxu0 0.0
    %1215 = vmatprep.subr.mxu0 0.0
    %1216 = vmatpush1.msra.mxu0 0.0
    %1217 = vmatprep.subr.mxu0 0.0
    %1218 = vmatpush1.msra.mxu0 0.0
    %1219 = vmatprep.subr.mxu0 0.0
    %1220 = vmatpush1.msra.mxu0 0.0
    %1221 = vmatprep.subr.mxu0 0.0
    %1222 = vmatpush1.msra.mxu0 0.0
    %1223 = vmatprep.subr.mxu0 0.0
    %1224 = vmatpush1.msra.mxu0 0.0
    %1225 = vmatprep.subr.mxu0 0.0
    %1226 = vmatpush1.msra.mxu0 0.0
    %1227 = vmatprep.subr.mxu0 0.0
    %1228 = vmatpush1.msra.mxu0 0.0
    %1229 = vmatprep.subr.mxu0 0.0
    %1230 = vmatpush1.msra.mxu0 0.0
    %1231 = vmatprep.subr.mxu0 0.0
    %1232 = vmatpush1.msra.mxu0 0.0
    %1233 = vmatprep.mubr.f32.mxu0 0.0
    %1234 = vmatmul.mubr.f32.gmra.mrb[0].mxu0 %v1097
    %v1235 = vpop.f32.mrb[0].mxu0
    %v1236 = vadd.f32 %v107, %v1235
    %v1237 = vpop.f32.mrb[0].mxu0
    %1238 = vdwg.mxu0
    %v1240 = vrot.slane %v1236, 4
    %v1242 = vadd.f32 %v89, %v1240
    %v1243 = vxor.u32 %v1242, 2147483648
    %v1244 = vmul.f32 %v1243, 1.442695
    %v1245 = vpow.pop %v1244
    %v1246 = vadd.f32 %v1245, 1.0
    %v1247 = vrcp.pop %v1246
    %v1248 = vmul.f32 1.0, %v1247
    %1249 = vrot.lane.b32.xlu0 %v1240, 64
    %v1250 = vpop.permute.xlu0 %1249
    %v1252 = vmul.f32 %v1248, %v1250
    %1254 = vrot.lane.b32.xlu0 %v1252, 64
    %v1255 = vpop.permute.xlu0 %1254
    %v1257 = vadd.f32 %v89, %v1255
    %v1258 = vtanh.pop %v1257
    %v1259 = vsub.f32 1.0, %v1248
    %1261 = vrot.lane.b32.xlu0 %v1258, 96
    %v1262 = vpop.permute.xlu0 %1261
    %v1264 = vmul.f32 %v1259, %v1262
    %v1265 = vrot.slane %v1092, 6
    %v1267 = vmul.f32 %v1248, %v1265
    %v1268 = vadd.f32 %v1264, %v1267
    %v1270 = vrot.slane %v1268, 4
    %1271 = vrot.lane.b32.xlu0 %v1270, 96
    %v1272 = vpop.permute.xlu0 %1271
    %v1273 = vsel %vm109, %v1272, 0
    %1275 = vmatprep.subr.mxu0 0.0
    %1276 = vmatpush1.msra.mxu0 %v96
    %1277 = vmatprep.subr.mxu0 0.0
    %1278 = vmatpush1.msra.mxu0 %v97
    %1279 = vmatprep.subr.mxu0 0.0
    %1280 = vmatpush1.msra.mxu0 %v98
    %1281 = vmatprep.subr.mxu0 0.0
    %1282 = vmatpush1.msra.mxu0 %v99
    %1283 = vmatprep.subr.mxu0 0.0
    %1284 = vmatpush1.msra.mxu0 0.0
    %1285 = vmatprep.subr.mxu0 0.0
    %1286 = vmatpush1.msra.mxu0 0.0
    %1287 = vmatprep.subr.mxu0 0.0
    %1288 = vmatpush1.msra.mxu0 0.0
    %1289 = vmatprep.subr.mxu0 0.0
    %1290 = vmatpush1.msra.mxu0 0.0
    %1291 = vmatprep.subr.mxu0 0.0
    %1292 = vmatpush1.msra.mxu0 0.0
    %1293 = vmatprep.subr.mxu0 0.0
    %1294 = vmatpush1.msra.mxu0 0.0
    %1295 = vmatprep.subr.mxu0 0.0
    %1296 = vmatpush1.msra.mxu0 0.0
    %1297 = vmatprep.subr.mxu0 0.0
    %1298 = vmatpush1.msra.mxu0 0.0
    %1299 = vmatprep.subr.mxu0 0.0
    %1300 = vmatpush1.msra.mxu0 0.0
    %1301 = vmatprep.subr.mxu0 0.0
    %1302 = vmatpush1.msra.mxu0 0.0
    %1303 = vmatprep.subr.mxu0 0.0
    %1304 = vmatpush1.msra.mxu0 0.0
    %1305 = vmatprep.subr.mxu0 0.0
    %1306 = vmatpush1.msra.mxu0 0.0
    %1307 = vmatprep.subr.mxu0 0.0
    %1308 = vmatpush1.msra.mxu0 0.0
    %1309 = vmatprep.subr.mxu0 0.0
    %1310 = vmatpush1.msra.mxu0 0.0
    %1311 = vmatprep.subr.mxu0 0.0
    %1312 = vmatpush1.msra.mxu0 0.0
    %1313 = vmatprep.subr.mxu0 0.0
    %1314 = vmatpush1.msra.mxu0 0.0
    %1315 = vmatprep.subr.mxu0 0.0
    %1316 = vmatpush1.msra.mxu0 0.0
    %1317 = vmatprep.subr.mxu0 0.0
    %1318 = vmatpush1.msra.mxu0 0.0
    %1319 = vmatprep.subr.mxu0 0.0
    %1320 = vmatpush1.msra.mxu0 0.0
    %1321 = vmatprep.subr.mxu0 0.0
    %1322 = vmatpush1.msra.mxu0 0.0
    %1323 = vmatprep.subr.mxu0 0.0
    %1324 = vmatpush1.msra.mxu0 0.0
    %1325 = vmatprep.subr.mxu0 0.0
    %1326 = vmatpush1.msra.mxu0 0.0
    %1327 = vmatprep.subr.mxu0 0.0
    %1328 = vmatpush1.msra.mxu0 0.0
    %1329 = vmatprep.subr.mxu0 0.0
    %1330 = vmatpush1.msra.mxu0 0.0
    %1331 = vmatprep.subr.mxu0 0.0
    %1332 = vmatpush1.msra.mxu0 0.0
    %1333 = vmatprep.subr.mxu0 0.0
    %1334 = vmatpush1.msra.mxu0 0.0
    %1335 = vmatprep.subr.mxu0 0.0
    %1336 = vmatpush1.msra.mxu0 0.0
    %1337 = vmatprep.subr.mxu0 0.0
    %1338 = vmatpush1.msra.mxu0 0.0
    %1339 = vmatprep.mubr.f32.mxu0 0.0
    %1340 = vmatmul.mubr.f32.gmra.mrb[0].mxu0 %v1273
    %v1341 = vpop.f32.mrb[0].mxu0
    %v1342 = vadd.f32 %v216, %v1341
    %v1343 = vpop.f32.mrb[0].mxu0
    %1344 = vdwg.mxu0
    %1345 = vmatprep.subr.mxu0 0.0
    %1346 = vmatpush1.msra.mxu0 %v90
    %1347 = vmatprep.subr.mxu0 0.0
    %1348 = vmatpush1.msra.mxu0 %v91
    %1349 = vmatprep.subr.mxu0 0.0
    %1350 = vmatpush1.msra.mxu0 %v92
    %1351 = vmatprep.subr.mxu0 0.0
    %1352 = vmatpush1.msra.mxu0 %v93
    %1353 = vmatprep.subr.mxu0 0.0
    %1354 = vmatpush1.msra.mxu0 0.0
    %1355 = vmatprep.subr.mxu0 0.0
    %1356 = vmatpush1.msra.mxu0 0.0
    %1357 = vmatprep.subr.mxu0 0.0
    %1358 = vmatpush1.msra.mxu0 0.0
    %1359 = vmatprep.subr.mxu0 0.0
    %1360 = vmatpush1.msra.mxu0 0.0
    %1361 = vmatprep.subr.mxu0 0.0
    %1362 = vmatpush1.msra.mxu0 0.0
    %1363 = vmatprep.subr.mxu0 0.0
    %1364 = vmatpush1.msra.mxu0 0.0
    %1365 = vmatprep.subr.mxu0 0.0
    %1366 = vmatpush1.msra.mxu0 0.0
    %1367 = vmatprep.subr.mxu0 0.0
    %1368 = vmatpush1.msra.mxu0 0.0
    %1369 = vmatprep.subr.mxu0 0.0
    %1370 = vmatpush1.msra.mxu0 0.0
    %1371 = vmatprep.subr.mxu0 0.0
    %1372 = vmatpush1.msra.mxu0 0.0
    %1373 = vmatprep.subr.mxu0 0.0
    %1374 = vmatpush1.msra.mxu0 0.0
    %1375 = vmatprep.subr.mxu0 0.0
    %1376 = vmatpush1.msra.mxu0 0.0
    %1377 = vmatprep.subr.mxu0 0.0
    %1378 = vmatpush1.msra.mxu0 0.0
    %1379 = vmatprep.subr.mxu0 0.0
    %1380 = vmatpush1.msra.mxu0 0.0
    %1381 = vmatprep.subr.mxu0 0.0
    %1382 = vmatpush1.msra.mxu0 0.0
    %1383 = vmatprep.subr.mxu0 0.0
    %1384 = vmatpush1.msra.mxu0 0.0
    %1385 = vmatprep.subr.mxu0 0.0
    %1386 = vmatpush1.msra.mxu0 0.0
    %1387 = vmatprep.subr.mxu0 0.0
    %1388 = vmatpush1.msra.mxu0 0.0
    %1389 = vmatprep.subr.mxu0 0.0
    %1390 = vmatpush1.msra.mxu0 0.0
    %1391 = vmatprep.subr.mxu0 0.0
    %1392 = vmatpush1.msra.mxu0 0.0
    %1393 = vmatprep.subr.mxu0 0.0
    %1394 = vmatpush1.msra.mxu0 0.0
    %1395 = vmatprep.subr.mxu0 0.0
    %1396 = vmatpush1.msra.mxu0 0.0
    %1397 = vmatprep.subr.mxu0 0.0
    %1398 = vmatpush1.msra.mxu0 0.0
    %1399 = vmatprep.subr.mxu0 0.0
    %1400 = vmatpush1.msra.mxu0 0.0
    %1401 = vmatprep.subr.mxu0 0.0
    %1402 = vmatpush1.msra.mxu0 0.0
    %1403 = vmatprep.subr.mxu0 0.0
    %1404 = vmatpush1.msra.mxu0 0.0
    %1405 = vmatprep.subr.mxu0 0.0
    %1406 = vmatpush1.msra.mxu0 0.0
    %1407 = vmatprep.subr.mxu0 0.0
    %1408 = vmatpush1.msra.mxu0 0.0
    %1409 = vmatprep.mubr.f32.mxu0 0.0
    %1410 = vmatmul.mubr.f32.gmra.mrb[0].mxu0 %v1273
    %v1411 = vpop.f32.mrb[0].mxu0
    %v1412 = vadd.f32 %v107, %v1411
    %v1413 = vpop.f32.mrb[0].mxu0
    %1414 = vdwg.mxu0
    %v1416 = vrot.slane %v1412, 2
    %v1418 = vadd.f32 %v89, %v1416
    %v1419 = vxor.u32 %v1418, 2147483648
    %v1420 = vmul.f32 %v1419, 1.442695
    %v1421 = vpow.pop %v1420
    %v1422 = vadd.f32 %v1421, 1.0
    %v1423 = vrcp.pop %v1422
    %v1424 = vmul.f32 1.0, %v1423
    %1425 = vrot.lane.b32.xlu0 %v1416, 64
    %v1426 = vpop.permute.xlu0 %1425
    %v1428 = vmul.f32 %v1424, %v1426
    %1430 = vrot.lane.b32.xlu0 %v1428, 64
    %v1431 = vpop.permute.xlu0 %1430
    %v1433 = vadd.f32 %v89, %v1431
    %v1434 = vtanh.pop %v1433
    %v1435 = vsub.f32 1.0, %v1424
    %1437 = vrot.lane.b32.xlu0 %v1434, 96
    %v1438 = vpop.permute.xlu0 %1437
    %v1440 = vmul.f32 %v1435, %v1438
    %v1441 = vrot.slane %v1268, 6
    %v1443 = vmul.f32 %v1424, %v1441
    %v1444 = vadd.f32 %v1440, %v1443
    %v1446 = vrot.slane %v1444, 6
    %1447 = vrot.lane.b32.xlu0 %v1446, 96
    %v1448 = vpop.permute.xlu0 %1447
    %v1449 = vsel %vm109, %v1448, 0
    %1451 = vmatprep.subr.mxu0 0.0
    %1452 = vmatpush1.msra.mxu0 %v96
    %1453 = vmatprep.subr.mxu0 0.0
    %1454 = vmatpush1.msra.mxu0 %v97
    %1455 = vmatprep.subr.mxu0 0.0
    %1456 = vmatpush1.msra.mxu0 %v98
    %1457 = vmatprep.subr.mxu0 0.0
    %1458 = vmatpush1.msra.mxu0 %v99
    %1459 = vmatprep.subr.mxu0 0.0
    %1460 = vmatpush1.msra.mxu0 0.0
    %1461 = vmatprep.subr.mxu0 0.0
    %1462 = vmatpush1.msra.mxu0 0.0
    %1463 = vmatprep.subr.mxu0 0.0
    %1464 = vmatpush1.msra.mxu0 0.0
    %1465 = vmatprep.subr.mxu0 0.0
    %1466 = vmatpush1.msra.mxu0 0.0
    %1467 = vmatprep.subr.mxu0 0.0
    %1468 = vmatpush1.msra.mxu0 0.0
    %1469 = vmatprep.subr.mxu0 0.0
    %1470 = vmatpush1.msra.mxu0 0.0
    %1471 = vmatprep.subr.mxu0 0.0
    %1472 = vmatpush1.msra.mxu0 0.0
    %1473 = vmatprep.subr.mxu0 0.0
    %1474 = vmatpush1.msra.mxu0 0.0
    %1475 = vmatprep.subr.mxu0 0.0
    %1476 = vmatpush1.msra.mxu0 0.0
    %1477 = vmatprep.subr.mxu0 0.0
    %1478 = vmatpush1.msra.mxu0 0.0
    %1479 = vmatprep.subr.mxu0 0.0
    %1480 = vmatpush1.msra.mxu0 0.0
    %1481 = vmatprep.subr.mxu0 0.0
    %1482 = vmatpush1.msra.mxu0 0.0
    %1483 = vmatprep.subr.mxu0 0.0
    %1484 = vmatpush1.msra.mxu0 0.0
    %1485 = vmatprep.subr.mxu0 0.0
    %1486 = vmatpush1.msra.mxu0 0.0
    %1487 = vmatprep.subr.mxu0 0.0
    %1488 = vmatpush1.msra.mxu0 0.0
    %1489 = vmatprep.subr.mxu0 0.0
    %1490 = vmatpush1.msra.mxu0 0.0
    %1491 = vmatprep.subr.mxu0 0.0
    %1492 = vmatpush1.msra.mxu0 0.0
    %1493 = vmatprep.subr.mxu0 0.0
    %1494 = vmatpush1.msra.mxu0 0.0
    %1495 = vmatprep.subr.mxu0 0.0
    %1496 = vmatpush1.msra.mxu0 0.0
    %1497 = vmatprep.subr.mxu0 0.0
    %1498 = vmatpush1.msra.mxu0 0.0
    %1499 = vmatprep.subr.mxu0 0.0
    %1500 = vmatpush1.msra.mxu0 0.0
    %1501 = vmatprep.subr.mxu0 0.0
    %1502 = vmatpush1.msra.mxu0 0.0
    %1503 = vmatprep.subr.mxu0 0.0
    %1504 = vmatpush1.msra.mxu0 0.0
    %1505 = vmatprep.subr.mxu0 0.0
    %1506 = vmatpush1.msra.mxu0 0.0
    %1507 = vmatprep.subr.mxu0 0.0
    %1508 = vmatpush1.msra.mxu0 0.0
    %1509 = vmatprep.subr.mxu0 0.0
    %1510 = vmatpush1.msra.mxu0 0.0
    %1511 = vmatprep.subr.mxu0 0.0
    %1512 = vmatpush1.msra.mxu0 0.0
    %1513 = vmatprep.subr.mxu0 0.0
    %1514 = vmatpush1.msra.mxu0 0.0
    %1515 = vmatprep.mubr.f32.mxu0 0.0
    %1516 = vmatmul.mubr.f32.gmra.mrb[0].mxu0 %v1449
    %v1517 = vpop.f32.mrb[0].mxu0
    %v1518 = vadd.f32 %v216, %v1517
    %v1519 = vpop.f32.mrb[0].mxu0
    %1520 = vdwg.mxu0
    %1521 = vrot.lane.b32.xlu0 %v1444, 96
    %v1522 = vpop.permute.xlu0 %1521
    %vm1524 = vcmask 261126
    %1525 = vst.msk [vmem:[#allocation8 - $0x6] sm:$0xc0] %vm1524, %v1522
    %s1526 = scalar_lea.vmem [#allocation6], 32
    %v1527 = vld [vmem:[%s1526] sm:$0xff]
    %v1528 = vld [vmem:[%s1526 + $0x8] sm:$0xff]
    %v1529 = vld [vmem:[%s1526 + $0x10] sm:$0xff]
    %v1530 = vld [vmem:[%s1526 + $0x18] sm:$0xff]
    %s1531 = scalar_lea.vmem %s4, 1
    %v1532 = vld [vmem:[%s1531] sm:$0x1]
    %s1533 = scalar_lea.vmem %s5, 2
    %v1534 = vld [vmem:[%s1533] sm:$0x3]
    %v1536 = vlaneseq
    %v1537 = vshrl.u32 %v1536, 7
    %v1538 = vsub.s32 0, %v1537
    %v1539 = vrot.slane %v1532, %v1538
    %v1542 = vsel %vm109, %v1534, 0
    %1544 = vmatprep.subr.mxu0 0.0
    %1545 = vmatpush1.msra.mxu0 %v1527
    %1546 = vmatprep.subr.mxu0 0.0
    %1547 = vmatpush1.msra.mxu0 %v1528
    %1548 = vmatprep.subr.mxu0 0.0
    %1549 = vmatpush1.msra.mxu0 %v1529
    %1550 = vmatprep.subr.mxu0 0.0
    %1551 = vmatpush1.msra.mxu0 %v1530
    %1552 = vmatprep.subr.mxu0 0.0
    %1553 = vmatpush1.msra.mxu0 0.0
    %1554 = vmatprep.subr.mxu0 0.0
    %1555 = vmatpush1.msra.mxu0 0.0
    %1556 = vmatprep.subr.mxu0 0.0
    %1557 = vmatpush1.msra.mxu0 0.0
    %1558 = vmatprep.subr.mxu0 0.0
    %1559 = vmatpush1.msra.mxu0 0.0
    %1560 = vmatprep.subr.mxu0 0.0
    %1561 = vmatpush1.msra.mxu0 0.0
    %1562 = vmatprep.subr.mxu0 0.0
    %1563 = vmatpush1.msra.mxu0 0.0
    %1564 = vmatprep.subr.mxu0 0.0
    %1565 = vmatpush1.msra.mxu0 0.0
    %1566 = vmatprep.subr.mxu0 0.0
    %1567 = vmatpush1.msra.mxu0 0.0
    %1568 = vmatprep.subr.mxu0 0.0
    %1569 = vmatpush1.msra.mxu0 0.0
    %1570 = vmatprep.subr.mxu0 0.0
    %1571 = vmatpush1.msra.mxu0 0.0
    %1572 = vmatprep.subr.mxu0 0.0
    %1573 = vmatpush1.msra.mxu0 0.0
    %1574 = vmatprep.subr.mxu0 0.0
    %1575 = vmatpush1.msra.mxu0 0.0
    %1576 = vmatprep.subr.mxu0 0.0
    %1577 = vmatpush1.msra.mxu0 0.0
    %1578 = vmatprep.subr.mxu0 0.0
    %1579 = vmatpush1.msra.mxu0 0.0
    %1580 = vmatprep.subr.mxu0 0.0
    %1581 = vmatpush1.msra.mxu0 0.0
    %1582 = vmatprep.subr.mxu0 0.0
    %1583 = vmatpush1.msra.mxu0 0.0
    %1584 = vmatprep.subr.mxu0 0.0
    %1585 = vmatpush1.msra.mxu0 0.0
    %1586 = vmatprep.subr.mxu0 0.0
    %1587 = vmatpush1.msra.mxu0 0.0
    %1588 = vmatprep.subr.mxu0 0.0
    %1589 = vmatpush1.msra.mxu0 0.0
    %1590 = vmatprep.subr.mxu0 0.0
    %1591 = vmatpush1.msra.mxu0 0.0
    %1592 = vmatprep.subr.mxu0 0.0
    %1593 = vmatpush1.msra.mxu0 0.0
    %1594 = vmatprep.subr.mxu0 0.0
    %1595 = vmatpush1.msra.mxu0 0.0
    %1596 = vmatprep.subr.mxu0 0.0
    %1597 = vmatpush1.msra.mxu0 0.0
    %1598 = vmatprep.subr.mxu0 0.0
    %1599 = vmatpush1.msra.mxu0 0.0
    %1600 = vmatprep.subr.mxu0 0.0
    %1601 = vmatpush1.msra.mxu0 0.0
    %1602 = vmatprep.subr.mxu0 0.0
    %1603 = vmatpush1.msra.mxu0 0.0
    %1604 = vmatprep.subr.mxu0 0.0
    %1605 = vmatpush1.msra.mxu0 0.0
    %1606 = vmatprep.subr.mxu0 0.0
    %1607 = vmatpush1.msra.mxu0 0.0
    %1608 = vmatprep.mubr.f32.mxu0 0.0
    %1609 = vmatmul.mubr.f32.gmra.mrb[0].mxu0 %v1542
    %v1610 = vpop.f32.mrb[0].mxu0
    %v1611 = vadd.f32 %v1539, %v1610
    %v1612 = vpop.f32.mrb[0].mxu0
    %1613 = vdwg.mxu0
    %v1614 = vadd.f32 %v290, %v1611
    %v1615 = vxor.u32 %v1614, 2147483648
    %v1616 = vmul.f32 %v1615, 1.442695
    %v1617 = vpow.pop %v1616
    %v1618 = vadd.f32 %v1617, 1.0
    %v1619 = vrcp.pop %v1618
    %v1620 = vmul.f32 1.0, %v1619
    %1622 = vrot.lane.b32.xlu0 %v1611, 64
    %v1623 = vpop.permute.xlu0 %1622
    %v1625 = vmul.f32 %v1620, %v1623
    %1627 = vrot.lane.b32.xlu0 %v1625, 64
    %v1628 = vpop.permute.xlu0 %1627
    %v1630 = vadd.f32 %v290, %v1628
    %v1631 = vtanh.pop %v1630
    %v1632 = vsub.f32 1.0, %v1620
    %1634 = vrot.lane.b32.xlu0 %v1631, 96
    %v1635 = vpop.permute.xlu0 %1634
    %v1637 = vmul.f32 %v1632, %v1635
    %1638 = vrot.lane.b32.xlu0 %v1534, 32
    %v1639 = vpop.permute.xlu0 %1638
    %v1641 = vmul.f32 %v1620, %v1639
    %v1642 = vadd.f32 %v1637, %v1641
    %1644 = vrot.lane.b32.xlu0 %v1642, 96
    %v1645 = vpop.permute.xlu0 %1644
    %v1646 = vsel %vm109, %v1645, 0
    %1648 = vmatprep.subr.mxu0 0.0
    %1649 = vmatpush1.msra.mxu0 %v1527
    %1650 = vmatprep.subr.mxu0 0.0
    %1651 = vmatpush1.msra.mxu0 %v1528
    %1652 = vmatprep.subr.mxu0 0.0
    %1653 = vmatpush1.msra.mxu0 %v1529
    %1654 = vmatprep.subr.mxu0 0.0
    %1655 = vmatpush1.msra.mxu0 %v1530
    %1656 = vmatprep.subr.mxu0 0.0
    %1657 = vmatpush1.msra.mxu0 0.0
    %1658 = vmatprep.subr.mxu0 0.0
    %1659 = vmatpush1.msra.mxu0 0.0
    %1660 = vmatprep.subr.mxu0 0.0
    %1661 = vmatpush1.msra.mxu0 0.0
    %1662 = vmatprep.subr.mxu0 0.0
    %1663 = vmatpush1.msra.mxu0 0.0
    %1664 = vmatprep.subr.mxu0 0.0
    %1665 = vmatpush1.msra.mxu0 0.0
    %1666 = vmatprep.subr.mxu0 0.0
    %1667 = vmatpush1.msra.mxu0 0.0
    %1668 = vmatprep.subr.mxu0 0.0
    %1669 = vmatpush1.msra.mxu0 0.0
    %1670 = vmatprep.subr.mxu0 0.0
    %1671 = vmatpush1.msra.mxu0 0.0
    %1672 = vmatprep.subr.mxu0 0.0
    %1673 = vmatpush1.msra.mxu0 0.0
    %1674 = vmatprep.subr.mxu0 0.0
    %1675 = vmatpush1.msra.mxu0 0.0
    %1676 = vmatprep.subr.mxu0 0.0
    %1677 = vmatpush1.msra.mxu0 0.0
    %1678 = vmatprep.subr.mxu0 0.0
    %1679 = vmatpush1.msra.mxu0 0.0
    %1680 = vmatprep.subr.mxu0 0.0
    %1681 = vmatpush1.msra.mxu0 0.0
    %1682 = vmatprep.subr.mxu0 0.0
    %1683 = vmatpush1.msra.mxu0 0.0
    %1684 = vmatprep.subr.mxu0 0.0
    %1685 = vmatpush1.msra.mxu0 0.0
    %1686 = vmatprep.subr.mxu0 0.0
    %1687 = vmatpush1.msra.mxu0 0.0
    %1688 = vmatprep.subr.mxu0 0.0
    %1689 = vmatpush1.msra.mxu0 0.0
    %1690 = vmatprep.subr.mxu0 0.0
    %1691 = vmatpush1.msra.mxu0 0.0
    %1692 = vmatprep.subr.mxu0 0.0
    %1693 = vmatpush1.msra.mxu0 0.0
    %1694 = vmatprep.subr.mxu0 0.0
    %1695 = vmatpush1.msra.mxu0 0.0
    %1696 = vmatprep.subr.mxu0 0.0
    %1697 = vmatpush1.msra.mxu0 0.0
    %1698 = vmatprep.subr.mxu0 0.0
    %1699 = vmatpush1.msra.mxu0 0.0
    %1700 = vmatprep.subr.mxu0 0.0
    %1701 = vmatpush1.msra.mxu0 0.0
    %1702 = vmatprep.subr.mxu0 0.0
    %1703 = vmatpush1.msra.mxu0 0.0
    %1704 = vmatprep.subr.mxu0 0.0
    %1705 = vmatpush1.msra.mxu0 0.0
    %1706 = vmatprep.subr.mxu0 0.0
    %1707 = vmatpush1.msra.mxu0 0.0
    %1708 = vmatprep.subr.mxu0 0.0
    %1709 = vmatpush1.msra.mxu0 0.0
    %1710 = vmatprep.subr.mxu0 0.0
    %1711 = vmatpush1.msra.mxu0 0.0
    %1712 = vmatprep.mubr.f32.mxu0 0.0
    %1713 = vmatmul.mubr.f32.gmra.mrb[0].mxu0 %v1646
    %v1714 = vpop.f32.mrb[0].mxu0
    %v1715 = vadd.f32 %v1539, %v1714
    %v1716 = vpop.f32.mrb[0].mxu0
    %1717 = vdwg.mxu0
    %v1718 = vadd.f32 %v466, %v1715
    %v1719 = vxor.u32 %v1718, 2147483648
    %v1720 = vmul.f32 %v1719, 1.442695
    %v1721 = vpow.pop %v1720
    %v1722 = vadd.f32 %v1721, 1.0
    %v1723 = vrcp.pop %v1722
    %v1724 = vmul.f32 1.0, %v1723
    %1726 = vrot.lane.b32.xlu0 %v1715, 64
    %v1727 = vpop.permute.xlu0 %1726
    %v1729 = vmul.f32 %v1724, %v1727
    %1731 = vrot.lane.b32.xlu0 %v1729, 64
    %v1732 = vpop.permute.xlu0 %1731
    %v1734 = vadd.f32 %v466, %v1732
    %v1735 = vtanh.pop %v1734
    %v1736 = vsub.f32 1.0, %v1724
    %1738 = vrot.lane.b32.xlu0 %v1735, 96
    %v1739 = vpop.permute.xlu0 %1738
    %v1741 = vmul.f32 %v1736, %v1739
    %v1742 = vmul.f32 %v1724, %v1642
    %v1743 = vadd.f32 %v1741, %v1742
    %1745 = vrot.lane.b32.xlu0 %v1743, 96
    %v1746 = vpop.permute.xlu0 %1745
    %v1747 = vsel %vm109, %v1746, 0
    %1749 = vmatprep.subr.mxu0 0.0
    %1750 = vmatpush1.msra.mxu0 %v1527
    %1751 = vmatprep.subr.mxu0 0.0
    %1752 = vmatpush1.msra.mxu0 %v1528
    %1753 = vmatprep.subr.mxu0 0.0
    %1754 = vmatpush1.msra.mxu0 %v1529
    %1755 = vmatprep.subr.mxu0 0.0
    %1756 = vmatpush1.msra.mxu0 %v1530
    %1757 = vmatprep.subr.mxu0 0.0
    %1758 = vmatpush1.msra.mxu0 0.0
    %1759 = vmatprep.subr.mxu0 0.0
    %1760 = vmatpush1.msra.mxu0 0.0
    %1761 = vmatprep.subr.mxu0 0.0
    %1762 = vmatpush1.msra.mxu0 0.0
    %1763 = vmatprep.subr.mxu0 0.0
    %1764 = vmatpush1.msra.mxu0 0.0
    %1765 = vmatprep.subr.mxu0 0.0
    %1766 = vmatpush1.msra.mxu0 0.0
    %1767 = vmatprep.subr.mxu0 0.0
    %1768 = vmatpush1.msra.mxu0 0.0
    %1769 = vmatprep.subr.mxu0 0.0
    %1770 = vmatpush1.msra.mxu0 0.0
    %1771 = vmatprep.subr.mxu0 0.0
    %1772 = vmatpush1.msra.mxu0 0.0
    %1773 = vmatprep.subr.mxu0 0.0
    %1774 = vmatpush1.msra.mxu0 0.0
    %1775 = vmatprep.subr.mxu0 0.0
    %1776 = vmatpush1.msra.mxu0 0.0
    %1777 = vmatprep.subr.mxu0 0.0
    %1778 = vmatpush1.msra.mxu0 0.0
    %1779 = vmatprep.subr.mxu0 0.0
    %1780 = vmatpush1.msra.mxu0 0.0
    %1781 = vmatprep.subr.mxu0 0.0
    %1782 = vmatpush1.msra.mxu0 0.0
    %1783 = vmatprep.subr.mxu0 0.0
    %1784 = vmatpush1.msra.mxu0 0.0
    %1785 = vmatprep.subr.mxu0 0.0
    %1786 = vmatpush1.msra.mxu0 0.0
    %1787 = vmatprep.subr.mxu0 0.0
    %1788 = vmatpush1.msra.mxu0 0.0
    %1789 = vmatprep.subr.mxu0 0.0
    %1790 = vmatpush1.msra.mxu0 0.0
    %1791 = vmatprep.subr.mxu0 0.0
    %1792 = vmatpush1.msra.mxu0 0.0
    %1793 = vmatprep.subr.mxu0 0.0
    %1794 = vmatpush1.msra.mxu0 0.0
    %1795 = vmatprep.subr.mxu0 0.0
    %1796 = vmatpush1.msra.mxu0 0.0
    %1797 = vmatprep.subr.mxu0 0.0
    %1798 = vmatpush1.msra.mxu0 0.0
    %1799 = vmatprep.subr.mxu0 0.0
    %1800 = vmatpush1.msra.mxu0 0.0
    %1801 = vmatprep.subr.mxu0 0.0
    %1802 = vmatpush1.msra.mxu0 0.0
    %1803 = vmatprep.subr.mxu0 0.0
    %1804 = vmatpush1.msra.mxu0 0.0
    %1805 = vmatprep.subr.mxu0 0.0
    %1806 = vmatpush1.msra.mxu0 0.0
    %1807 = vmatprep.subr.mxu0 0.0
    %1808 = vmatpush1.msra.mxu0 0.0
    %1809 = vmatprep.subr.mxu0 0.0
    %1810 = vmatpush1.msra.mxu0 0.0
    %1811 = vmatprep.subr.mxu0 0.0
    %1812 = vmatpush1.msra.mxu0 0.0
    %1813 = vmatprep.mubr.f32.mxu0 0.0
    %1814 = vmatmul.mubr.f32.gmra.mrb[0].mxu0 %v1747
    %v1815 = vpop.f32.mrb[0].mxu0
    %v1816 = vadd.f32 %v1539, %v1815
    %v1817 = vpop.f32.mrb[0].mxu0
    %1818 = vdwg.mxu0
    %v1819 = vadd.f32 %v642, %v1816
    %v1820 = vxor.u32 %v1819, 2147483648
    %v1821 = vmul.f32 %v1820, 1.442695
    %v1822 = vpow.pop %v1821
    %v1823 = vadd.f32 %v1822, 1.0
    %v1824 = vrcp.pop %v1823
    %v1825 = vmul.f32 1.0, %v1824
    %1827 = vrot.lane.b32.xlu0 %v1816, 64
    %v1828 = vpop.permute.xlu0 %1827
    %v1830 = vmul.f32 %v1825, %v1828
    %1832 = vrot.lane.b32.xlu0 %v1830, 64
    %v1833 = vpop.permute.xlu0 %1832
    %v1835 = vadd.f32 %v642, %v1833
    %v1836 = vtanh.pop %v1835
    %v1837 = vsub.f32 1.0, %v1825
    %1839 = vrot.lane.b32.xlu0 %v1836, 96
    %v1840 = vpop.permute.xlu0 %1839
    %v1842 = vmul.f32 %v1837, %v1840
    %v1843 = vmul.f32 %v1825, %v1743
    %v1844 = vadd.f32 %v1842, %v1843
    %1846 = vrot.lane.b32.xlu0 %v1844, 96
    %v1847 = vpop.permute.xlu0 %1846
    %v1848 = vsel %vm109, %v1847, 0
    %1850 = vmatprep.subr.mxu0 0.0
    %1851 = vmatpush1.msra.mxu0 %v1527
    %1852 = vmatprep.subr.mxu0 0.0
    %1853 = vmatpush1.msra.mxu0 %v1528
    %1854 = vmatprep.subr.mxu0 0.0
    %1855 = vmatpush1.msra.mxu0 %v1529
    %1856 = vmatprep.subr.mxu0 0.0
    %1857 = vmatpush1.msra.mxu0 %v1530
    %1858 = vmatprep.subr.mxu0 0.0
    %1859 = vmatpush1.msra.mxu0 0.0
    %1860 = vmatprep.subr.mxu0 0.0
    %1861 = vmatpush1.msra.mxu0 0.0
    %1862 = vmatprep.subr.mxu0 0.0
    %1863 = vmatpush1.msra.mxu0 0.0
    %1864 = vmatprep.subr.mxu0 0.0
    %1865 = vmatpush1.msra.mxu0 0.0
    %1866 = vmatprep.subr.mxu0 0.0
    %1867 = vmatpush1.msra.mxu0 0.0
    %1868 = vmatprep.subr.mxu0 0.0
    %1869 = vmatpush1.msra.mxu0 0.0
    %1870 = vmatprep.subr.mxu0 0.0
    %1871 = vmatpush1.msra.mxu0 0.0
    %1872 = vmatprep.subr.mxu0 0.0
    %1873 = vmatpush1.msra.mxu0 0.0
    %1874 = vmatprep.subr.mxu0 0.0
    %1875 = vmatpush1.msra.mxu0 0.0
    %1876 = vmatprep.subr.mxu0 0.0
    %1877 = vmatpush1.msra.mxu0 0.0
    %1878 = vmatprep.subr.mxu0 0.0
    %1879 = vmatpush1.msra.mxu0 0.0
    %1880 = vmatprep.subr.mxu0 0.0
    %1881 = vmatpush1.msra.mxu0 0.0
    %1882 = vmatprep.subr.mxu0 0.0
    %1883 = vmatpush1.msra.mxu0 0.0
    %1884 = vmatprep.subr.mxu0 0.0
    %1885 = vmatpush1.msra.mxu0 0.0
    %1886 = vmatprep.subr.mxu0 0.0
    %1887 = vmatpush1.msra.mxu0 0.0
    %1888 = vmatprep.subr.mxu0 0.0
    %1889 = vmatpush1.msra.mxu0 0.0
    %1890 = vmatprep.subr.mxu0 0.0
    %1891 = vmatpush1.msra.mxu0 0.0
    %1892 = vmatprep.subr.mxu0 0.0
    %1893 = vmatpush1.msra.mxu0 0.0
    %1894 = vmatprep.subr.mxu0 0.0
    %1895 = vmatpush1.msra.mxu0 0.0
    %1896 = vmatprep.subr.mxu0 0.0
    %1897 = vmatpush1.msra.mxu0 0.0
    %1898 = vmatprep.subr.mxu0 0.0
    %1899 = vmatpush1.msra.mxu0 0.0
    %1900 = vmatprep.subr.mxu0 0.0
    %1901 = vmatpush1.msra.mxu0 0.0
    %1902 = vmatprep.subr.mxu0 0.0
    %1903 = vmatpush1.msra.mxu0 0.0
    %1904 = vmatprep.subr.mxu0 0.0
    %1905 = vmatpush1.msra.mxu0 0.0
    %1906 = vmatprep.subr.mxu0 0.0
    %1907 = vmatpush1.msra.mxu0 0.0
    %1908 = vmatprep.subr.mxu0 0.0
    %1909 = vmatpush1.msra.mxu0 0.0
    %1910 = vmatprep.subr.mxu0 0.0
    %1911 = vmatpush1.msra.mxu0 0.0
    %1912 = vmatprep.subr.mxu0 0.0
    %1913 = vmatpush1.msra.mxu0 0.0
    %1914 = vmatprep.mubr.f32.mxu0 0.0
    %1915 = vmatmul.mubr.f32.gmra.mrb[0].mxu0 %v1848
    %v1916 = vpop.f32.mrb[0].mxu0
    %v1917 = vadd.f32 %v1539, %v1916
    %v1918 = vpop.f32.mrb[0].mxu0
    %1919 = vdwg.mxu0
    %v1920 = vadd.f32 %v818, %v1917
    %v1921 = vxor.u32 %v1920, 2147483648
    %v1922 = vmul.f32 %v1921, 1.442695
    %v1923 = vpow.pop %v1922
    %v1924 = vadd.f32 %v1923, 1.0
    %v1925 = vrcp.pop %v1924
    %v1926 = vmul.f32 1.0, %v1925
    %1928 = vrot.lane.b32.xlu0 %v1917, 64
    %v1929 = vpop.permute.xlu0 %1928
    %v1931 = vmul.f32 %v1926, %v1929
    %1933 = vrot.lane.b32.xlu0 %v1931, 64
    %v1934 = vpop.permute.xlu0 %1933
    %v1936 = vadd.f32 %v818, %v1934
    %v1937 = vtanh.pop %v1936
    %v1938 = vsub.f32 1.0, %v1926
    %1940 = vrot.lane.b32.xlu0 %v1937, 96
    %v1941 = vpop.permute.xlu0 %1940
    %v1943 = vmul.f32 %v1938, %v1941
    %v1944 = vmul.f32 %v1926, %v1844
    %v1945 = vadd.f32 %v1943, %v1944
    %1947 = vrot.lane.b32.xlu0 %v1945, 96
    %v1948 = vpop.permute.xlu0 %1947
    %v1949 = vsel %vm109, %v1948, 0
    %1951 = vmatprep.subr.mxu0 0.0
    %1952 = vmatpush1.msra.mxu0 %v1527
    %1953 = vmatprep.subr.mxu0 0.0
    %1954 = vmatpush1.msra.mxu0 %v1528
    %1955 = vmatprep.subr.mxu0 0.0
    %1956 = vmatpush1.msra.mxu0 %v1529
    %1957 = vmatprep.subr.mxu0 0.0
    %1958 = vmatpush1.msra.mxu0 %v1530
    %1959 = vmatprep.subr.mxu0 0.0
    %1960 = vmatpush1.msra.mxu0 0.0
    %1961 = vmatprep.subr.mxu0 0.0
    %1962 = vmatpush1.msra.mxu0 0.0
    %1963 = vmatprep.subr.mxu0 0.0
    %1964 = vmatpush1.msra.mxu0 0.0
    %1965 = vmatprep.subr.mxu0 0.0
    %1966 = vmatpush1.msra.mxu0 0.0
    %1967 = vmatprep.subr.mxu0 0.0
    %1968 = vmatpush1.msra.mxu0 0.0
    %1969 = vmatprep.subr.mxu0 0.0
    %1970 = vmatpush1.msra.mxu0 0.0
    %1971 = vmatprep.subr.mxu0 0.0
    %1972 = vmatpush1.msra.mxu0 0.0
    %1973 = vmatprep.subr.mxu0 0.0
    %1974 = vmatpush1.msra.mxu0 0.0
    %1975 = vmatprep.subr.mxu0 0.0
    %1976 = vmatpush1.msra.mxu0 0.0
    %1977 = vmatprep.subr.mxu0 0.0
    %1978 = vmatpush1.msra.mxu0 0.0
    %1979 = vmatprep.subr.mxu0 0.0
    %1980 = vmatpush1.msra.mxu0 0.0
    %1981 = vmatprep.subr.mxu0 0.0
    %1982 = vmatpush1.msra.mxu0 0.0
    %1983 = vmatprep.subr.mxu0 0.0
    %1984 = vmatpush1.msra.mxu0 0.0
    %1985 = vmatprep.subr.mxu0 0.0
    %1986 = vmatpush1.msra.mxu0 0.0
    %1987 = vmatprep.subr.mxu0 0.0
    %1988 = vmatpush1.msra.mxu0 0.0
    %1989 = vmatprep.subr.mxu0 0.0
    %1990 = vmatpush1.msra.mxu0 0.0
    %1991 = vmatprep.subr.mxu0 0.0
    %1992 = vmatpush1.msra.mxu0 0.0
    %1993 = vmatprep.subr.mxu0 0.0
    %1994 = vmatpush1.msra.mxu0 0.0
    %1995 = vmatprep.subr.mxu0 0.0
    %1996 = vmatpush1.msra.mxu0 0.0
    %1997 = vmatprep.subr.mxu0 0.0
    %1998 = vmatpush1.msra.mxu0 0.0
    %1999 = vmatprep.subr.mxu0 0.0
    %2000 = vmatpush1.msra.mxu0 0.0
    %2001 = vmatprep.subr.mxu0 0.0
    %2002 = vmatpush1.msra.mxu0 0.0
    %2003 = vmatprep.subr.mxu0 0.0
    %2004 = vmatpush1.msra.mxu0 0.0
    %2005 = vmatprep.subr.mxu0 0.0
    %2006 = vmatpush1.msra.mxu0 0.0
    %2007 = vmatprep.subr.mxu0 0.0
    %2008 = vmatpush1.msra.mxu0 0.0
    %2009 = vmatprep.subr.mxu0 0.0
    %2010 = vmatpush1.msra.mxu0 0.0
    %2011 = vmatprep.subr.mxu0 0.0
    %2012 = vmatpush1.msra.mxu0 0.0
    %2013 = vmatprep.subr.mxu0 0.0
    %2014 = vmatpush1.msra.mxu0 0.0
    %2015 = vmatprep.mubr.f32.mxu0 0.0
    %2016 = vmatmul.mubr.f32.gmra.mrb[0].mxu0 %v1949
    %v2017 = vpop.f32.mrb[0].mxu0
    %v2018 = vadd.f32 %v1539, %v2017
    %v2019 = vpop.f32.mrb[0].mxu0
    %2020 = vdwg.mxu0
    %v2021 = vadd.f32 %v990, %v2018
    %v2022 = vxor.u32 %v2021, 2147483648
    %v2023 = vmul.f32 %v2022, 1.442695
    %v2024 = vpow.pop %v2023
    %v2025 = vadd.f32 %v2024, 1.0
    %v2026 = vrcp.pop %v2025
    %v2027 = vmul.f32 1.0, %v2026
    %2029 = vrot.lane.b32.xlu0 %v2018, 64
    %v2030 = vpop.permute.xlu0 %2029
    %v2032 = vmul.f32 %v2027, %v2030
    %2034 = vrot.lane.b32.xlu0 %v2032, 64
    %v2035 = vpop.permute.xlu0 %2034
    %v2037 = vadd.f32 %v990, %v2035
    %v2038 = vtanh.pop %v2037
    %v2039 = vsub.f32 1.0, %v2027
    %2041 = vrot.lane.b32.xlu0 %v2038, 96
    %v2042 = vpop.permute.xlu0 %2041
    %v2044 = vmul.f32 %v2039, %v2042
    %v2045 = vmul.f32 %v2027, %v1945
    %v2046 = vadd.f32 %v2044, %v2045
    %2048 = vrot.lane.b32.xlu0 %v2046, 96
    %v2049 = vpop.permute.xlu0 %2048
    %v2050 = vsel %vm109, %v2049, 0
    %2052 = vmatprep.subr.mxu0 0.0
    %2053 = vmatpush1.msra.mxu0 %v1527
    %2054 = vmatprep.subr.mxu0 0.0
    %2055 = vmatpush1.msra.mxu0 %v1528
    %2056 = vmatprep.subr.mxu0 0.0
    %2057 = vmatpush1.msra.mxu0 %v1529
    %2058 = vmatprep.subr.mxu0 0.0
    %2059 = vmatpush1.msra.mxu0 %v1530
    %2060 = vmatprep.subr.mxu0 0.0
    %2061 = vmatpush1.msra.mxu0 0.0
    %2062 = vmatprep.subr.mxu0 0.0
    %2063 = vmatpush1.msra.mxu0 0.0
    %2064 = vmatprep.subr.mxu0 0.0
    %2065 = vmatpush1.msra.mxu0 0.0
    %2066 = vmatprep.subr.mxu0 0.0
    %2067 = vmatpush1.msra.mxu0 0.0
    %2068 = vmatprep.subr.mxu0 0.0
    %2069 = vmatpush1.msra.mxu0 0.0
    %2070 = vmatprep.subr.mxu0 0.0
    %2071 = vmatpush1.msra.mxu0 0.0
    %2072 = vmatprep.subr.mxu0 0.0
    %2073 = vmatpush1.msra.mxu0 0.0
    %2074 = vmatprep.subr.mxu0 0.0
    %2075 = vmatpush1.msra.mxu0 0.0
    %2076 = vmatprep.subr.mxu0 0.0
    %2077 = vmatpush1.msra.mxu0 0.0
    %2078 = vmatprep.subr.mxu0 0.0
    %2079 = vmatpush1.msra.mxu0 0.0
    %2080 = vmatprep.subr.mxu0 0.0
    %2081 = vmatpush1.msra.mxu0 0.0
    %2082 = vmatprep.subr.mxu0 0.0
    %2083 = vmatpush1.msra.mxu0 0.0
    %2084 = vmatprep.subr.mxu0 0.0
    %2085 = vmatpush1.msra.mxu0 0.0
    %2086 = vmatprep.subr.mxu0 0.0
    %2087 = vmatpush1.msra.mxu0 0.0
    %2088 = vmatprep.subr.mxu0 0.0
    %2089 = vmatpush1.msra.mxu0 0.0
    %2090 = vmatprep.subr.mxu0 0.0
    %2091 = vmatpush1.msra.mxu0 0.0
    %2092 = vmatprep.subr.mxu0 0.0
    %2093 = vmatpush1.msra.mxu0 0.0
    %2094 = vmatprep.subr.mxu0 0.0
    %2095 = vmatpush1.msra.mxu0 0.0
    %2096 = vmatprep.subr.mxu0 0.0
    %2097 = vmatpush1.msra.mxu0 0.0
    %2098 = vmatprep.subr.mxu0 0.0
    %2099 = vmatpush1.msra.mxu0 0.0
    %2100 = vmatprep.subr.mxu0 0.0
    %2101 = vmatpush1.msra.mxu0 0.0
    %2102 = vmatprep.subr.mxu0 0.0
    %2103 = vmatpush1.msra.mxu0 0.0
    %2104 = vmatprep.subr.mxu0 0.0
    %2105 = vmatpush1.msra.mxu0 0.0
    %2106 = vmatprep.subr.mxu0 0.0
    %2107 = vmatpush1.msra.mxu0 0.0
    %2108 = vmatprep.subr.mxu0 0.0
    %2109 = vmatpush1.msra.mxu0 0.0
    %2110 = vmatprep.subr.mxu0 0.0
    %2111 = vmatpush1.msra.mxu0 0.0
    %2112 = vmatprep.subr.mxu0 0.0
    %2113 = vmatpush1.msra.mxu0 0.0
    %2114 = vmatprep.subr.mxu0 0.0
    %2115 = vmatpush1.msra.mxu0 0.0
    %2116 = vmatprep.mubr.f32.mxu0 0.0
    %2117 = vmatmul.mubr.f32.gmra.mrb[0].mxu0 %v2050
    %v2118 = vpop.f32.mrb[0].mxu0
    %v2119 = vadd.f32 %v1539, %v2118
    %v2120 = vpop.f32.mrb[0].mxu0
    %2121 = vdwg.mxu0
    %v2122 = vadd.f32 %v1166, %v2119
    %v2123 = vxor.u32 %v2122, 2147483648
    %v2124 = vmul.f32 %v2123, 1.442695
    %v2125 = vpow.pop %v2124
    %v2126 = vadd.f32 %v2125, 1.0
    %v2127 = vrcp.pop %v2126
    %v2128 = vmul.f32 1.0, %v2127
    %2130 = vrot.lane.b32.xlu0 %v2119, 64
    %v2131 = vpop.permute.xlu0 %2130
    %v2133 = vmul.f32 %v2128, %v2131
    %2135 = vrot.lane.b32.xlu0 %v2133, 64
    %v2136 = vpop.permute.xlu0 %2135
    %v2138 = vadd.f32 %v1166, %v2136
    %v2139 = vtanh.pop %v2138
    %v2140 = vsub.f32 1.0, %v2128
    %2142 = vrot.lane.b32.xlu0 %v2139, 96
    %v2143 = vpop.permute.xlu0 %2142
    %v2145 = vmul.f32 %v2140, %v2143
    %v2146 = vmul.f32 %v2128, %v2046
    %v2147 = vadd.f32 %v2145, %v2146
    %2149 = vrot.lane.b32.xlu0 %v2147, 96
    %v2150 = vpop.permute.xlu0 %2149
    %v2151 = vsel %vm109, %v2150, 0
    %2153 = vmatprep.subr.mxu0 0.0
    %2154 = vmatpush1.msra.mxu0 %v1527
    %2155 = vmatprep.subr.mxu0 0.0
    %2156 = vmatpush1.msra.mxu0 %v1528
    %2157 = vmatprep.subr.mxu0 0.0
    %2158 = vmatpush1.msra.mxu0 %v1529
    %2159 = vmatprep.subr.mxu0 0.0
    %2160 = vmatpush1.msra.mxu0 %v1530
    %2161 = vmatprep.subr.mxu0 0.0
    %2162 = vmatpush1.msra.mxu0 0.0
    %2163 = vmatprep.subr.mxu0 0.0
    %2164 = vmatpush1.msra.mxu0 0.0
    %2165 = vmatprep.subr.mxu0 0.0
    %2166 = vmatpush1.msra.mxu0 0.0
    %2167 = vmatprep.subr.mxu0 0.0
    %2168 = vmatpush1.msra.mxu0 0.0
    %2169 = vmatprep.subr.mxu0 0.0
    %2170 = vmatpush1.msra.mxu0 0.0
    %2171 = vmatprep.subr.mxu0 0.0
    %2172 = vmatpush1.msra.mxu0 0.0
    %2173 = vmatprep.subr.mxu0 0.0
    %2174 = vmatpush1.msra.mxu0 0.0
    %2175 = vmatprep.subr.mxu0 0.0
    %2176 = vmatpush1.msra.mxu0 0.0
    %2177 = vmatprep.subr.mxu0 0.0
    %2178 = vmatpush1.msra.mxu0 0.0
    %2179 = vmatprep.subr.mxu0 0.0
    %2180 = vmatpush1.msra.mxu0 0.0
    %2181 = vmatprep.subr.mxu0 0.0
    %2182 = vmatpush1.msra.mxu0 0.0
    %2183 = vmatprep.subr.mxu0 0.0
    %2184 = vmatpush1.msra.mxu0 0.0
    %2185 = vmatprep.subr.mxu0 0.0
    %2186 = vmatpush1.msra.mxu0 0.0
    %2187 = vmatprep.subr.mxu0 0.0
    %2188 = vmatpush1.msra.mxu0 0.0
    %2189 = vmatprep.subr.mxu0 0.0
    %2190 = vmatpush1.msra.mxu0 0.0
    %2191 = vmatprep.subr.mxu0 0.0
    %2192 = vmatpush1.msra.mxu0 0.0
    %2193 = vmatprep.subr.mxu0 0.0
    %2194 = vmatpush1.msra.mxu0 0.0
    %2195 = vmatprep.subr.mxu0 0.0
    %2196 = vmatpush1.msra.mxu0 0.0
    %2197 = vmatprep.subr.mxu0 0.0
    %2198 = vmatpush1.msra.mxu0 0.0
    %2199 = vmatprep.subr.mxu0 0.0
    %2200 = vmatpush1.msra.mxu0 0.0
    %2201 = vmatprep.subr.mxu0 0.0
    %2202 = vmatpush1.msra.mxu0 0.0
    %2203 = vmatprep.subr.mxu0 0.0
    %2204 = vmatpush1.msra.mxu0 0.0
    %2205 = vmatprep.subr.mxu0 0.0
    %2206 = vmatpush1.msra.mxu0 0.0
    %2207 = vmatprep.subr.mxu0 0.0
    %2208 = vmatpush1.msra.mxu0 0.0
    %2209 = vmatprep.subr.mxu0 0.0
    %2210 = vmatpush1.msra.mxu0 0.0
    %2211 = vmatprep.subr.mxu0 0.0
    %2212 = vmatpush1.msra.mxu0 0.0
    %2213 = vmatprep.subr.mxu0 0.0
    %2214 = vmatpush1.msra.mxu0 0.0
    %2215 = vmatprep.subr.mxu0 0.0
    %2216 = vmatpush1.msra.mxu0 0.0
    %2217 = vmatprep.mubr.f32.mxu0 0.0
    %2218 = vmatmul.mubr.f32.gmra.mrb[0].mxu0 %v2151
    %v2219 = vpop.f32.mrb[0].mxu0
    %v2220 = vadd.f32 %v1539, %v2219
    %v2221 = vpop.f32.mrb[0].mxu0
    %2222 = vdwg.mxu0
    %v2223 = vadd.f32 %v1342, %v2220
    %v2224 = vxor.u32 %v2223, 2147483648
    %v2225 = vmul.f32 %v2224, 1.442695
    %v2226 = vpow.pop %v2225
    %v2227 = vadd.f32 %v2226, 1.0
    %v2228 = vrcp.pop %v2227
    %v2229 = vmul.f32 1.0, %v2228
    %2231 = vrot.lane.b32.xlu0 %v2220, 64
    %v2232 = vpop.permute.xlu0 %2231
    %v2234 = vmul.f32 %v2229, %v2232
    %2236 = vrot.lane.b32.xlu0 %v2234, 64
    %v2237 = vpop.permute.xlu0 %2236
    %v2239 = vadd.f32 %v1342, %v2237
    %v2240 = vtanh.pop %v2239
    %v2241 = vsub.f32 1.0, %v2229
    %2243 = vrot.lane.b32.xlu0 %v2240, 96
    %v2244 = vpop.permute.xlu0 %2243
    %v2246 = vmul.f32 %v2241, %v2244
    %v2247 = vmul.f32 %v2229, %v2147
    %v2248 = vadd.f32 %v2246, %v2247
    %2250 = vrot.lane.b32.xlu0 %v2248, 96
    %v2251 = vpop.permute.xlu0 %2250
    %v2252 = vsel %vm109, %v2251, 0
    %2254 = vmatprep.subr.mxu0 0.0
    %2255 = vmatpush1.msra.mxu0 %v1527
    %2256 = vmatprep.subr.mxu0 0.0
    %2257 = vmatpush1.msra.mxu0 %v1528
    %2258 = vmatprep.subr.mxu0 0.0
    %2259 = vmatpush1.msra.mxu0 %v1529
    %2260 = vmatprep.subr.mxu0 0.0
    %2261 = vmatpush1.msra.mxu0 %v1530
    %2262 = vmatprep.subr.mxu0 0.0
    %2263 = vmatpush1.msra.mxu0 0.0
    %2264 = vmatprep.subr.mxu0 0.0
    %2265 = vmatpush1.msra.mxu0 0.0
    %2266 = vmatprep.subr.mxu0 0.0
    %2267 = vmatpush1.msra.mxu0 0.0
    %2268 = vmatprep.subr.mxu0 0.0
    %2269 = vmatpush1.msra.mxu0 0.0
    %2270 = vmatprep.subr.mxu0 0.0
    %2271 = vmatpush1.msra.mxu0 0.0
    %2272 = vmatprep.subr.mxu0 0.0
    %2273 = vmatpush1.msra.mxu0 0.0
    %2274 = vmatprep.subr.mxu0 0.0
    %2275 = vmatpush1.msra.mxu0 0.0
    %2276 = vmatprep.subr.mxu0 0.0
    %2277 = vmatpush1.msra.mxu0 0.0
    %2278 = vmatprep.subr.mxu0 0.0
    %2279 = vmatpush1.msra.mxu0 0.0
    %2280 = vmatprep.subr.mxu0 0.0
    %2281 = vmatpush1.msra.mxu0 0.0
    %2282 = vmatprep.subr.mxu0 0.0
    %2283 = vmatpush1.msra.mxu0 0.0
    %2284 = vmatprep.subr.mxu0 0.0
    %2285 = vmatpush1.msra.mxu0 0.0
    %2286 = vmatprep.subr.mxu0 0.0
    %2287 = vmatpush1.msra.mxu0 0.0
    %2288 = vmatprep.subr.mxu0 0.0
    %2289 = vmatpush1.msra.mxu0 0.0
    %2290 = vmatprep.subr.mxu0 0.0
    %2291 = vmatpush1.msra.mxu0 0.0
    %2292 = vmatprep.subr.mxu0 0.0
    %2293 = vmatpush1.msra.mxu0 0.0
    %2294 = vmatprep.subr.mxu0 0.0
    %2295 = vmatpush1.msra.mxu0 0.0
    %2296 = vmatprep.subr.mxu0 0.0
    %2297 = vmatpush1.msra.mxu0 0.0
    %2298 = vmatprep.subr.mxu0 0.0
    %2299 = vmatpush1.msra.mxu0 0.0
    %2300 = vmatprep.subr.mxu0 0.0
    %2301 = vmatpush1.msra.mxu0 0.0
    %2302 = vmatprep.subr.mxu0 0.0
    %2303 = vmatpush1.msra.mxu0 0.0
    %2304 = vmatprep.subr.mxu0 0.0
    %2305 = vmatpush1.msra.mxu0 0.0
    %2306 = vmatprep.subr.mxu0 0.0
    %2307 = vmatpush1.msra.mxu0 0.0
    %2308 = vmatprep.subr.mxu0 0.0
    %2309 = vmatpush1.msra.mxu0 0.0
    %2310 = vmatprep.subr.mxu0 0.0
    %2311 = vmatpush1.msra.mxu0 0.0
    %2312 = vmatprep.subr.mxu0 0.0
    %2313 = vmatpush1.msra.mxu0 0.0
    %2314 = vmatprep.subr.mxu0 0.0
    %2315 = vmatpush1.msra.mxu0 0.0
    %2316 = vmatprep.subr.mxu0 0.0
    %2317 = vmatpush1.msra.mxu0 0.0
    %2318 = vmatprep.mubr.f32.mxu0 0.0
    %2319 = vmatmul.mubr.f32.gmra.mrb[0].mxu0 %v2252
    %v2320 = vpop.f32.mrb[0].mxu0
    %v2321 = vadd.f32 %v1539, %v2320
    %v2322 = vpop.f32.mrb[0].mxu0
    %2323 = vdwg.mxu0
    %v2324 = vadd.f32 %v1518, %v2321
    %v2325 = vxor.u32 %v2324, 2147483648
    %v2326 = vmul.f32 %v2325, 1.442695
    %v2327 = vpow.pop %v2326
    %v2328 = vadd.f32 %v2327, 1.0
    %v2329 = vrcp.pop %v2328
    %v2330 = vmul.f32 1.0, %v2329
    %2332 = vrot.lane.b32.xlu0 %v2321, 64
    %v2333 = vpop.permute.xlu0 %2332
    %v2335 = vmul.f32 %v2330, %v2333
    %2337 = vrot.lane.b32.xlu0 %v2335, 64
    %v2338 = vpop.permute.xlu0 %2337
    %v2340 = vadd.f32 %v1518, %v2338
    %v2341 = vtanh.pop %v2340
    %v2342 = vsub.f32 1.0, %v2330
    %2344 = vrot.lane.b32.xlu0 %v2341, 96
    %v2345 = vpop.permute.xlu0 %2344
    %v2347 = vmul.f32 %v2342, %v2345
    %v2348 = vmul.f32 %v2330, %v2248
    %v2349 = vadd.f32 %v2347, %v2348
    %2351 = vrot.lane.b32.xlu0 %v2349, 96
    %v2352 = vpop.permute.xlu0 %2351
    %s2354 = scalar_lea.vmem [#allocation8], 2
    %vm2355 = vcmask 254976
    %2356 = vst.msk [vmem:[%s2354] sm:$0x3] %vm2355, %v2352
    %v2357 = vmax.f32 %v2349, 0.0
    %v2358 = vld [vmem:[%s6] sm:$0x1]
    %v2360 = vlaneseq
    %v2361 = vshrl.u32 %v2360, 7
    %v2362 = vsub.s32 0, %v2361
    %v2363 = vrot.slane %v2358, %v2362
    %2364 = vrot.lane.b32.xlu0 %v2363, 32
    %v2365 = vpop.permute.xlu0 %2364
    %v2367 = vmul.f32 %v2357, %v2365
    %2369 = vrot.lane.b32.xlu0 %v2367, 96
    %v2370 = vpop.permute.xlu0 %2369
    %v2372 = vsel %vm2355, %v2370, 0.0
    %2373 = vadd.xlane.f32.xlu0 %v2372
    %v2374 = vpop.xlane.xlu0 %2373
    %v2375 = vld [vmem:[#allocation2] sm:$0x1]
    %v2377 = vlaneseq
    %v2378 = vshrl.u32 %v2377, 7
    %v2379 = vsub.s32 0, %v2378
    %v2380 = vrot.slane %v2375, %v2379
    %v2382 = vadd.f32 %v2374, %v2380
    %v2383 = vxor.u32 %v2382, 2147483648
    %v2384 = vmul.f32 %v2383, 1.442695
    %v2385 = vpow.pop %v2384
    %v2386 = vadd.f32 %v2385, 1.0
    %v2387 = vrcp.pop %v2386
    %v2388 = vmul.f32 1.0, %v2387
    %vm2389 = vcmask 1024
    %2390 = vst.msk [vmem:[%s8] sm:$0x3] %vm2389, %v2388
    // Predicated region
    $region42: #{tpu_custom_call.1} parent=1 // pred_check
      _
    $region43: #{tpu_custom_call.1} parent=1 // pred_check_branch
      %2392 = sbr.rel (0) target = $region45
    $region44: #{tpu_custom_call.1} parent=1 // pred_region
      _
    $region45: #{tpu_custom_call.1} parent=1 // pred_fallthru
      _
    // Predicated region
    $region46: #{tpu_custom_call.1} parent=1 // pred_check
      _
    $region47: #{tpu_custom_call.1} parent=1 // pred_check_branch
      %2394 = sbr.rel (0) target = $region49
    $region48: #{tpu_custom_call.1} parent=1 // pred_region
      %s2396 = ssub.s32 64, 64
      %2397 = vsyncadd [#allocation5], %s2396
      %s2398 = sshll.u32 [#allocation8], 4
      %s2399 = int_to_ptr.vmem [resolvable:$true] %s2398
      %2404 = dma.vmem_to_hbm [thread:$0]  %s2399, 64, %s9, [#allocation5], 32, 32, 2
    $region49: #{tpu_custom_call.1} parent=1 // pred_fallthru
      _
    // Predicated region
    $region50: #{tpu_custom_call.1} parent=1 // pred_check
      _
    $region51: #{tpu_custom_call.1} parent=1 // pred_check_branch
      %2406 = sbr.rel (0) target = $region53
    $region52: #{tpu_custom_call.1} parent=1 // pred_region
      _
    $region53: #{tpu_custom_call.1} parent=1 // pred_fallthru
      _
    // Predicated region
    $region54: #{tpu_custom_call.1} parent=1 // pred_check
      _
    $region55: #{tpu_custom_call.1} parent=1 // pred_check_branch
      %2408 = sbr.rel (0) target = $region57
    $region56: #{tpu_custom_call.1} parent=1 // pred_region
      %2409 = dma.done [#allocation5], 64
    $region57: #{tpu_custom_call.1} parent=1 // pred_fallthru
      _
    %2410 = vsyncpa [#allocation4], 1
    %2411 = vsyncpa [#allocation7], 1
    %2412 = vsyncpa [#allocation5], 1

</llo_original>
